<compile_context>
chip_gen: v7x
topology: tpu7x:2x2x1
jax: 0.10.0
libtpu: 0.0.40
codegen_flags: <defaults>
</compile_context>

<pallas_src>
import functools
import math

import jax
import jax.numpy as jnp
from jax.experimental import pallas as pl
from jax.experimental.pallas import tpu as pltpu


_VMEM_LIMIT = 48 * 1024 * 1024   # conservative cap (v7x physical VMEM = 64 MiB)
_NEG_INF = -1e30                 # finite mask value (no inf-inf NaNs in online softmax)


def _pick_tile(dim, target, quantum):
    """Largest tile <= target that divides `dim` and is a multiple of `quantum`;
    falls back to the full dim (always a legal block shape)."""
    if dim <= target:
        return dim
    t = (target // quantum) * quantum
    while t >= quantum:
        if dim % t == 0:
            return t
        t -= quantum
    return dim


# --------------------- fused LayerNorm + matmul (+GELU) ----------------------

def _ln_matmul_kernel(x_ref, g_ref, b_ref, w_ref, bias_ref, o_ref, *,
                      eps, activation):
    x = x_ref[...].astype(jnp.float32)                       # (tm, K)
    mu = jnp.mean(x, axis=-1, keepdims=True)
    var = jnp.mean(jnp.square(x - mu), axis=-1, keepdims=True)
    xn = (x - mu) * jax.lax.rsqrt(var + eps)
    xn = xn * g_ref[...] + b_ref[...]
    y = jnp.dot(xn.astype(w_ref.dtype), w_ref[...],
                preferred_element_type=jnp.float32)          # (tm, tn) f32 acc
    y = y + bias_ref[...]
    if activation == "gelu":
        y = jax.nn.gelu(y)
    o_ref[...] = y.astype(o_ref.dtype)


def ln_matmul(x, gamma, beta, w, bias, *, activation="none",
              out_dtype=jnp.bfloat16, eps=1e-5):
    """y = act(LN(x) @ w + bias).  x: (M, K) f32; w: (K, N) bf16."""
    M, K = x.shape
    K2, N = w.shape
    assert K == K2
    tm = _pick_tile(M, 256, 8)
    tn = _pick_tile(N, 512, 128)
    g2 = gamma.reshape(1, K).astype(jnp.float32)
    b2 = beta.reshape(1, K).astype(jnp.float32)
    bias2 = bias.reshape(1, N).astype(jnp.float32)
    kernel = functools.partial(_ln_matmul_kernel, eps=eps, activation=activation)
    return pl.pallas_call(
        kernel,
        out_shape=jax.ShapeDtypeStruct((M, N), out_dtype),
        grid=(M // tm, N // tn),
        in_specs=[
            pl.BlockSpec((tm, K), lambda i, j: (i, 0)),   # LN needs full K row
            pl.BlockSpec((1, K), lambda i, j: (0, 0)),
            pl.BlockSpec((1, K), lambda i, j: (0, 0)),
            pl.BlockSpec((K, tn), lambda i, j: (0, j)),
            pl.BlockSpec((1, tn), lambda i, j: (0, j)),
        ],
        out_specs=pl.BlockSpec((tm, tn), lambda i, j: (i, j)),
        compiler_params=pltpu.CompilerParams(
            dimension_semantics=("parallel", "parallel"),
            vmem_limit_bytes=_VMEM_LIMIT),
    )(x, g2, b2, w, bias2)


# --------------- K-tiled matmul + bias + residual (accumulator) --------------

def _matmul_res_kernel(x_ref, w_ref, bias_ref, r_ref, o_ref, acc_ref):
    @pl.when(pl.program_id(2) == 0)
    def _():
        acc_ref[...] = jnp.zeros_like(acc_ref)

    acc_ref[...] += jnp.dot(x_ref[...].astype(w_ref.dtype), w_ref[...],
                            preferred_element_type=jnp.float32)

    @pl.when(pl.program_id(2) == pl.num_programs(2) - 1)
    def _():
        y = acc_ref[...] + bias_ref[...] + r_ref[...].astype(jnp.float32)
        o_ref[...] = y.astype(o_ref.dtype)


def matmul_bias_residual(x, w, bias, residual, *, out_dtype=jnp.float32):
    """y = x @ w + bias + residual.  x: (M, K) bf16; w: (K, N) bf16."""
    M, K = x.shape
    K2, N = w.shape
    assert K == K2 and residual.shape == (M, N)
    tm = _pick_tile(M, 256, 8)
    tn = _pick_tile(N, 512, 128)
    tk = _pick_tile(K, 512, 128)
    bias2 = bias.reshape(1, N).astype(jnp.float32)
    return pl.pallas_call(
        _matmul_res_kernel,
        out_shape=jax.ShapeDtypeStruct((M, N), out_dtype),
        grid=(M // tm, N // tn, K // tk),
        in_specs=[
            pl.BlockSpec((tm, tk), lambda i, j, k: (i, k)),
            pl.BlockSpec((tk, tn), lambda i, j, k: (k, j)),
            pl.BlockSpec((1, tn), lambda i, j, k: (0, j)),
            pl.BlockSpec((tm, tn), lambda i, j, k: (i, j)),
        ],
        out_specs=pl.BlockSpec((tm, tn), lambda i, j, k: (i, j)),
        scratch_shapes=[pltpu.VMEM((tm, tn), jnp.float32)],
        compiler_params=pltpu.CompilerParams(
            dimension_semantics=("parallel", "parallel", "arbitrary"),
            vmem_limit_bytes=_VMEM_LIMIT),
    )(x, w, bias2, residual)


# ------------------------ flash causal attention ----------------------------

def _flash_attn_kernel(q_ref, kv_ref, mask_ref, o_ref, m_ref, l_ref, acc_ref,
                       *, n_heads, dh, scale, tq, tk):
    qi = pl.program_id(1)
    ki = pl.program_id(2)
    H = n_heads * dh

    @pl.when(ki == 0)
    def _():
        m_ref[...] = jnp.full_like(m_ref, _NEG_INF)
        l_ref[...] = jnp.zeros_like(l_ref)
        acc_ref[...] = jnp.zeros_like(acc_ref)

    q_start = qi * tq
    k_start = ki * tk

    # Skip KV blocks entirely in the causal future of this Q block.
    @pl.when(k_start <= q_start + tq - 1)
    def _():
        q_pos = q_start + jax.lax.broadcasted_iota(jnp.int32, (tq, tk), 0)
        k_pos = k_start + jax.lax.broadcasted_iota(jnp.int32, (tq, tk), 1)
        valid = jnp.logical_and(q_pos >= k_pos, mask_ref[0] > 0.5)   # (tq, tk)

        q_all = q_ref[0]                                             # (tq, 3H)
        kv_all = kv_ref[0]                                           # (tk, 3H)
        # Scale q (tq*dh elems) instead of the (tq, tk) scores.
        q_sec = (q_all[:, :H].astype(jnp.float32) * scale).astype(q_all.dtype)

        for h in range(n_heads):
            q = q_sec[:, h * dh:(h + 1) * dh]                        # (tq, dh)
            k = kv_all[:, H + h * dh:H + (h + 1) * dh]               # (tk, dh)
            v = kv_all[:, 2 * H + h * dh:2 * H + (h + 1) * dh]       # (tk, dh)
            s = jnp.dot(q, k.T, preferred_element_type=jnp.float32)  # (tq, tk)
            s = jnp.where(valid, s, _NEG_INF)
            m_prev = m_ref[h]                                        # (tq, 1)
            m_new = jnp.maximum(m_prev, s.max(axis=-1, keepdims=True))
            alpha = jnp.exp(m_prev - m_new)
            p = jnp.exp(s - m_new)                                   # f32 softmax
            l_ref[h] = alpha * l_ref[h] + p.sum(axis=-1, keepdims=True)
            acc_ref[h] = alpha * acc_ref[h] + jnp.dot(
                p.astype(v.dtype), v, preferred_element_type=jnp.float32)
            m_ref[h] = m_new

    @pl.when(ki == pl.num_programs(2) - 1)
    def _():
        outs = []
        for h in range(n_heads):
            inv_l = pl.reciprocal(l_ref[h], approx=True)             # EUP, (tq, 1)
            outs.append(acc_ref[h] * inv_l)                          # (tq, dh)
        out = jnp.concatenate(outs, axis=-1)                         # (tq, H) lane-dense
        o_ref[...] = out[None].astype(o_ref.dtype)


def flash_attention(qkv, attention_mask, n_heads):
    """qkv: (B, S, 3H) bf16; attention_mask: (B, S) -> (B, S, H) bf16."""
    B, S, threeH = qkv.shape
    H = threeH // 3
    dh = H // n_heads
    scale = 1.0 / math.sqrt(dh)
    tq = _pick_tile(S, 256, 8)
    tk = _pick_tile(S, 256, 128)
    mask3 = attention_mask.astype(jnp.float32).reshape(B, 1, S)
    kernel = functools.partial(_flash_attn_kernel, n_heads=n_heads, dh=dh,
                               scale=scale, tq=tq, tk=tk)
    return pl.pallas_call(
        kernel,
        out_shape=jax.ShapeDtypeStruct((B, S, H), qkv.dtype),
        grid=(B, S // tq, S // tk),
        in_specs=[
            pl.BlockSpec((1, tq, threeH), lambda b, qi, ki: (b, qi, 0)),  # Q rows
            pl.BlockSpec((1, tk, threeH), lambda b, qi, ki: (b, ki, 0)),  # KV rows
            pl.BlockSpec((1, 1, tk), lambda b, qi, ki: (b, 0, ki)),       # key mask
        ],
        out_specs=pl.BlockSpec((1, tq, H), lambda b, qi, ki: (b, qi, 0)),
        scratch_shapes=[
            pltpu.VMEM((n_heads, tq, 1), jnp.float32),    # m (running max)
            pltpu.VMEM((n_heads, tq, 1), jnp.float32),    # l (running denom)
            pltpu.VMEM((n_heads, tq, dh), jnp.float32),   # acc
        ],
        compiler_params=pltpu.CompilerParams(
            dimension_semantics=("parallel", "parallel", "arbitrary"),
            vmem_limit_bytes=_VMEM_LIMIT),
    )(qkv, qkv, mask3)


# ----------------------------- model (glue) ---------------------------------

def init_params(key, vocab, hidden, n_layers, n_heads, ffn):
    def nrm(k, shape, scale=0.02, dtype=jnp.bfloat16):
        return (scale * jax.random.normal(k, shape)).astype(dtype)

    keys = jax.random.split(key, 2 + n_layers)
    params = {
        "emb": nrm(keys[0], (vocab, hidden), dtype=jnp.float32),
        "lnf_g": jnp.ones((hidden,), jnp.float32),
        "lnf_b": jnp.zeros((hidden,), jnp.float32),
        "lm_w": nrm(keys[1], (hidden, vocab)),             # bf16
        "lm_b": jnp.zeros((vocab,), jnp.float32),
        "layers": [],
    }
    for li in range(n_layers):
        lk = jax.random.split(keys[2 + li], 4)
        params["layers"].append({
            "ln1_g": jnp.ones((hidden,), jnp.float32),
            "ln1_b": jnp.zeros((hidden,), jnp.float32),
            "wqkv": nrm(lk[0], (hidden, 3 * hidden)),      # bf16
            "bqkv": jnp.zeros((3 * hidden,), jnp.float32),
            "wo": nrm(lk[1], (hidden, hidden)),            # bf16
            "bo": jnp.zeros((hidden,), jnp.float32),
            "ln2_g": jnp.ones((hidden,), jnp.float32),
            "ln2_b": jnp.zeros((hidden,), jnp.float32),
            "w1": nrm(lk[2], (hidden, ffn)),               # bf16
            "b1": jnp.zeros((ffn,), jnp.float32),
            "w2": nrm(lk[3], (ffn, hidden)),               # bf16
            "b2": jnp.zeros((hidden,), jnp.float32),
        })
    return params


def language_model_forward(params, input_ids, attention_mask, n_heads):
    """Equivalent of LanguageModel.forward: returns logits (B, S, V) f32."""
    B, S = input_ids.shape
    emb = params["emb"]
    H = emb.shape[1]

    # Embedding lookup (glue, plain JAX gather).
    x2 = jnp.take(emb, input_ids, axis=0).astype(jnp.float32).reshape(B * S, H)

    for layer in params["layers"]:
        # --- attention block: LN1 fused into the QKV projection ---
        qkv = ln_matmul(x2, layer["ln1_g"], layer["ln1_b"],
                        layer["wqkv"], layer["bqkv"],
                        out_dtype=jnp.bfloat16)                     # (B*S, 3H)
        attn = flash_attention(qkv.reshape(B, S, 3 * H),
                               attention_mask, n_heads)             # (B, S, H)
        x2 = matmul_bias_residual(attn.reshape(B * S, H),
                                  layer["wo"], layer["bo"], x2)     # (B*S, H) f32

        # --- MLP block: LN2 fused into up-proj; GELU in matmul epilogue ---
        h = ln_matmul(x2, layer["ln2_g"], layer["ln2_b"],
                      layer["w1"], layer["b1"],
                      activation="gelu", out_dtype=jnp.bfloat16)    # (B*S, F)
        x2 = matmul_bias_residual(h, layer["w2"], layer["b2"], x2)  # (B*S, H) f32

    # --- final norm fused into the LM head ---
    logits = ln_matmul(x2, params["lnf_g"], params["lnf_b"],
                       params["lm_w"], params["lm_b"],
                       out_dtype=jnp.float32)                       # (B*S, V)
    return logits.reshape(B, S, -1)


# --------------------------------- main --------------------------------------

if __name__ == "__main__":
    B, S = 2, 8
    VOCAB, HIDDEN, N_LAYERS, N_HEADS, FFN = 256, 128, 2, 4, 256

    key = jax.random.PRNGKey(0)
    kp, kid = jax.random.split(key)
    params = init_params(kp, VOCAB, HIDDEN, N_LAYERS, N_HEADS, FFN)

    input_ids = jax.random.randint(kid, (B, S), 0, VOCAB, dtype=jnp.int32)
    # Second sequence has 2 padded (masked-out) trailing tokens.
    attention_mask = jnp.array(
        [[1, 1, 1, 1, 1, 1, 1, 1],
         [1, 1, 1, 1, 1, 1, 0, 0]], dtype=jnp.int32)

    fwd = jax.jit(functools.partial(language_model_forward, n_heads=N_HEADS))
    logits = fwd(params, input_ids, attention_mask)
    jax.block_until_ready(logits)

    assert logits.shape == (B, S, VOCAB)
    assert logits.dtype == jnp.float32
    assert bool(jnp.all(jnp.isfinite(logits)))
    print("KERNEL_OK")
</pallas_src>

<mosaic_0001>
module attributes {stable_mosaic.version = 11 : i64} {
  func.func @_matmul_res_kernel(%arg0: i32, %arg1: i32, %arg2: i32, %arg3: memref<16x128xbf16, #tpu.memory_space<vmem>>, %arg4: memref<128x128xbf16, #tpu.memory_space<vmem>>, %arg5: memref<1x128xf32, #tpu.memory_space<vmem>>, %arg6: memref<16x128xf32, #tpu.memory_space<vmem>>, %arg7: memref<16x128xf32, #tpu.memory_space<vmem>>, %arg8: memref<16x128xf32, #tpu.memory_space<vmem>>) attributes {dimension_semantics = [#tpu.dimension_semantics<parallel>, #tpu.dimension_semantics<parallel>, #tpu.dimension_semantics<arbitrary>], iteration_bounds = array<i64: 1, 1, 1>, scalar_prefetch = 0 : i64, scratch_operands = 1 : i64, tpu.core_type = #tpu.core_type<tc>, window_params = [{transform_indices = @transform_0, window_bounds = array<i64: 16, 128>}, {transform_indices = @transform_1, window_bounds = array<i64: 128, 128>}, {transform_indices = @transform_2, window_bounds = array<i64: 1, 128>}, {transform_indices = @transform_3, window_bounds = array<i64: 16, 128>}, {transform_indices = @transform_4, window_bounds = array<i64: 16, 128>}]} {
    %c0_i32 = arith.constant 0 : i32
    %0 = arith.cmpi eq, %arg2, %c0_i32 : i32
    %1 = arith.extui %0 : i1 to i32
    %c0_i32_0 = arith.constant 0 : i32
    %2 = arith.cmpi ne, %1, %c0_i32_0 : i32
    scf.if %2 {
      %cst_10 = arith.constant 0.000000e+00 : f32
      %12 = vector.broadcast %cst_10 : f32 to vector<16x128xf32>
      %c0_11 = arith.constant 0 : index
      %c0_12 = arith.constant 0 : index
      %13 = vector.load %arg8[%c0_11, %c0_12] : memref<16x128xf32, #tpu.memory_space<vmem>>, vector<16x128xf32>
      tpu.vector_store %arg8[%c0_11, %c0_12], %12 {strides = array<i32>} : memref<16x128xf32, #tpu.memory_space<vmem>>, vector<16x128xf32>,
    } else {
    }
    %c0 = arith.constant 0 : index
    %c0_1 = arith.constant 0 : index
    %3 = vector.load %arg8[%c0, %c0_1] : memref<16x128xf32, #tpu.memory_space<vmem>>, vector<16x128xf32>
    %c0_2 = arith.constant 0 : index
    %c0_3 = arith.constant 0 : index
    %4 = vector.load %arg3[%c0_2, %c0_3] : memref<16x128xbf16, #tpu.memory_space<vmem>>, vector<16x128xbf16>
    %c0_4 = arith.constant 0 : index
    %c0_5 = arith.constant 0 : index
    %5 = vector.load %arg4[%c0_4, %c0_5] : memref<128x128xbf16, #tpu.memory_space<vmem>>, vector<128x128xbf16>
    %cst = arith.constant dense<0.000000e+00> : vector<16x128xf32>
    %6 = tpu.matmul %4, %5, %cst {dimension_numbers = #tpu.dot_dimension_numbers<[1], [0], [0], [1], [0, 0, 1, 1], [], []>} : vector<16x128xbf16>, vector<128x128xbf16>, vector<16x128xf32> -> vector<16x128xf32>
    %7 = arith.addf %3, %6 : vector<16x128xf32>
    %c0_6 = arith.constant 0 : index
    %c0_7 = arith.constant 0 : index
    %8 = vector.load %arg8[%c0_6, %c0_7] : memref<16x128xf32, #tpu.memory_space<vmem>>, vector<16x128xf32>
    tpu.vector_store %arg8[%c0_6, %c0_7], %7 {strides = array<i32>} : memref<16x128xf32, #tpu.memory_space<vmem>>, vector<16x128xf32>,
    %c0_i32_8 = arith.constant 0 : i32
    %9 = arith.cmpi eq, %arg2, %c0_i32_8 : i32
    %10 = arith.extui %9 : i1 to i32
    %c0_i32_9 = arith.constant 0 : i32
    %11 = arith.cmpi ne, %10, %c0_i32_9 : i32
    scf.if %11 {
      %c0_10 = arith.constant 0 : index
      %c0_11 = arith.constant 0 : index
      %12 = vector.load %arg8[%c0_10, %c0_11] : memref<16x128xf32, #tpu.memory_space<vmem>>, vector<16x128xf32>
      %c0_12 = arith.constant 0 : index
      %c0_13 = arith.constant 0 : index
      %13 = vector.load %arg5[%c0_12, %c0_13] : memref<1x128xf32, #tpu.memory_space<vmem>>, vector<1x128xf32>
      %14 = vector.broadcast %13 : vector<1x128xf32> to vector<16x128xf32>
      %15 = arith.addf %12, %14 : vector<16x128xf32>
      %c0_14 = arith.constant 0 : index
      %c0_15 = arith.constant 0 : index
      %16 = vector.load %arg6[%c0_14, %c0_15] : memref<16x128xf32, #tpu.memory_space<vmem>>, vector<16x128xf32>
      %17 = arith.addf %15, %16 : vector<16x128xf32>
      %c0_16 = arith.constant 0 : index
      %c0_17 = arith.constant 0 : index
      %18 = vector.load %arg7[%c0_16, %c0_17] : memref<16x128xf32, #tpu.memory_space<vmem>>, vector<16x128xf32>
      tpu.vector_store %arg7[%c0_16, %c0_17], %17 {strides = array<i32>} : memref<16x128xf32, #tpu.memory_space<vmem>>, vector<16x128xf32>,
    } else {
    }
    return
  }
  func.func @transform_0(%arg0: i32, %arg1: i32, %arg2: i32) -> (i32, i32) {
    %c0_i32 = arith.constant 0 : i32
    return %arg0, %arg2 : i32, i32
  }
  func.func @transform_1(%arg0: i32, %arg1: i32, %arg2: i32) -> (i32, i32) {
    %c0_i32 = arith.constant 0 : i32
    return %arg2, %arg1 : i32, i32
  }
  func.func @transform_2(%arg0: i32, %arg1: i32, %arg2: i32) -> (i32, i32) {
    %c0_i32 = arith.constant 0 : i32
    %c0_i32_0 = arith.constant 0 : i32
    return %c0_i32, %arg1 : i32, i32
  }
  func.func @transform_3(%arg0: i32, %arg1: i32, %arg2: i32) -> (i32, i32) {
    %c0_i32 = arith.constant 0 : i32
    return %arg0, %arg1 : i32, i32
  }
  func.func @transform_4(%arg0: i32, %arg1: i32, %arg2: i32) -> (i32, i32) {
    %c0_i32 = arith.constant 0 : i32
    return %arg0, %arg1 : i32, i32
  }
}

module attributes {stable_mosaic.version = 11 : i64} {
  func.func @_ln_matmul_kernel(%arg0: i32, %arg1: i32, %arg2: memref<16x128xf32, #tpu.memory_space<vmem>>, %arg3: memref<1x128xf32, #tpu.memory_space<vmem>>, %arg4: memref<1x128xf32, #tpu.memory_space<vmem>>, %arg5: memref<128x384xbf16, #tpu.memory_space<vmem>>, %arg6: memref<1x384xf32, #tpu.memory_space<vmem>>, %arg7: memref<16x384xbf16, #tpu.memory_space<vmem>>) attributes {dimension_semantics = [#tpu.dimension_semantics<parallel>, #tpu.dimension_semantics<parallel>], iteration_bounds = array<i64: 1, 1>, scalar_prefetch = 0 : i64, scratch_operands = 0 : i64, tpu.core_type = #tpu.core_type<tc>, window_params = [{transform_indices = @transform_0, window_bounds = array<i64: 16, 128>}, {pipeline_mode = #tpu.pipeline_mode<synchronous>, transform_indices = @transform_1, window_bounds = array<i64: 1, 128>}, {pipeline_mode = #tpu.pipeline_mode<synchronous>, transform_indices = @transform_2, window_bounds = array<i64: 1, 128>}, {transform_indices = @transform_3, window_bounds = array<i64: 128, 384>}, {transform_indices = @transform_4, window_bounds = array<i64: 1, 384>}, {transform_indices = @transform_5, window_bounds = array<i64: 16, 384>}]} {
    %c0 = arith.constant 0 : index
    %c0_0 = arith.constant 0 : index
    %0 = vector.load %arg2[%c0, %c0_0] : memref<16x128xf32, #tpu.memory_space<vmem>>, vector<16x128xf32>
    %cst = arith.constant dense<0.000000e+00> : vector<16xf32>
    %1 = vector.multi_reduction <add>, %0, %cst [1] : vector<16x128xf32> to vector<16xf32>
    %2 = vector.shape_cast %1 : vector<16xf32> to vector<16x1xf32>
    %cst_1 = arith.constant 1.280000e+02 : f32
    %3 = vector.broadcast %cst_1 : f32 to vector<16x1xf32>
    %4 = arith.divf %2, %3 : vector<16x1xf32>
    %5 = vector.broadcast %4 : vector<16x1xf32> to vector<16x128xf32>
    %6 = arith.subf %0, %5 : vector<16x128xf32>
    %7 = arith.mulf %6, %6 : vector<16x128xf32>
    %cst_2 = arith.constant dense<0.000000e+00> : vector<16xf32>
    %8 = vector.multi_reduction <add>, %7, %cst_2 [1] : vector<16x128xf32> to vector<16xf32>
    %9 = vector.shape_cast %8 : vector<16xf32> to vector<16x1xf32>
    %cst_3 = arith.constant 1.280000e+02 : f32
    %10 = vector.broadcast %cst_3 : f32 to vector<16x1xf32>
    %11 = arith.divf %9, %10 : vector<16x1xf32>
    %12 = vector.broadcast %4 : vector<16x1xf32> to vector<16x128xf32>
    %13 = arith.subf %0, %12 : vector<16x128xf32>
    %cst_4 = arith.constant 9.99999974E-6 : f32
    %14 = vector.broadcast %cst_4 : f32 to vector<16x1xf32>
    %15 = arith.addf %11, %14 : vector<16x1xf32>
    %16 = math.rsqrt %15 : vector<16x1xf32>
    %17 = vector.broadcast %16 : vector<16x1xf32> to vector<16x128xf32>
    %18 = arith.mulf %13, %17 : vector<16x128xf32>
    %c0_5 = arith.constant 0 : index
    %c0_6 = arith.constant 0 : index
    %19 = vector.load %arg3[%c0_5, %c0_6] : memref<1x128xf32, #tpu.memory_space<vmem>>, vector<1x128xf32>
    %20 = vector.broadcast %19 : vector<1x128xf32> to vector<16x128xf32>
    %21 = arith.mulf %18, %20 : vector<16x128xf32>
    %c0_7 = arith.constant 0 : index
    %c0_8 = arith.constant 0 : index
    %22 = vector.load %arg4[%c0_7, %c0_8] : memref<1x128xf32, #tpu.memory_space<vmem>>, vector<1x128xf32>
    %23 = vector.broadcast %22 : vector<1x128xf32> to vector<16x128xf32>
    %24 = arith.addf %21, %23 : vector<16x128xf32>
    %25 = arith.truncf %24 : vector<16x128xf32> to vector<16x128xbf16>
    %c0_9 = arith.constant 0 : index
    %c0_10 = arith.constant 0 : index
    %26 = vector.load %arg5[%c0_9, %c0_10] : memref<128x384xbf16, #tpu.memory_space<vmem>>, vector<128x384xbf16>
    %cst_11 = arith.constant dense<0.000000e+00> : vector<16x384xf32>
    %27 = tpu.matmul %25, %26, %cst_11 {dimension_numbers = #tpu.dot_dimension_numbers<[1], [0], [0], [1], [0, 0, 1, 1], [], []>} : vector<16x128xbf16>, vector<128x384xbf16>, vector<16x384xf32> -> vector<16x384xf32>
    %c0_12 = arith.constant 0 : index
    %c0_13 = arith.constant 0 : index
    %28 = vector.load %arg6[%c0_12, %c0_13] : memref<1x384xf32, #tpu.memory_space<vmem>>, vector<1x384xf32>
    %29 = vector.broadcast %28 : vector<1x384xf32> to vector<16x384xf32>
    %30 = arith.addf %27, %29 : vector<16x384xf32>
    %31 = arith.truncf %30 : vector<16x384xf32> to vector<16x384xbf16>
    %c0_14 = arith.constant 0 : index
    %c0_15 = arith.constant 0 : index
    %32 = vector.load %arg7[%c0_14, %c0_15] : memref<16x384xbf16, #tpu.memory_space<vmem>>, vector<16x384xbf16>
    tpu.vector_store %arg7[%c0_14, %c0_15], %31 {strides = array<i32>} : memref<16x384xbf16, #tpu.memory_space<vmem>>, vector<16x384xbf16>,
    return
  }
  func.func @transform_0(%arg0: i32, %arg1: i32) -> (i32, i32) {
    %c0_i32 = arith.constant 0 : i32
    %c0_i32_0 = arith.constant 0 : i32
    return %arg0, %c0_i32 : i32, i32
  }
  func.func @transform_1(%arg0: i32, %arg1: i32) -> (i32, i32) {
    %c0_i32 = arith.constant 0 : i32
    %c0_i32_0 = arith.constant 0 : i32
    %c0_i32_1 = arith.constant 0 : i32
    return %c0_i32, %c0_i32_0 : i32, i32
  }
  func.func @transform_2(%arg0: i32, %arg1: i32) -> (i32, i32) {
    %c0_i32 = arith.constant 0 : i32
    %c0_i32_0 = arith.constant 0 : i32
    %c0_i32_1 = arith.constant 0 : i32
    return %c0_i32, %c0_i32_0 : i32, i32
  }
  func.func @transform_3(%arg0: i32, %arg1: i32) -> (i32, i32) {
    %c0_i32 = arith.constant 0 : i32
    %c0_i32_0 = arith.constant 0 : i32
    return %c0_i32, %arg1 : i32, i32
  }
  func.func @transform_4(%arg0: i32, %arg1: i32) -> (i32, i32) {
    %c0_i32 = arith.constant 0 : i32
    %c0_i32_0 = arith.constant 0 : i32
    return %c0_i32, %arg1 : i32, i32
  }
  func.func @transform_5(%arg0: i32, %arg1: i32) -> (i32, i32) {
    %c0_i32 = arith.constant 0 : i32
    return %arg0, %arg1 : i32, i32
  }
}

module attributes {stable_mosaic.version = 11 : i64} {
  func.func @_ln_matmul_kernel(%arg0: i32, %arg1: i32, %arg2: memref<16x128xf32, #tpu.memory_space<vmem>>, %arg3: memref<1x128xf32, #tpu.memory_space<vmem>>, %arg4: memref<1x128xf32, #tpu.memory_space<vmem>>, %arg5: memref<128x256xbf16, #tpu.memory_space<vmem>>, %arg6: memref<1x256xf32, #tpu.memory_space<vmem>>, %arg7: memref<16x256xbf16, #tpu.memory_space<vmem>>) attributes {dimension_semantics = [#tpu.dimension_semantics<parallel>, #tpu.dimension_semantics<parallel>], iteration_bounds = array<i64: 1, 1>, scalar_prefetch = 0 : i64, scratch_operands = 0 : i64, tpu.core_type = #tpu.core_type<tc>, window_params = [{transform_indices = @transform_0, window_bounds = array<i64: 16, 128>}, {pipeline_mode = #tpu.pipeline_mode<synchronous>, transform_indices = @transform_1, window_bounds = array<i64: 1, 128>}, {pipeline_mode = #tpu.pipeline_mode<synchronous>, transform_indices = @transform_2, window_bounds = array<i64: 1, 128>}, {transform_indices = @transform_3, window_bounds = array<i64: 128, 256>}, {transform_indices = @transform_4, window_bounds = array<i64: 1, 256>}, {transform_indices = @transform_5, window_bounds = array<i64: 16, 256>}]} {
    %c0 = arith.constant 0 : index
    %c0_0 = arith.constant 0 : index
    %0 = vector.load %arg2[%c0, %c0_0] : memref<16x128xf32, #tpu.memory_space<vmem>>, vector<16x128xf32>
    %cst = arith.constant dense<0.000000e+00> : vector<16xf32>
    %1 = vector.multi_reduction <add>, %0, %cst [1] : vector<16x128xf32> to vector<16xf32>
    %2 = vector.shape_cast %1 : vector<16xf32> to vector<16x1xf32>
    %cst_1 = arith.constant 1.280000e+02 : f32
    %3 = vector.broadcast %cst_1 : f32 to vector<16x1xf32>
    %4 = arith.divf %2, %3 : vector<16x1xf32>
    %5 = vector.broadcast %4 : vector<16x1xf32> to vector<16x128xf32>
    %6 = arith.subf %0, %5 : vector<16x128xf32>
    %7 = arith.mulf %6, %6 : vector<16x128xf32>
    %cst_2 = arith.constant dense<0.000000e+00> : vector<16xf32>
    %8 = vector.multi_reduction <add>, %7, %cst_2 [1] : vector<16x128xf32> to vector<16xf32>
    %9 = vector.shape_cast %8 : vector<16xf32> to vector<16x1xf32>
    %cst_3 = arith.constant 1.280000e+02 : f32
    %10 = vector.broadcast %cst_3 : f32 to vector<16x1xf32>
    %11 = arith.divf %9, %10 : vector<16x1xf32>
    %12 = vector.broadcast %4 : vector<16x1xf32> to vector<16x128xf32>
    %13 = arith.subf %0, %12 : vector<16x128xf32>
    %cst_4 = arith.constant 9.99999974E-6 : f32
    %14 = vector.broadcast %cst_4 : f32 to vector<16x1xf32>
    %15 = arith.addf %11, %14 : vector<16x1xf32>
    %16 = math.rsqrt %15 : vector<16x1xf32>
    %17 = vector.broadcast %16 : vector<16x1xf32> to vector<16x128xf32>
    %18 = arith.mulf %13, %17 : vector<16x128xf32>
    %c0_5 = arith.constant 0 : index
    %c0_6 = arith.constant 0 : index
    %19 = vector.load %arg3[%c0_5, %c0_6] : memref<1x128xf32, #tpu.memory_space<vmem>>, vector<1x128xf32>
    %20 = vector.broadcast %19 : vector<1x128xf32> to vector<16x128xf32>
    %21 = arith.mulf %18, %20 : vector<16x128xf32>
    %c0_7 = arith.constant 0 : index
    %c0_8 = arith.constant 0 : index
    %22 = vector.load %arg4[%c0_7, %c0_8] : memref<1x128xf32, #tpu.memory_space<vmem>>, vector<1x128xf32>
    %23 = vector.broadcast %22 : vector<1x128xf32> to vector<16x128xf32>
    %24 = arith.addf %21, %23 : vector<16x128xf32>
    %25 = arith.truncf %24 : vector<16x128xf32> to vector<16x128xbf16>
    %c0_9 = arith.constant 0 : index
    %c0_10 = arith.constant 0 : index
    %26 = vector.load %arg5[%c0_9, %c0_10] : memref<128x256xbf16, #tpu.memory_space<vmem>>, vector<128x256xbf16>
    %cst_11 = arith.constant dense<0.000000e+00> : vector<16x256xf32>
    %27 = tpu.matmul %25, %26, %cst_11 {dimension_numbers = #tpu.dot_dimension_numbers<[1], [0], [0], [1], [0, 0, 1, 1], [], []>} : vector<16x128xbf16>, vector<128x256xbf16>, vector<16x256xf32> -> vector<16x256xf32>
    %c0_12 = arith.constant 0 : index
    %c0_13 = arith.constant 0 : index
    %28 = vector.load %arg6[%c0_12, %c0_13] : memref<1x256xf32, #tpu.memory_space<vmem>>, vector<1x256xf32>
    %29 = vector.broadcast %28 : vector<1x256xf32> to vector<16x256xf32>
    %30 = arith.addf %27, %29 : vector<16x256xf32>
    %31 = arith.mulf %30, %30 : vector<16x256xf32>
    %32 = arith.mulf %30, %31 : vector<16x256xf32>
    %cst_14 = arith.constant 4.471500e-02 : f32
    %33 = vector.broadcast %cst_14 : f32 to vector<16x256xf32>
    %34 = arith.mulf %33, %32 : vector<16x256xf32>
    %35 = arith.addf %30, %34 : vector<16x256xf32>
    %cst_15 = arith.constant 0.797884583 : f32
    %36 = vector.broadcast %cst_15 : f32 to vector<16x256xf32>
    %37 = arith.mulf %36, %35 : vector<16x256xf32>
    %38 = math.tanh %37 : vector<16x256xf32>
    %cst_16 = arith.constant 1.000000e+00 : f32
    %39 = vector.broadcast %cst_16 : f32 to vector<16x256xf32>
    %40 = arith.addf %39, %38 : vector<16x256xf32>
    %cst_17 = arith.constant 5.000000e-01 : f32
    %41 = vector.broadcast %cst_17 : f32 to vector<16x256xf32>
    %42 = arith.mulf %41, %40 : vector<16x256xf32>
    %43 = arith.mulf %30, %42 : vector<16x256xf32>
    %44 = arith.truncf %43 : vector<16x256xf32> to vector<16x256xbf16>
    %c0_18 = arith.constant 0 : index
    %c0_19 = arith.constant 0 : index
    %45 = vector.load %arg7[%c0_18, %c0_19] : memref<16x256xbf16, #tpu.memory_space<vmem>>, vector<16x256xbf16>
    tpu.vector_store %arg7[%c0_18, %c0_19], %44 {strides = array<i32>} : memref<16x256xbf16, #tpu.memory_space<vmem>>, vector<16x256xbf16>,
    return
  }
  func.func @transform_0(%arg0: i32, %arg1: i32) -> (i32, i32) {
    %c0_i32 = arith.constant 0 : i32
    %c0_i32_0 = arith.constant 0 : i32
    return %arg0, %c0_i32 : i32, i32
  }
  func.func @transform_1(%arg0: i32, %arg1: i32) -> (i32, i32) {
    %c0_i32 = arith.constant 0 : i32
    %c0_i32_0 = arith.constant 0 : i32
    %c0_i32_1 = arith.constant 0 : i32
    return %c0_i32, %c0_i32_0 : i32, i32
  }
  func.func @transform_2(%arg0: i32, %arg1: i32) -> (i32, i32) {
    %c0_i32 = arith.constant 0 : i32
    %c0_i32_0 = arith.constant 0 : i32
    %c0_i32_1 = arith.constant 0 : i32
    return %c0_i32, %c0_i32_0 : i32, i32
  }
  func.func @transform_3(%arg0: i32, %arg1: i32) -> (i32, i32) {
    %c0_i32 = arith.constant 0 : i32
    %c0_i32_0 = arith.constant 0 : i32
    return %c0_i32, %arg1 : i32, i32
  }
  func.func @transform_4(%arg0: i32, %arg1: i32) -> (i32, i32) {
    %c0_i32 = arith.constant 0 : i32
    %c0_i32_0 = arith.constant 0 : i32
    return %c0_i32, %arg1 : i32, i32
  }
  func.func @transform_5(%arg0: i32, %arg1: i32) -> (i32, i32) {
    %c0_i32 = arith.constant 0 : i32
    return %arg0, %arg1 : i32, i32
  }
}

module attributes {stable_mosaic.version = 11 : i64} {
  func.func @_flash_attn_kernel(%arg0: i32, %arg1: i32, %arg2: i32, %arg3: memref<1x8x384xbf16, #tpu.memory_space<vmem>>, %arg4: memref<1x8x384xbf16, #tpu.memory_space<vmem>>, %arg5: memref<1x1x8xf32, #tpu.memory_space<vmem>>, %arg6: memref<1x8x128xbf16, #tpu.memory_space<vmem>>, %arg7: memref<4x8x1xf32, #tpu.memory_space<vmem>>, %arg8: memref<4x8x1xf32, #tpu.memory_space<vmem>>, %arg9: memref<4x8x32xf32, #tpu.memory_space<vmem>>) attributes {dimension_semantics = [#tpu.dimension_semantics<parallel>, #tpu.dimension_semantics<parallel>, #tpu.dimension_semantics<arbitrary>], iteration_bounds = array<i64: 2, 1, 1>, scalar_prefetch = 0 : i64, scratch_operands = 3 : i64, tpu.core_type = #tpu.core_type<tc>, window_params = [{transform_indices = @transform_0, window_bounds = array<i64: 1, 8, 384>}, {transform_indices = @transform_1, window_bounds = array<i64: 1, 8, 384>}, {transform_indices = @transform_2, window_bounds = array<i64: 1, 1, 8>}, {transform_indices = @transform_3, window_bounds = array<i64: 1, 8, 128>}]} {
    %c0_i32 = arith.constant 0 : i32
    %0 = arith.cmpi eq, %arg2, %c0_i32 : i32
    %1 = arith.extui %0 : i1 to i32
    %c0_i32_0 = arith.constant 0 : i32
    %2 = arith.cmpi ne, %1, %c0_i32_0 : i32
    scf.if %2 {
      %cst = arith.constant -1.000000e+30 : f32
      %13 = vector.broadcast %cst : f32 to vector<4x8x1xf32>
      %c0 = arith.constant 0 : index
      %c0_6 = arith.constant 0 : index
      %c0_7 = arith.constant 0 : index
      %14 = vector.load %arg7[%c0, %c0_6, %c0_7] : memref<4x8x1xf32, #tpu.memory_space<vmem>>, vector<4x8x1xf32>
      tpu.vector_store %arg7[%c0, %c0_6, %c0_7], %13 {strides = array<i32>} : memref<4x8x1xf32, #tpu.memory_space<vmem>>, vector<4x8x1xf32>,
      %cst_8 = arith.constant 0.000000e+00 : f32
      %15 = vector.broadcast %cst_8 : f32 to vector<4x8x1xf32>
      %c0_9 = arith.constant 0 : index
      %c0_10 = arith.constant 0 : index
      %c0_11 = arith.constant 0 : index
      %16 = vector.load %arg8[%c0_9, %c0_10, %c0_11] : memref<4x8x1xf32, #tpu.memory_space<vmem>>, vector<4x8x1xf32>
      tpu.vector_store %arg8[%c0_9, %c0_10, %c0_11], %15 {strides = array<i32>} : memref<4x8x1xf32, #tpu.memory_space<vmem>>, vector<4x8x1xf32>,
      %cst_12 = arith.constant 0.000000e+00 : f32
      %17 = vector.broadcast %cst_12 : f32 to vector<4x8x32xf32>
      %c0_13 = arith.constant 0 : index
      %c0_14 = arith.constant 0 : index
      %c0_15 = arith.constant 0 : index
      %18 = vector.load %arg9[%c0_13, %c0_14, %c0_15] : memref<4x8x32xf32, #tpu.memory_space<vmem>>, vector<4x8x32xf32>
      tpu.vector_store %arg9[%c0_13, %c0_14, %c0_15], %17 {strides = array<i32>} : memref<4x8x32xf32, #tpu.memory_space<vmem>>, vector<4x8x32xf32>,
    } else {
    }
    %c8_i32 = arith.constant 8 : i32
    %3 = arith.muli %arg1, %c8_i32 : i32
    %c8_i32_1 = arith.constant 8 : i32
    %4 = arith.muli %arg2, %c8_i32_1 : i32
    %c8_i32_2 = arith.constant 8 : i32
    %5 = arith.addi %3, %c8_i32_2 : i32
    %c1_i32 = arith.constant 1 : i32
    %6 = arith.subi %5, %c1_i32 : i32
    %7 = arith.cmpi sle, %4, %6 : i32
    %8 = arith.extui %7 : i1 to i32
    %c0_i32_3 = arith.constant 0 : i32
    %9 = arith.cmpi ne, %8, %c0_i32_3 : i32
    scf.if %9 {
      %13 = tpu.iota {dimensions = array<i32: 0>} : vector<8x8xi32>
      %14 = vector.broadcast %3 : i32 to vector<8x8xi32>
      %15 = arith.addi %14, %13 : vector<8x8xi32>
      %16 = tpu.iota {dimensions = array<i32: 1>} : vector<8x8xi32>
      %17 = vector.broadcast %4 : i32 to vector<8x8xi32>
      %18 = arith.addi %17, %16 : vector<8x8xi32>
      %19 = arith.cmpi sge, %15, %18 : vector<8x8xi32>
      %c0 = arith.constant 0 : index
      %c0_6 = arith.constant 0 : index
      %c0_7 = arith.constant 0 : index
      %20 = vector.load %arg5[%c0, %c0_6, %c0_7] : memref<1x1x8xf32, #tpu.memory_space<vmem>>, vector<1x1x8xf32>
      %21 = vector.shape_cast %20 : vector<1x1x8xf32> to vector<1x8xf32>
      %cst = arith.constant 5.000000e-01 : f32
      %22 = vector.broadcast %cst : f32 to vector<1x8xf32>
      %23 = arith.cmpf ogt, %21, %22 : vector<1x8xf32>
      %24 = vector.broadcast %23 : vector<1x8xi1> to vector<8x8xi1>
      %25 = arith.andi %19, %24 : vector<8x8xi1>
      %c0_8 = arith.constant 0 : index
      %c0_9 = arith.constant 0 : index
      %c0_10 = arith.constant 0 : index
      %26 = vector.load %arg3[%c0_8, %c0_9, %c0_10] : memref<1x8x384xbf16, #tpu.memory_space<vmem>>, vector<1x8x384xbf16>
      %27 = vector.shape_cast %26 : vector<1x8x384xbf16> to vector<8x384xbf16>
      %c0_11 = arith.constant 0 : index
      %c0_12 = arith.constant 0 : index
      %c0_13 = arith.constant 0 : index
      %28 = vector.load %arg4[%c0_11, %c0_12, %c0_13] : memref<1x8x384xbf16, #tpu.memory_space<vmem>>, vector<1x8x384xbf16>
      %29 = vector.shape_cast %28 : vector<1x8x384xbf16> to vector<8x384xbf16>
      %30 = vector.extract_strided_slice %27 {offsets = [0, 0], sizes = [8, 128], strides = [1, 1]} : vector<8x384xbf16> to vector<8x128xbf16>
      %31 = arith.extf %30 : vector<8x128xbf16> to vector<8x128xf32>
      %cst_14 = arith.constant 0.176776692 : f32
      %32 = vector.broadcast %cst_14 : f32 to vector<8x128xf32>
      %33 = arith.mulf %31, %32 : vector<8x128xf32>
      %34 = arith.truncf %33 : vector<8x128xf32> to vector<8x128xbf16>
      %35 = vector.extract_strided_slice %34 {offsets = [0, 0], sizes = [8, 32], strides = [1, 1]} : vector<8x128xbf16> to vector<8x32xbf16>
      %36 = vector.extract_strided_slice %29 {offsets = [0, 128], sizes = [8, 32], strides = [1, 1]} : vector<8x384xbf16> to vector<8x32xbf16>
      %37 = vector.extract_strided_slice %29 {offsets = [0, 256], sizes = [8, 32], strides = [1, 1]} : vector<8x384xbf16> to vector<8x32xbf16>
      %38 = tpu.transpose %36, [1, 0] : vector<8x32xbf16> -> vector<32x8xbf16>
      %cst_15 = arith.constant dense<0.000000e+00> : vector<8x8xf32>
      %39 = tpu.matmul %35, %38, %cst_15 {dimension_numbers = #tpu.dot_dimension_numbers<[1], [0], [0], [1], [0, 0, 1, 1], [], []>} : vector<8x32xbf16>, vector<32x8xbf16>, vector<8x8xf32> -> vector<8x8xf32>
      %cst_16 = arith.constant -1.000000e+30 : f32
      %40 = vector.broadcast %cst_16 : f32 to vector<8x8xf32>
      %41 = arith.select %25, %39, %40 : vector<8x8xi1>, vector<8x8xf32>
      %c0_17 = arith.constant 0 : index
      %c0_18 = arith.constant 0 : index
      %c0_19 = arith.constant 0 : index
      %42 = vector.load %arg7[%c0_17, %c0_18, %c0_19] : memref<4x8x1xf32, #tpu.memory_space<vmem>>, vector<1x8x1xf32>
      %43 = vector.shape_cast %42 : vector<1x8x1xf32> to vector<8x1xf32>
      %cst_20 = arith.constant dense<0xFF800000> : vector<8xf32>
      %44 = vector.multi_reduction <maximumf>, %41, %cst_20 [1] : vector<8x8xf32> to vector<8xf32>
      %45 = vector.shape_cast %44 : vector<8xf32> to vector<8x1xf32>
      %46 = arith.maximumf %43, %45 : vector<8x1xf32>
      %47 = arith.subf %43, %46 : vector<8x1xf32>
      %48 = math.exp %47 : vector<8x1xf32>
      %49 = vector.broadcast %46 : vector<8x1xf32> to vector<8x8xf32>
      %50 = arith.subf %41, %49 : vector<8x8xf32>
      %51 = math.exp %50 : vector<8x8xf32>
      %c0_21 = arith.constant 0 : index
      %c0_22 = arith.constant 0 : index
      %c0_23 = arith.constant 0 : index
      %52 = vector.load %arg8[%c0_21, %c0_22, %c0_23] : memref<4x8x1xf32, #tpu.memory_space<vmem>>, vector<1x8x1xf32>
      %53 = vector.shape_cast %52 : vector<1x8x1xf32> to vector<8x1xf32>
      %54 = arith.mulf %48, %53 : vector<8x1xf32>
      %cst_24 = arith.constant dense<0.000000e+00> : vector<8xf32>
      %55 = vector.multi_reduction <add>, %51, %cst_24 [1] : vector<8x8xf32> to vector<8xf32>
      %56 = vector.shape_cast %55 : vector<8xf32> to vector<8x1xf32>
      %57 = arith.addf %54, %56 : vector<8x1xf32>
      %c0_25 = arith.constant 0 : index
      %c0_26 = arith.constant 0 : index
      %c0_27 = arith.constant 0 : index
      %58 = vector.load %arg8[%c0_25, %c0_26, %c0_27] : memref<4x8x1xf32, #tpu.memory_space<vmem>>, vector<1x8x1xf32>
      %59 = vector.shape_cast %58 : vector<1x8x1xf32> to vector<8x1xf32>
      %60 = vector.shape_cast %57 : vector<8x1xf32> to vector<1x8x1xf32>
      tpu.vector_store %arg8[%c0_25, %c0_26, %c0_27], %60 {strides = array<i32>} : memref<4x8x1xf32, #tpu.memory_space<vmem>>, vector<1x8x1xf32>,
      %c0_28 = arith.constant 0 : index
      %c0_29 = arith.constant 0 : index
      %c0_30 = arith.constant 0 : index
      %61 = vector.load %arg9[%c0_28, %c0_29, %c0_30] : memref<4x8x32xf32, #tpu.memory_space<vmem>>, vector<1x8x32xf32>
      %62 = vector.shape_cast %61 : vector<1x8x32xf32> to vector<8x32xf32>
      %63 = vector.broadcast %48 : vector<8x1xf32> to vector<8x32xf32>
      %64 = arith.mulf %63, %62 : vector<8x32xf32>
      %65 = arith.truncf %51 : vector<8x8xf32> to vector<8x8xbf16>
      %cst_31 = arith.constant dense<0.000000e+00> : vector<8x32xf32>
      %66 = tpu.matmul %65, %37, %cst_31 {dimension_numbers = #tpu.dot_dimension_numbers<[1], [0], [0], [1], [0, 0, 1, 1], [], []>} : vector<8x8xbf16>, vector<8x32xbf16>, vector<8x32xf32> -> vector<8x32xf32>
      %67 = arith.addf %64, %66 : vector<8x32xf32>
      %c0_32 = arith.constant 0 : index
      %c0_33 = arith.constant 0 : index
      %c0_34 = arith.constant 0 : index
      %68 = vector.load %arg9[%c0_32, %c0_33, %c0_34] : memref<4x8x32xf32, #tpu.memory_space<vmem>>, vector<1x8x32xf32>
      %69 = vector.shape_cast %68 : vector<1x8x32xf32> to vector<8x32xf32>
      %70 = vector.shape_cast %67 : vector<8x32xf32> to vector<1x8x32xf32>
      tpu.vector_store %arg9[%c0_32, %c0_33, %c0_34], %70 {strides = array<i32>} : memref<4x8x32xf32, #tpu.memory_space<vmem>>, vector<1x8x32xf32>,
      %c0_35 = arith.constant 0 : index
      %c0_36 = arith.constant 0 : index
      %c0_37 = arith.constant 0 : index
      %71 = vector.load %arg7[%c0_35, %c0_36, %c0_37] : memref<4x8x1xf32, #tpu.memory_space<vmem>>, vector<1x8x1xf32>
      %72 = vector.shape_cast %71 : vector<1x8x1xf32> to vector<8x1xf32>
      %73 = vector.shape_cast %46 : vector<8x1xf32> to vector<1x8x1xf32>
      tpu.vector_store %arg7[%c0_35, %c0_36, %c0_37], %73 {strides = array<i32>} : memref<4x8x1xf32, #tpu.memory_space<vmem>>, vector<1x8x1xf32>,
      %74 = vector.extract_strided_slice %34 {offsets = [0, 32], sizes = [8, 32], strides = [1, 1]} : vector<8x128xbf16> to vector<8x32xbf16>
      %75 = vector.extract_strided_slice %29 {offsets = [0, 160], sizes = [8, 32], strides = [1, 1]} : vector<8x384xbf16> to vector<8x32xbf16>
      %76 = vector.extract_strided_slice %29 {offsets = [0, 288], sizes = [8, 32], strides = [1, 1]} : vector<8x384xbf16> to vector<8x32xbf16>
      %77 = tpu.transpose %75, [1, 0] : vector<8x32xbf16> -> vector<32x8xbf16>
      %cst_38 = arith.constant dense<0.000000e+00> : vector<8x8xf32>
      %78 = tpu.matmul %74, %77, %cst_38 {dimension_numbers = #tpu.dot_dimension_numbers<[1], [0], [0], [1], [0, 0, 1, 1], [], []>} : vector<8x32xbf16>, vector<32x8xbf16>, vector<8x8xf32> -> vector<8x8xf32>
      %cst_39 = arith.constant -1.000000e+30 : f32
      %79 = vector.broadcast %cst_39 : f32 to vector<8x8xf32>
      %80 = arith.select %25, %78, %79 : vector<8x8xi1>, vector<8x8xf32>
      %c1 = arith.constant 1 : index
      %c0_40 = arith.constant 0 : index
      %c0_41 = arith.constant 0 : index
      %81 = vector.load %arg7[%c1, %c0_40, %c0_41] : memref<4x8x1xf32, #tpu.memory_space<vmem>>, vector<1x8x1xf32>
      %82 = vector.shape_cast %81 : vector<1x8x1xf32> to vector<8x1xf32>
      %cst_42 = arith.constant dense<0xFF800000> : vector<8xf32>
      %83 = vector.multi_reduction <maximumf>, %80, %cst_42 [1] : vector<8x8xf32> to vector<8xf32>
      %84 = vector.shape_cast %83 : vector<8xf32> to vector<8x1xf32>
      %85 = arith.maximumf %82, %84 : vector<8x1xf32>
      %86 = arith.subf %82, %85 : vector<8x1xf32>
      %87 = math.exp %86 : vector<8x1xf32>
      %88 = vector.broadcast %85 : vector<8x1xf32> to vector<8x8xf32>
      %89 = arith.subf %80, %88 : vector<8x8xf32>
      %90 = math.exp %89 : vector<8x8xf32>
      %c1_43 = arith.constant 1 : index
      %c0_44 = arith.constant 0 : index
      %c0_45 = arith.constant 0 : index
      %91 = vector.load %arg8[%c1_43, %c0_44, %c0_45] : memref<4x8x1xf32, #tpu.memory_space<vmem>>, vector<1x8x1xf32>
      %92 = vector.shape_cast %91 : vector<1x8x1xf32> to vector<8x1xf32>
      %93 = arith.mulf %87, %92 : vector<8x1xf32>
      %cst_46 = arith.constant dense<0.000000e+00> : vector<8xf32>
      %94 = vector.multi_reduction <add>, %90, %cst_46 [1] : vector<8x8xf32> to vector<8xf32>
      %95 = vector.shape_cast %94 : vector<8xf32> to vector<8x1xf32>
      %96 = arith.addf %93, %95 : vector<8x1xf32>
      %c1_47 = arith.constant 1 : index
      %c0_48 = arith.constant 0 : index
      %c0_49 = arith.constant 0 : index
      %97 = vector.load %arg8[%c1_47, %c0_48, %c0_49] : memref<4x8x1xf32, #tpu.memory_space<vmem>>, vector<1x8x1xf32>
      %98 = vector.shape_cast %97 : vector<1x8x1xf32> to vector<8x1xf32>
      %99 = vector.shape_cast %96 : vector<8x1xf32> to vector<1x8x1xf32>
      tpu.vector_store %arg8[%c1_47, %c0_48, %c0_49], %99 {strides = array<i32>} : memref<4x8x1xf32, #tpu.memory_space<vmem>>, vector<1x8x1xf32>,
      %c1_50 = arith.constant 1 : index
      %c0_51 = arith.constant 0 : index
      %c0_52 = arith.constant 0 : index
      %100 = vector.load %arg9[%c1_50, %c0_51, %c0_52] : memref<4x8x32xf32, #tpu.memory_space<vmem>>, vector<1x8x32xf32>
      %101 = vector.shape_cast %100 : vector<1x8x32xf32> to vector<8x32xf32>
      %102 = vector.broadcast %87 : vector<8x1xf32> to vector<8x32xf32>
      %103 = arith.mulf %102, %101 : vector<8x32xf32>
      %104 = arith.truncf %90 : vector<8x8xf32> to vector<8x8xbf16>
      %cst_53 = arith.constant dense<0.000000e+00> : vector<8x32xf32>
      %105 = tpu.matmul %104, %76, %cst_53 {dimension_numbers = #tpu.dot_dimension_numbers<[1], [0], [0], [1], [0, 0, 1, 1], [], []>} : vector<8x8xbf16>, vector<8x32xbf16>, vector<8x32xf32> -> vector<8x32xf32>
      %106 = arith.addf %103, %105 : vector<8x32xf32>
      %c1_54 = arith.constant 1 : index
      %c0_55 = arith.constant 0 : index
      %c0_56 = arith.constant 0 : index
      %107 = vector.load %arg9[%c1_54, %c0_55, %c0_56] : memref<4x8x32xf32, #tpu.memory_space<vmem>>, vector<1x8x32xf32>
      %108 = vector.shape_cast %107 : vector<1x8x32xf32> to vector<8x32xf32>
      %109 = vector.shape_cast %106 : vector<8x32xf32> to vector<1x8x32xf32>
      tpu.vector_store %arg9[%c1_54, %c0_55, %c0_56], %109 {strides = array<i32>} : memref<4x8x32xf32, #tpu.memory_space<vmem>>, vector<1x8x32xf32>,
      %c1_57 = arith.constant 1 : index
      %c0_58 = arith.constant 0 : index
      %c0_59 = arith.constant 0 : index
      %110 = vector.load %arg7[%c1_57, %c0_58, %c0_59] : memref<4x8x1xf32, #tpu.memory_space<vmem>>, vector<1x8x1xf32>
      %111 = vector.shape_cast %110 : vector<1x8x1xf32> to vector<8x1xf32>
      %112 = vector.shape_cast %85 : vector<8x1xf32> to vector<1x8x1xf32>
      tpu.vector_store %arg7[%c1_57, %c0_58, %c0_59], %112 {strides = array<i32>} : memref<4x8x1xf32, #tpu.memory_space<vmem>>, vector<1x8x1xf32>,
      %113 = vector.extract_strided_slice %34 {offsets = [0, 64], sizes = [8, 32], strides = [1, 1]} : vector<8x128xbf16> to vector<8x32xbf16>
      %114 = vector.extract_strided_slice %29 {offsets = [0, 192], sizes = [8, 32], strides = [1, 1]} : vector<8x384xbf16> to vector<8x32xbf16>
      %115 = vector.extract_strided_slice %29 {offsets = [0, 320], sizes = [8, 32], strides = [1, 1]} : vector<8x384xbf16> to vector<8x32xbf16>
      %116 = tpu.transpose %114, [1, 0] : vector<8x32xbf16> -> vector<32x8xbf16>
      %cst_60 = arith.constant dense<0.000000e+00> : vector<8x8xf32>
      %117 = tpu.matmul %113, %116, %cst_60 {dimension_numbers = #tpu.dot_dimension_numbers<[1], [0], [0], [1], [0, 0, 1, 1], [], []>} : vector<8x32xbf16>, vector<32x8xbf16>, vector<8x8xf32> -> vector<8x8xf32>
      %cst_61 = arith.constant -1.000000e+30 : f32
      %118 = vector.broadcast %cst_61 : f32 to vector<8x8xf32>
      %119 = arith.select %25, %117, %118 : vector<8x8xi1>, vector<8x8xf32>
      %c2 = arith.constant 2 : index
      %c0_62 = arith.constant 0 : index
      %c0_63 = arith.constant 0 : index
      %120 = vector.load %arg7[%c2, %c0_62, %c0_63] : memref<4x8x1xf32, #tpu.memory_space<vmem>>, vector<1x8x1xf32>
      %121 = vector.shape_cast %120 : vector<1x8x1xf32> to vector<8x1xf32>
      %cst_64 = arith.constant dense<0xFF800000> : vector<8xf32>
      %122 = vector.multi_reduction <maximumf>, %119, %cst_64 [1] : vector<8x8xf32> to vector<8xf32>
      %123 = vector.shape_cast %122 : vector<8xf32> to vector<8x1xf32>
      %124 = arith.maximumf %121, %123 : vector<8x1xf32>
      %125 = arith.subf %121, %124 : vector<8x1xf32>
      %126 = math.exp %125 : vector<8x1xf32>
      %127 = vector.broadcast %124 : vector<8x1xf32> to vector<8x8xf32>
      %128 = arith.subf %119, %127 : vector<8x8xf32>
      %129 = math.exp %128 : vector<8x8xf32>
      %c2_65 = arith.constant 2 : index
      %c0_66 = arith.constant 0 : index
      %c0_67 = arith.constant 0 : index
      %130 = vector.load %arg8[%c2_65, %c0_66, %c0_67] : memref<4x8x1xf32, #tpu.memory_space<vmem>>, vector<1x8x1xf32>
      %131 = vector.shape_cast %130 : vector<1x8x1xf32> to vector<8x1xf32>
      %132 = arith.mulf %126, %131 : vector<8x1xf32>
      %cst_68 = arith.constant dense<0.000000e+00> : vector<8xf32>
      %133 = vector.multi_reduction <add>, %129, %cst_68 [1] : vector<8x8xf32> to vector<8xf32>
      %134 = vector.shape_cast %133 : vector<8xf32> to vector<8x1xf32>
      %135 = arith.addf %132, %134 : vector<8x1xf32>
      %c2_69 = arith.constant 2 : index
      %c0_70 = arith.constant 0 : index
      %c0_71 = arith.constant 0 : index
      %136 = vector.load %arg8[%c2_69, %c0_70, %c0_71] : memref<4x8x1xf32, #tpu.memory_space<vmem>>, vector<1x8x1xf32>
      %137 = vector.shape_cast %136 : vector<1x8x1xf32> to vector<8x1xf32>
      %138 = vector.shape_cast %135 : vector<8x1xf32> to vector<1x8x1xf32>
      tpu.vector_store %arg8[%c2_69, %c0_70, %c0_71], %138 {strides = array<i32>} : memref<4x8x1xf32, #tpu.memory_space<vmem>>, vector<1x8x1xf32>,
      %c2_72 = arith.constant 2 : index
      %c0_73 = arith.constant 0 : index
      %c0_74 = arith.constant 0 : index
      %139 = vector.load %arg9[%c2_72, %c0_73, %c0_74] : memref<4x8x32xf32, #tpu.memory_space<vmem>>, vector<1x8x32xf32>
      %140 = vector.shape_cast %139 : vector<1x8x32xf32> to vector<8x32xf32>
      %141 = vector.broadcast %126 : vector<8x1xf32> to vector<8x32xf32>
      %142 = arith.mulf %141, %140 : vector<8x32xf32>
      %143 = arith.truncf %129 : vector<8x8xf32> to vector<8x8xbf16>
      %cst_75 = arith.constant dense<0.000000e+00> : vector<8x32xf32>
      %144 = tpu.matmul %143, %115, %cst_75 {dimension_numbers = #tpu.dot_dimension_numbers<[1], [0], [0], [1], [0, 0, 1, 1], [], []>} : vector<8x8xbf16>, vector<8x32xbf16>, vector<8x32xf32> -> vector<8x32xf32>
      %145 = arith.addf %142, %144 : vector<8x32xf32>
      %c2_76 = arith.constant 2 : index
      %c0_77 = arith.constant 0 : index
      %c0_78 = arith.constant 0 : index
      %146 = vector.load %arg9[%c2_76, %c0_77, %c0_78] : memref<4x8x32xf32, #tpu.memory_space<vmem>>, vector<1x8x32xf32>
      %147 = vector.shape_cast %146 : vector<1x8x32xf32> to vector<8x32xf32>
      %148 = vector.shape_cast %145 : vector<8x32xf32> to vector<1x8x32xf32>
      tpu.vector_store %arg9[%c2_76, %c0_77, %c0_78], %148 {strides = array<i32>} : memref<4x8x32xf32, #tpu.memory_space<vmem>>, vector<1x8x32xf32>,
      %c2_79 = arith.constant 2 : index
      %c0_80 = arith.constant 0 : index
      %c0_81 = arith.constant 0 : index
      %149 = vector.load %arg7[%c2_79, %c0_80, %c0_81] : memref<4x8x1xf32, #tpu.memory_space<vmem>>, vector<1x8x1xf32>
      %150 = vector.shape_cast %149 : vector<1x8x1xf32> to vector<8x1xf32>
      %151 = vector.shape_cast %124 : vector<8x1xf32> to vector<1x8x1xf32>
      tpu.vector_store %arg7[%c2_79, %c0_80, %c0_81], %151 {strides = array<i32>} : memref<4x8x1xf32, #tpu.memory_space<vmem>>, vector<1x8x1xf32>,
      %152 = vector.extract_strided_slice %34 {offsets = [0, 96], sizes = [8, 32], strides = [1, 1]} : vector<8x128xbf16> to vector<8x32xbf16>
      %153 = vector.extract_strided_slice %29 {offsets = [0, 224], sizes = [8, 32], strides = [1, 1]} : vector<8x384xbf16> to vector<8x32xbf16>
      %154 = vector.extract_strided_slice %29 {offsets = [0, 352], sizes = [8, 32], strides = [1, 1]} : vector<8x384xbf16> to vector<8x32xbf16>
      %155 = tpu.transpose %153, [1, 0] : vector<8x32xbf16> -> vector<32x8xbf16>
      %cst_82 = arith.constant dense<0.000000e+00> : vector<8x8xf32>
      %156 = tpu.matmul %152, %155, %cst_82 {dimension_numbers = #tpu.dot_dimension_numbers<[1], [0], [0], [1], [0, 0, 1, 1], [], []>} : vector<8x32xbf16>, vector<32x8xbf16>, vector<8x8xf32> -> vector<8x8xf32>
      %cst_83 = arith.constant -1.000000e+30 : f32
      %157 = vector.broadcast %cst_83 : f32 to vector<8x8xf32>
      %158 = arith.select %25, %156, %157 : vector<8x8xi1>, vector<8x8xf32>
      %c3 = arith.constant 3 : index
      %c0_84 = arith.constant 0 : index
      %c0_85 = arith.constant 0 : index
      %159 = vector.load %arg7[%c3, %c0_84, %c0_85] : memref<4x8x1xf32, #tpu.memory_space<vmem>>, vector<1x8x1xf32>
      %160 = vector.shape_cast %159 : vector<1x8x1xf32> to vector<8x1xf32>
      %cst_86 = arith.constant dense<0xFF800000> : vector<8xf32>
      %161 = vector.multi_reduction <maximumf>, %158, %cst_86 [1] : vector<8x8xf32> to vector<8xf32>
      %162 = vector.shape_cast %161 : vector<8xf32> to vector<8x1xf32>
      %163 = arith.maximumf %160, %162 : vector<8x1xf32>
      %164 = arith.subf %160, %163 : vector<8x1xf32>
      %165 = math.exp %164 : vector<8x1xf32>
      %166 = vector.broadcast %163 : vector<8x1xf32> to vector<8x8xf32>
      %167 = arith.subf %158, %166 : vector<8x8xf32>
      %168 = math.exp %167 : vector<8x8xf32>
      %c3_87 = arith.constant 3 : index
      %c0_88 = arith.constant 0 : index
      %c0_89 = arith.constant 0 : index
      %169 = vector.load %arg8[%c3_87, %c0_88, %c0_89] : memref<4x8x1xf32, #tpu.memory_space<vmem>>, vector<1x8x1xf32>
      %170 = vector.shape_cast %169 : vector<1x8x1xf32> to vector<8x1xf32>
      %171 = arith.mulf %165, %170 : vector<8x1xf32>
      %cst_90 = arith.constant dense<0.000000e+00> : vector<8xf32>
      %172 = vector.multi_reduction <add>, %168, %cst_90 [1] : vector<8x8xf32> to vector<8xf32>
      %173 = vector.shape_cast %172 : vector<8xf32> to vector<8x1xf32>
      %174 = arith.addf %171, %173 : vector<8x1xf32>
      %c3_91 = arith.constant 3 : index
      %c0_92 = arith.constant 0 : index
      %c0_93 = arith.constant 0 : index
      %175 = vector.load %arg8[%c3_91, %c0_92, %c0_93] : memref<4x8x1xf32, #tpu.memory_space<vmem>>, vector<1x8x1xf32>
      %176 = vector.shape_cast %175 : vector<1x8x1xf32> to vector<8x1xf32>
      %177 = vector.shape_cast %174 : vector<8x1xf32> to vector<1x8x1xf32>
      tpu.vector_store %arg8[%c3_91, %c0_92, %c0_93], %177 {strides = array<i32>} : memref<4x8x1xf32, #tpu.memory_space<vmem>>, vector<1x8x1xf32>,
      %c3_94 = arith.constant 3 : index
      %c0_95 = arith.constant 0 : index
      %c0_96 = arith.constant 0 : index
      %178 = vector.load %arg9[%c3_94, %c0_95, %c0_96] : memref<4x8x32xf32, #tpu.memory_space<vmem>>, vector<1x8x32xf32>
      %179 = vector.shape_cast %178 : vector<1x8x32xf32> to vector<8x32xf32>
      %180 = vector.broadcast %165 : vector<8x1xf32> to vector<8x32xf32>
      %181 = arith.mulf %180, %179 : vector<8x32xf32>
      %182 = arith.truncf %168 : vector<8x8xf32> to vector<8x8xbf16>
      %cst_97 = arith.constant dense<0.000000e+00> : vector<8x32xf32>
      %183 = tpu.matmul %182, %154, %cst_97 {dimension_numbers = #tpu.dot_dimension_numbers<[1], [0], [0], [1], [0, 0, 1, 1], [], []>} : vector<8x8xbf16>, vector<8x32xbf16>, vector<8x32xf32> -> vector<8x32xf32>
      %184 = arith.addf %181, %183 : vector<8x32xf32>
      %c3_98 = arith.constant 3 : index
      %c0_99 = arith.constant 0 : index
      %c0_100 = arith.constant 0 : index
      %185 = vector.load %arg9[%c3_98, %c0_99, %c0_100] : memref<4x8x32xf32, #tpu.memory_space<vmem>>, vector<1x8x32xf32>
      %186 = vector.shape_cast %185 : vector<1x8x32xf32> to vector<8x32xf32>
      %187 = vector.shape_cast %184 : vector<8x32xf32> to vector<1x8x32xf32>
      tpu.vector_store %arg9[%c3_98, %c0_99, %c0_100], %187 {strides = array<i32>} : memref<4x8x32xf32, #tpu.memory_space<vmem>>, vector<1x8x32xf32>,
      %c3_101 = arith.constant 3 : index
      %c0_102 = arith.constant 0 : index
      %c0_103 = arith.constant 0 : index
      %188 = vector.load %arg7[%c3_101, %c0_102, %c0_103] : memref<4x8x1xf32, #tpu.memory_space<vmem>>, vector<1x8x1xf32>
      %189 = vector.shape_cast %188 : vector<1x8x1xf32> to vector<8x1xf32>
      %190 = vector.shape_cast %163 : vector<8x1xf32> to vector<1x8x1xf32>
      tpu.vector_store %arg7[%c3_101, %c0_102, %c0_103], %190 {strides = array<i32>} : memref<4x8x1xf32, #tpu.memory_space<vmem>>, vector<1x8x1xf32>,
    } else {
    }
    %c0_i32_4 = arith.constant 0 : i32
    %10 = arith.cmpi eq, %arg2, %c0_i32_4 : i32
    %11 = arith.extui %10 : i1 to i32
    %c0_i32_5 = arith.constant 0 : i32
    %12 = arith.cmpi ne, %11, %c0_i32_5 : i32
    scf.if %12 {
      %c0 = arith.constant 0 : index
      %c0_6 = arith.constant 0 : index
      %c0_7 = arith.constant 0 : index
      %13 = vector.load %arg8[%c0, %c0_6, %c0_7] : memref<4x8x1xf32, #tpu.memory_space<vmem>>, vector<1x8x1xf32>
      %14 = vector.shape_cast %13 : vector<1x8x1xf32> to vector<8x1xf32>
      %15 = tpu.reciprocal %14 {approx = true} : vector<8x1xf32> -> vector<8x1xf32>
      %c0_8 = arith.constant 0 : index
      %c0_9 = arith.constant 0 : index
      %c0_10 = arith.constant 0 : index
      %16 = vector.load %arg9[%c0_8, %c0_9, %c0_10] : memref<4x8x32xf32, #tpu.memory_space<vmem>>, vector<1x8x32xf32>
      %17 = vector.shape_cast %16 : vector<1x8x32xf32> to vector<8x32xf32>
      %18 = vector.broadcast %15 : vector<8x1xf32> to vector<8x32xf32>
      %19 = arith.mulf %17, %18 : vector<8x32xf32>
      %c1 = arith.constant 1 : index
      %c0_11 = arith.constant 0 : index
      %c0_12 = arith.constant 0 : index
      %20 = vector.load %arg8[%c1, %c0_11, %c0_12] : memref<4x8x1xf32, #tpu.memory_space<vmem>>, vector<1x8x1xf32>
      %21 = vector.shape_cast %20 : vector<1x8x1xf32> to vector<8x1xf32>
      %22 = tpu.reciprocal %21 {approx = true} : vector<8x1xf32> -> vector<8x1xf32>
      %c1_13 = arith.constant 1 : index
      %c0_14 = arith.constant 0 : index
      %c0_15 = arith.constant 0 : index
      %23 = vector.load %arg9[%c1_13, %c0_14, %c0_15] : memref<4x8x32xf32, #tpu.memory_space<vmem>>, vector<1x8x32xf32>
      %24 = vector.shape_cast %23 : vector<1x8x32xf32> to vector<8x32xf32>
      %25 = vector.broadcast %22 : vector<8x1xf32> to vector<8x32xf32>
      %26 = arith.mulf %24, %25 : vector<8x32xf32>
      %c2 = arith.constant 2 : index
      %c0_16 = arith.constant 0 : index
      %c0_17 = arith.constant 0 : index
      %27 = vector.load %arg8[%c2, %c0_16, %c0_17] : memref<4x8x1xf32, #tpu.memory_space<vmem>>, vector<1x8x1xf32>
      %28 = vector.shape_cast %27 : vector<1x8x1xf32> to vector<8x1xf32>
      %29 = tpu.reciprocal %28 {approx = true} : vector<8x1xf32> -> vector<8x1xf32>
      %c2_18 = arith.constant 2 : index
      %c0_19 = arith.constant 0 : index
      %c0_20 = arith.constant 0 : index
      %30 = vector.load %arg9[%c2_18, %c0_19, %c0_20] : memref<4x8x32xf32, #tpu.memory_space<vmem>>, vector<1x8x32xf32>
      %31 = vector.shape_cast %30 : vector<1x8x32xf32> to vector<8x32xf32>
      %32 = vector.broadcast %29 : vector<8x1xf32> to vector<8x32xf32>
      %33 = arith.mulf %31, %32 : vector<8x32xf32>
      %c3 = arith.constant 3 : index
      %c0_21 = arith.constant 0 : index
      %c0_22 = arith.constant 0 : index
      %34 = vector.load %arg8[%c3, %c0_21, %c0_22] : memref<4x8x1xf32, #tpu.memory_space<vmem>>, vector<1x8x1xf32>
      %35 = vector.shape_cast %34 : vector<1x8x1xf32> to vector<8x1xf32>
      %36 = tpu.reciprocal %35 {approx = true} : vector<8x1xf32> -> vector<8x1xf32>
      %c3_23 = arith.constant 3 : index
      %c0_24 = arith.constant 0 : index
      %c0_25 = arith.constant 0 : index
      %37 = vector.load %arg9[%c3_23, %c0_24, %c0_25] : memref<4x8x32xf32, #tpu.memory_space<vmem>>, vector<1x8x32xf32>
      %38 = vector.shape_cast %37 : vector<1x8x32xf32> to vector<8x32xf32>
      %39 = vector.broadcast %36 : vector<8x1xf32> to vector<8x32xf32>
      %40 = arith.mulf %38, %39 : vector<8x32xf32>
      %41 = tpu.concatenate %19, %26, %33, %40 in 1 : vector<8x32xf32>, vector<8x32xf32>, vector<8x32xf32>, vector<8x32xf32> -> vector<8x128xf32>
      %42 = vector.shape_cast %41 : vector<8x128xf32> to vector<1x8x128xf32>
      %43 = arith.truncf %42 : vector<1x8x128xf32> to vector<1x8x128xbf16>
      %c0_26 = arith.constant 0 : index
      %c0_27 = arith.constant 0 : index
      %c0_28 = arith.constant 0 : index
      %44 = vector.load %arg6[%c0_26, %c0_27, %c0_28] : memref<1x8x128xbf16, #tpu.memory_space<vmem>>, vector<1x8x128xbf16>
      tpu.vector_store %arg6[%c0_26, %c0_27, %c0_28], %43 {strides = array<i32>} : memref<1x8x128xbf16, #tpu.memory_space<vmem>>, vector<1x8x128xbf16>,
    } else {
    }
    return
  }
  func.func @transform_0(%arg0: i32, %arg1: i32, %arg2: i32) -> (i32, i32, i32) {
    %c0_i32 = arith.constant 0 : i32
    %c0_i32_0 = arith.constant 0 : i32
    return %arg0, %arg1, %c0_i32 : i32, i32, i32
  }
  func.func @transform_1(%arg0: i32, %arg1: i32, %arg2: i32) -> (i32, i32, i32) {
    %c0_i32 = arith.constant 0 : i32
    %c0_i32_0 = arith.constant 0 : i32
    return %arg0, %arg2, %c0_i32 : i32, i32, i32
  }
  func.func @transform_2(%arg0: i32, %arg1: i32, %arg2: i32) -> (i32, i32, i32) {
    %c0_i32 = arith.constant 0 : i32
    %c0_i32_0 = arith.constant 0 : i32
    return %arg0, %c0_i32, %arg2 : i32, i32, i32
  }
  func.func @transform_3(%arg0: i32, %arg1: i32, %arg2: i32) -> (i32, i32, i32) {
    %c0_i32 = arith.constant 0 : i32
    %c0_i32_0 = arith.constant 0 : i32
    return %arg0, %arg1, %c0_i32 : i32, i32, i32
  }
}

module attributes {stable_mosaic.version = 11 : i64} {
  func.func @_matmul_res_kernel(%arg0: i32, %arg1: i32, %arg2: i32, %arg3: memref<16x256xbf16, #tpu.memory_space<vmem>>, %arg4: memref<256x128xbf16, #tpu.memory_space<vmem>>, %arg5: memref<1x128xf32, #tpu.memory_space<vmem>>, %arg6: memref<16x128xf32, #tpu.memory_space<vmem>>, %arg7: memref<16x128xf32, #tpu.memory_space<vmem>>, %arg8: memref<16x128xf32, #tpu.memory_space<vmem>>) attributes {dimension_semantics = [#tpu.dimension_semantics<parallel>, #tpu.dimension_semantics<parallel>, #tpu.dimension_semantics<arbitrary>], iteration_bounds = array<i64: 1, 1, 1>, scalar_prefetch = 0 : i64, scratch_operands = 1 : i64, tpu.core_type = #tpu.core_type<tc>, window_params = [{transform_indices = @transform_0, window_bounds = array<i64: 16, 256>}, {transform_indices = @transform_1, window_bounds = array<i64: 256, 128>}, {transform_indices = @transform_2, window_bounds = array<i64: 1, 128>}, {transform_indices = @transform_3, window_bounds = array<i64: 16, 128>}, {transform_indices = @transform_4, window_bounds = array<i64: 16, 128>}]} {
    %c0_i32 = arith.constant 0 : i32
    %0 = arith.cmpi eq, %arg2, %c0_i32 : i32
    %1 = arith.extui %0 : i1 to i32
    %c0_i32_0 = arith.constant 0 : i32
    %2 = arith.cmpi ne, %1, %c0_i32_0 : i32
    scf.if %2 {
      %cst_10 = arith.constant 0.000000e+00 : f32
      %12 = vector.broadcast %cst_10 : f32 to vector<16x128xf32>
      %c0_11 = arith.constant 0 : index
      %c0_12 = arith.constant 0 : index
      %13 = vector.load %arg8[%c0_11, %c0_12] : memref<16x128xf32, #tpu.memory_space<vmem>>, vector<16x128xf32>
      tpu.vector_store %arg8[%c0_11, %c0_12], %12 {strides = array<i32>} : memref<16x128xf32, #tpu.memory_space<vmem>>, vector<16x128xf32>,
    } else {
    }
    %c0 = arith.constant 0 : index
    %c0_1 = arith.constant 0 : index
    %3 = vector.load %arg8[%c0, %c0_1] : memref<16x128xf32, #tpu.memory_space<vmem>>, vector<16x128xf32>
    %c0_2 = arith.constant 0 : index
    %c0_3 = arith.constant 0 : index
    %4 = vector.load %arg3[%c0_2, %c0_3] : memref<16x256xbf16, #tpu.memory_space<vmem>>, vector<16x256xbf16>
    %c0_4 = arith.constant 0 : index
    %c0_5 = arith.constant 0 : index
    %5 = vector.load %arg4[%c0_4, %c0_5] : memref<256x128xbf16, #tpu.memory_space<vmem>>, vector<256x128xbf16>
    %cst = arith.constant dense<0.000000e+00> : vector<16x128xf32>
    %6 = tpu.matmul %4, %5, %cst {dimension_numbers = #tpu.dot_dimension_numbers<[1], [0], [0], [1], [0, 0, 1, 1], [], []>} : vector<16x256xbf16>, vector<256x128xbf16>, vector<16x128xf32> -> vector<16x128xf32>
    %7 = arith.addf %3, %6 : vector<16x128xf32>
    %c0_6 = arith.constant 0 : index
    %c0_7 = arith.constant 0 : index
    %8 = vector.load %arg8[%c0_6, %c0_7] : memref<16x128xf32, #tpu.memory_space<vmem>>, vector<16x128xf32>
    tpu.vector_store %arg8[%c0_6, %c0_7], %7 {strides = array<i32>} : memref<16x128xf32, #tpu.memory_space<vmem>>, vector<16x128xf32>,
    %c0_i32_8 = arith.constant 0 : i32
    %9 = arith.cmpi eq, %arg2, %c0_i32_8 : i32
    %10 = arith.extui %9 : i1 to i32
    %c0_i32_9 = arith.constant 0 : i32
    %11 = arith.cmpi ne, %10, %c0_i32_9 : i32
    scf.if %11 {
      %c0_10 = arith.constant 0 : index
      %c0_11 = arith.constant 0 : index
      %12 = vector.load %arg8[%c0_10, %c0_11] : memref<16x128xf32, #tpu.memory_space<vmem>>, vector<16x128xf32>
      %c0_12 = arith.constant 0 : index
      %c0_13 = arith.constant 0 : index
      %13 = vector.load %arg5[%c0_12, %c0_13] : memref<1x128xf32, #tpu.memory_space<vmem>>, vector<1x128xf32>
      %14 = vector.broadcast %13 : vector<1x128xf32> to vector<16x128xf32>
      %15 = arith.addf %12, %14 : vector<16x128xf32>
      %c0_14 = arith.constant 0 : index
      %c0_15 = arith.constant 0 : index
      %16 = vector.load %arg6[%c0_14, %c0_15] : memref<16x128xf32, #tpu.memory_space<vmem>>, vector<16x128xf32>
      %17 = arith.addf %15, %16 : vector<16x128xf32>
      %c0_16 = arith.constant 0 : index
      %c0_17 = arith.constant 0 : index
      %18 = vector.load %arg7[%c0_16, %c0_17] : memref<16x128xf32, #tpu.memory_space<vmem>>, vector<16x128xf32>
      tpu.vector_store %arg7[%c0_16, %c0_17], %17 {strides = array<i32>} : memref<16x128xf32, #tpu.memory_space<vmem>>, vector<16x128xf32>,
    } else {
    }
    return
  }
  func.func @transform_0(%arg0: i32, %arg1: i32, %arg2: i32) -> (i32, i32) {
    %c0_i32 = arith.constant 0 : i32
    return %arg0, %arg2 : i32, i32
  }
  func.func @transform_1(%arg0: i32, %arg1: i32, %arg2: i32) -> (i32, i32) {
    %c0_i32 = arith.constant 0 : i32
    return %arg2, %arg1 : i32, i32
  }
  func.func @transform_2(%arg0: i32, %arg1: i32, %arg2: i32) -> (i32, i32) {
    %c0_i32 = arith.constant 0 : i32
    %c0_i32_0 = arith.constant 0 : i32
    return %c0_i32, %arg1 : i32, i32
  }
  func.func @transform_3(%arg0: i32, %arg1: i32, %arg2: i32) -> (i32, i32) {
    %c0_i32 = arith.constant 0 : i32
    return %arg0, %arg1 : i32, i32
  }
  func.func @transform_4(%arg0: i32, %arg1: i32, %arg2: i32) -> (i32, i32) {
    %c0_i32 = arith.constant 0 : i32
    return %arg0, %arg1 : i32, i32
  }
}

module attributes {stable_mosaic.version = 11 : i64} {
  func.func @_ln_matmul_kernel(%arg0: i32, %arg1: i32, %arg2: memref<16x128xf32, #tpu.memory_space<vmem>>, %arg3: memref<1x128xf32, #tpu.memory_space<vmem>>, %arg4: memref<1x128xf32, #tpu.memory_space<vmem>>, %arg5: memref<128x256xbf16, #tpu.memory_space<vmem>>, %arg6: memref<1x256xf32, #tpu.memory_space<vmem>>, %arg7: memref<16x256xf32, #tpu.memory_space<vmem>>) attributes {dimension_semantics = [#tpu.dimension_semantics<parallel>, #tpu.dimension_semantics<parallel>], iteration_bounds = array<i64: 1, 1>, scalar_prefetch = 0 : i64, scratch_operands = 0 : i64, tpu.core_type = #tpu.core_type<tc>, window_params = [{transform_indices = @transform_0, window_bounds = array<i64: 16, 128>}, {pipeline_mode = #tpu.pipeline_mode<synchronous>, transform_indices = @transform_1, window_bounds = array<i64: 1, 128>}, {pipeline_mode = #tpu.pipeline_mode<synchronous>, transform_indices = @transform_2, window_bounds = array<i64: 1, 128>}, {transform_indices = @transform_3, window_bounds = array<i64: 128, 256>}, {transform_indices = @transform_4, window_bounds = array<i64: 1, 256>}, {transform_indices = @transform_5, window_bounds = array<i64: 16, 256>}]} {
    %c0 = arith.constant 0 : index
    %c0_0 = arith.constant 0 : index
    %0 = vector.load %arg2[%c0, %c0_0] : memref<16x128xf32, #tpu.memory_space<vmem>>, vector<16x128xf32>
    %cst = arith.constant dense<0.000000e+00> : vector<16xf32>
    %1 = vector.multi_reduction <add>, %0, %cst [1] : vector<16x128xf32> to vector<16xf32>
    %2 = vector.shape_cast %1 : vector<16xf32> to vector<16x1xf32>
    %cst_1 = arith.constant 1.280000e+02 : f32
    %3 = vector.broadcast %cst_1 : f32 to vector<16x1xf32>
    %4 = arith.divf %2, %3 : vector<16x1xf32>
    %5 = vector.broadcast %4 : vector<16x1xf32> to vector<16x128xf32>
    %6 = arith.subf %0, %5 : vector<16x128xf32>
    %7 = arith.mulf %6, %6 : vector<16x128xf32>
    %cst_2 = arith.constant dense<0.000000e+00> : vector<16xf32>
    %8 = vector.multi_reduction <add>, %7, %cst_2 [1] : vector<16x128xf32> to vector<16xf32>
    %9 = vector.shape_cast %8 : vector<16xf32> to vector<16x1xf32>
    %cst_3 = arith.constant 1.280000e+02 : f32
    %10 = vector.broadcast %cst_3 : f32 to vector<16x1xf32>
    %11 = arith.divf %9, %10 : vector<16x1xf32>
    %12 = vector.broadcast %4 : vector<16x1xf32> to vector<16x128xf32>
    %13 = arith.subf %0, %12 : vector<16x128xf32>
    %cst_4 = arith.constant 9.99999974E-6 : f32
    %14 = vector.broadcast %cst_4 : f32 to vector<16x1xf32>
    %15 = arith.addf %11, %14 : vector<16x1xf32>
    %16 = math.rsqrt %15 : vector<16x1xf32>
    %17 = vector.broadcast %16 : vector<16x1xf32> to vector<16x128xf32>
    %18 = arith.mulf %13, %17 : vector<16x128xf32>
    %c0_5 = arith.constant 0 : index
    %c0_6 = arith.constant 0 : index
    %19 = vector.load %arg3[%c0_5, %c0_6] : memref<1x128xf32, #tpu.memory_space<vmem>>, vector<1x128xf32>
    %20 = vector.broadcast %19 : vector<1x128xf32> to vector<16x128xf32>
    %21 = arith.mulf %18, %20 : vector<16x128xf32>
    %c0_7 = arith.constant 0 : index
    %c0_8 = arith.constant 0 : index
    %22 = vector.load %arg4[%c0_7, %c0_8] : memref<1x128xf32, #tpu.memory_space<vmem>>, vector<1x128xf32>
    %23 = vector.broadcast %22 : vector<1x128xf32> to vector<16x128xf32>
    %24 = arith.addf %21, %23 : vector<16x128xf32>
    %25 = arith.truncf %24 : vector<16x128xf32> to vector<16x128xbf16>
    %c0_9 = arith.constant 0 : index
    %c0_10 = arith.constant 0 : index
    %26 = vector.load %arg5[%c0_9, %c0_10] : memref<128x256xbf16, #tpu.memory_space<vmem>>, vector<128x256xbf16>
    %cst_11 = arith.constant dense<0.000000e+00> : vector<16x256xf32>
    %27 = tpu.matmul %25, %26, %cst_11 {dimension_numbers = #tpu.dot_dimension_numbers<[1], [0], [0], [1], [0, 0, 1, 1], [], []>} : vector<16x128xbf16>, vector<128x256xbf16>, vector<16x256xf32> -> vector<16x256xf32>
    %c0_12 = arith.constant 0 : index
    %c0_13 = arith.constant 0 : index
    %28 = vector.load %arg6[%c0_12, %c0_13] : memref<1x256xf32, #tpu.memory_space<vmem>>, vector<1x256xf32>
    %29 = vector.broadcast %28 : vector<1x256xf32> to vector<16x256xf32>
    %30 = arith.addf %27, %29 : vector<16x256xf32>
    %c0_14 = arith.constant 0 : index
    %c0_15 = arith.constant 0 : index
    %31 = vector.load %arg7[%c0_14, %c0_15] : memref<16x256xf32, #tpu.memory_space<vmem>>, vector<16x256xf32>
    tpu.vector_store %arg7[%c0_14, %c0_15], %30 {strides = array<i32>} : memref<16x256xf32, #tpu.memory_space<vmem>>, vector<16x256xf32>,
    return
  }
  func.func @transform_0(%arg0: i32, %arg1: i32) -> (i32, i32) {
    %c0_i32 = arith.constant 0 : i32
    %c0_i32_0 = arith.constant 0 : i32
    return %arg0, %c0_i32 : i32, i32
  }
  func.func @transform_1(%arg0: i32, %arg1: i32) -> (i32, i32) {
    %c0_i32 = arith.constant 0 : i32
    %c0_i32_0 = arith.constant 0 : i32
    %c0_i32_1 = arith.constant 0 : i32
    return %c0_i32, %c0_i32_0 : i32, i32
  }
  func.func @transform_2(%arg0: i32, %arg1: i32) -> (i32, i32) {
    %c0_i32 = arith.constant 0 : i32
    %c0_i32_0 = arith.constant 0 : i32
    %c0_i32_1 = arith.constant 0 : i32
    return %c0_i32, %c0_i32_0 : i32, i32
  }
  func.func @transform_3(%arg0: i32, %arg1: i32) -> (i32, i32) {
    %c0_i32 = arith.constant 0 : i32
    %c0_i32_0 = arith.constant 0 : i32
    return %c0_i32, %arg1 : i32, i32
  }
  func.func @transform_4(%arg0: i32, %arg1: i32) -> (i32, i32) {
    %c0_i32 = arith.constant 0 : i32
    %c0_i32_0 = arith.constant 0 : i32
    return %c0_i32, %arg1 : i32, i32
  }
  func.func @transform_5(%arg0: i32, %arg1: i32) -> (i32, i32) {
    %c0_i32 = arith.constant 0 : i32
    return %arg0, %arg1 : i32, i32
  }
}

</mosaic_0001>

<llo_original>
// kernel: language_model_forward.13
$region0: #{language_model_forward.13}
  #allocation0 [shape = 'u32[]', space=smem, size = 0x4, offset = 0x4, fixed_abs, tag = 'smem constant byte address 0x4 - core index']
  #allocation1 [shape = 'u32[144,128]{1,0:T(1,128)}', space=vmem, size = 0x12000, scoped, tag = 'internal scratch']
  #allocation2 [shape = 'f32[16,128]{1,0:T(8,128)}', space=vmem, size = 0x2000, scoped, tag = 'scratch operand']
  %s0 = inlined_call_operand.vmem [shape: bf16[16,128], index: 0, kind: input, shape index: {}]
  %s1 = inlined_call_operand.vmem [shape: bf16[128,128], index: 1, kind: input, shape index: {}]
  %s2 = inlined_call_operand.vmem [shape: f32[1,128], index: 2, kind: input, shape index: {}]
  %s3 = inlined_call_operand.vmem [shape: f32[16,128], index: 3, kind: input, shape index: {}]
  %s4 = inlined_call_operand.vmem [shape: f32[16,128], index: 4, kind: output, shape index: {}]
  %s5 = sld [smem:[#allocation0]]
  $region34: #{language_model_forward.13} parent=0
    _
  %s7 = ssub.s32 1, %s5
  %s8 = scalar_select 0, %s7, %s5
  // Predicated region
  $region2: #{language_model_forward.13} parent=0 // pred_check
    _
  $region3: #{language_model_forward.13} parent=0 // pred_check_branch
    %10 = sbr.rel (0) target = $region5
  $region4: #{language_model_forward.13} parent=0 // pred_region
    _
  $region5: #{language_model_forward.13} parent=0 // pred_fallthru
    _
  // Predicated region
  $region6: #{language_model_forward.13} parent=0 // pred_check
    _
  $region7: #{language_model_forward.13} parent=0 // pred_check_branch
    %12 = sbr.rel (0) target = $region9
  $region8: #{language_model_forward.13} parent=0 // pred_region
    _
  $region9: #{language_model_forward.13} parent=0 // pred_fallthru
    _
  // Predicated region
  $region10: #{language_model_forward.13} parent=0 // pred_check
    _
  $region11: #{language_model_forward.13} parent=0 // pred_check_branch
    %14 = sbr.rel (0) target = $region13
  $region12: #{language_model_forward.13} parent=0 // pred_region
    _
  $region13: #{language_model_forward.13} parent=0 // pred_fallthru
    _
  // Predicated region
  $region14: #{language_model_forward.13} parent=0 // pred_check
    _
  $region15: #{language_model_forward.13} parent=0 // pred_check_branch
    %16 = sbr.rel (0) target = $region17
  $region16: #{language_model_forward.13} parent=0 // pred_region
    _
  $region17: #{language_model_forward.13} parent=0 // pred_fallthru
    _
  %p18 = scmp.eq.s32.totalorder 0, 0
  // Predicated region
  $region18: #{language_model_forward.13} parent=0 // pred_check
    %p19 = pneg %p18
  $region19: #{language_model_forward.13} parent=0 // pred_check_branch
    %21 = sbr.rel (%p19) target = $region21
  $region20: #{language_model_forward.13} parent=0 // pred_region
    %22 = vst [vmem:[#allocation2] sm:$0xff] 0.0
    %23 = vst [vmem:[#allocation2 + $0x8] sm:$0xff] 0.0
  $region21: #{language_model_forward.13} parent=0 // pred_fallthru
    _
  %v24 = vld [vmem:[#allocation2] sm:$0xff]
  %v25 = vld [vmem:[#allocation2 + $0x8] sm:$0xff]
  %v26 = vld [vmem:[%s0] sm:$0xf]
  %v27 = vld [vmem:[%s0 + $0x4] sm:$0xf]
  %v28 = vld [vmem:[%s1] sm:$0xf]
  %v29 = vld [vmem:[%s1 + $0x4] sm:$0xf]
  %v30 = vld [vmem:[%s1 + $0x8] sm:$0xf]
  %v31 = vld [vmem:[%s1 + $0xc] sm:$0xf]
  %v32 = vld [vmem:[%s1 + $0x10] sm:$0xf]
  %v33 = vld [vmem:[%s1 + $0x14] sm:$0xf]
  %v34 = vld [vmem:[%s1 + $0x18] sm:$0xf]
  %v35 = vld [vmem:[%s1 + $0x1c] sm:$0xf]
  %v36 = vld [vmem:[%s1 + $0x20] sm:$0xf]
  %v37 = vld [vmem:[%s1 + $0x24] sm:$0xf]
  %v38 = vld [vmem:[%s1 + $0x28] sm:$0xf]
  %v39 = vld [vmem:[%s1 + $0x2c] sm:$0xf]
  %v40 = vld [vmem:[%s1 + $0x30] sm:$0xf]
  %v41 = vld [vmem:[%s1 + $0x34] sm:$0xf]
  %v42 = vld [vmem:[%s1 + $0x38] sm:$0xf]
  %v43 = vld [vmem:[%s1 + $0x3c] sm:$0xf]
  %v46 = vunpack.c.l.b16 %v26
  %v47 = vunpack.c.l.b16 %v27
  %v48 = vpack.c.b16 %v47, %v46
  %v66 = vunpack.c.l.b16 %v28
  %v67 = vunpack.c.l.b16 %v29
  %v68 = vunpack.c.l.b16 %v30
  %v69 = vunpack.c.l.b16 %v31
  %v70 = vunpack.c.l.b16 %v32
  %v71 = vunpack.c.l.b16 %v33
  %v72 = vunpack.c.l.b16 %v34
  %v73 = vunpack.c.l.b16 %v35
  %v74 = vunpack.c.l.b16 %v36
  %v75 = vunpack.c.l.b16 %v37
  %v76 = vunpack.c.l.b16 %v38
  %v77 = vunpack.c.l.b16 %v39
  %v78 = vunpack.c.l.b16 %v40
  %v79 = vunpack.c.l.b16 %v41
  %v80 = vunpack.c.l.b16 %v42
  %v81 = vunpack.c.l.b16 %v43
  %v82 = vpack.c.b16 %v67, %v66
  %v83 = vpack.c.b16 %v69, %v68
  %v84 = vpack.c.b16 %v71, %v70
  %v85 = vpack.c.b16 %v73, %v72
  %v86 = vpack.c.b16 %v75, %v74
  %v87 = vpack.c.b16 %v77, %v76
  %v88 = vpack.c.b16 %v79, %v78
  %v89 = vpack.c.b16 %v81, %v80
  %98 = vmatprep.subr.bf16.mxu0 0
  %99 = vmatpush1.bf16.msra.mxu0 %v82
  %100 = vmatprep.subr.bf16.mxu0 0
  %101 = vmatpush1.bf16.msra.mxu0 %v83
  %102 = vmatprep.subr.bf16.mxu0 0
  %103 = vmatpush1.bf16.msra.mxu0 %v84
  %104 = vmatprep.subr.bf16.mxu0 0
  %105 = vmatpush1.bf16.msra.mxu0 %v85
  %106 = vmatprep.subr.bf16.mxu0 0
  %107 = vmatpush1.bf16.msra.mxu0 %v86
  %108 = vmatprep.subr.bf16.mxu0 0
  %109 = vmatpush1.bf16.msra.mxu0 %v87
  %110 = vmatprep.subr.bf16.mxu0 0
  %111 = vmatpush1.bf16.msra.mxu0 %v88
  %112 = vmatprep.subr.bf16.mxu0 0
  %113 = vmatpush1.bf16.msra.mxu0 %v89
  %114 = vmatprep.subr.bf16.mxu0 0
  %115 = vmatpush1.bf16.msra.mxu0 0
  %116 = vmatprep.subr.bf16.mxu0 0
  %117 = vmatpush1.bf16.msra.mxu0 0
  %118 = vmatprep.subr.bf16.mxu0 0
  %119 = vmatpush1.bf16.msra.mxu0 0
  %120 = vmatprep.subr.bf16.mxu0 0
  %121 = vmatpush1.bf16.msra.mxu0 0
  %122 = vmatprep.subr.bf16.mxu0 0
  %123 = vmatpush1.bf16.msra.mxu0 0
  %124 = vmatprep.subr.bf16.mxu0 0
  %125 = vmatpush1.bf16.msra.mxu0 0
  %126 = vmatprep.subr.bf16.mxu0 0
  %127 = vmatpush1.bf16.msra.mxu0 0
  %128 = vmatprep.subr.bf16.mxu0 0
  %129 = vmatpush1.bf16.msra.mxu0 0
  %130 = vmatprep.mubr.bf16.mxu0 0
  %131 = vmatmul.mubr.bf16.gmra.mrb[0].mxu0 %v48
  %v132 = vpop.f32.mrb[0].mxu0
  %v133 = vadd.f32 0.0, %v132
  %v134 = vpop.f32.mrb[0].mxu0
  %v135 = vpop.f32.mrb[0].mxu0
  %v136 = vadd.f32 0.0, %v135
  %v137 = vpop.f32.mrb[0].mxu0
  %138 = vdwg.mxu0
  %v139 = vadd.f32 %v24, %v133
  %v140 = vadd.f32 %v25, %v136
  %141 = vst [vmem:[#allocation2] sm:$0xff] %v139
  %142 = vst [vmem:[#allocation2 + $0x8] sm:$0xff] %v140
  // Predicated region
  $region22: #{language_model_forward.13} parent=0 // pred_check
    %p143 = pneg %p18
  $region23: #{language_model_forward.13} parent=0 // pred_check_branch
    %145 = sbr.rel (%p143) target = $region25
  $region24: #{language_model_forward.13} parent=0 // pred_region
    %v146 = vld [vmem:[#allocation2] sm:$0xff]
    %v147 = vld [vmem:[#allocation2 + $0x8] sm:$0xff]
    %v148 = vld [vmem:[%s2] sm:$0x1]
    %v150 = vlaneseq
    %v151 = vshrl.u32 %v150, 7
    %v152 = vsub.s32 0, %v151
    %v153 = vrot.slane %v148, %v152
    %v155 = vadd.f32 %v146, %v153
    %v156 = vadd.f32 %v147, %v153
    %v157 = vld [vmem:[%s3] sm:$0xff]
    %v158 = vld [vmem:[%s3 + $0x8] sm:$0xff]
    %v159 = vadd.f32 %v155, %v157
    %v160 = vadd.f32 %v156, %v158
    %161 = vst [vmem:[%s4] sm:$0xff] %v159
    %162 = vst [vmem:[%s4 + $0x8] sm:$0xff] %v160
  $region25: #{language_model_forward.13} parent=0 // pred_fallthru
    _
  // Predicated region
  $region26: #{language_model_forward.13} parent=0 // pred_check
    _
  $region27: #{language_model_forward.13} parent=0 // pred_check_branch
    %164 = sbr.rel (0) target = $region29
  $region28: #{language_model_forward.13} parent=0 // pred_region
    _
  $region29: #{language_model_forward.13} parent=0 // pred_fallthru
    _
  // Predicated region
  $region30: #{language_model_forward.13} parent=0 // pred_check
    _
  $region31: #{language_model_forward.13} parent=0 // pred_check_branch
    %166 = sbr.rel (0) target = $region33
  $region32: #{language_model_forward.13} parent=0 // pred_region
    _
  $region33: #{language_model_forward.13} parent=0 // pred_fallthru
    _

// kernel: language_model_forward.14
$region0: #{language_model_forward.14}
  #allocation0 [shape = 'u32[]', space=smem, size = 0x4, offset = 0x4, fixed_abs, tag = 'smem constant byte address 0x4 - core index']
  #allocation1 [shape = 'u32[144,128]{1,0:T(1,128)}', space=vmem, size = 0x12000, scoped, tag = 'internal scratch']
  %s0 = inlined_call_operand.vmem [shape: f32[16,128], index: 0, kind: input, shape index: {}]
  %s1 = inlined_call_operand.vmem [shape: f32[1,128], index: 1, kind: input, shape index: {}]
  %s2 = inlined_call_operand.vmem [shape: f32[1,128], index: 2, kind: input, shape index: {}]
  %s3 = inlined_call_operand.vmem [shape: bf16[128,256], index: 3, kind: input, shape index: {}]
  %s4 = inlined_call_operand.vmem [shape: f32[1,256], index: 4, kind: input, shape index: {}]
  %s5 = inlined_call_operand.vmem [shape: bf16[16,256], index: 5, kind: output, shape index: {}]
  %s6 = sld [smem:[#allocation0]]
  $region30: #{language_model_forward.14} parent=0
    _
  %s8 = ssub.s32 1, %s6
  %s9 = scalar_select 0, %s8, %s6
  // Predicated region
  $region2: #{language_model_forward.14} parent=0 // pred_check
    _
  $region3: #{language_model_forward.14} parent=0 // pred_check_branch
    %11 = sbr.rel (0) target = $region5
  $region4: #{language_model_forward.14} parent=0 // pred_region
    _
  $region5: #{language_model_forward.14} parent=0 // pred_fallthru
    _
  // Predicated region
  $region6: #{language_model_forward.14} parent=0 // pred_check
    _
  $region7: #{language_model_forward.14} parent=0 // pred_check_branch
    %13 = sbr.rel (0) target = $region9
  $region8: #{language_model_forward.14} parent=0 // pred_region
    _
  $region9: #{language_model_forward.14} parent=0 // pred_fallthru
    _
  // Predicated region
  $region10: #{language_model_forward.14} parent=0 // pred_check
    _
  $region11: #{language_model_forward.14} parent=0 // pred_check_branch
    %15 = sbr.rel (0) target = $region13
  $region12: #{language_model_forward.14} parent=0 // pred_region
    _
  $region13: #{language_model_forward.14} parent=0 // pred_fallthru
    _
  // Predicated region
  $region14: #{language_model_forward.14} parent=0 // pred_check
    _
  $region15: #{language_model_forward.14} parent=0 // pred_check_branch
    %17 = sbr.rel (0) target = $region17
  $region16: #{language_model_forward.14} parent=0 // pred_region
    _
  $region17: #{language_model_forward.14} parent=0 // pred_fallthru
    _
  // Predicated region
  $region18: #{language_model_forward.14} parent=0 // pred_check
    _
  $region19: #{language_model_forward.14} parent=0 // pred_check_branch
    %19 = sbr.rel (0) target = $region21
  $region20: #{language_model_forward.14} parent=0 // pred_region
    _
  $region21: #{language_model_forward.14} parent=0 // pred_fallthru
    _
  %v21 = vld [vmem:[%s0] sm:$0xff]
  %v22 = vld [vmem:[%s0 + $0x8] sm:$0xff]
  %23 = vadd.xlane.f32.xlu0 %v21
  %v24 = vpop.xlane.xlu0 %23
  %25 = vadd.xlane.f32.xlu0 %v22
  %v26 = vpop.xlane.xlu0 %25
  %v27 = vrcp.pop 128.0
  %v28 = vmul.f32 %v24, %v27
  %v29 = vmul.f32 %v26, %v27
  %v30 = vsub.f32 %v21, %v28
  %v31 = vsub.f32 %v22, %v29
  %v32 = vmul.f32 %v30, %v30
  %v33 = vmul.f32 %v31, %v31
  %34 = vadd.xlane.f32.xlu0 %v32
  %v35 = vpop.xlane.xlu0 %34
  %36 = vadd.xlane.f32.xlu0 %v33
  %v37 = vpop.xlane.xlu0 %36
  %v38 = vmul.f32 %v35, %v27
  %v39 = vmul.f32 %v37, %v27
  %v40 = vadd.f32 %v38, 1e-05
  %v41 = vadd.f32 %v39, 1e-05
  %v42 = vrsqrt.pop %v40
  %v43 = vrsqrt.pop %v41
  %v44 = vmul.f32 %v30, %v42
  %v45 = vmul.f32 %v31, %v43
  %v46 = vld [vmem:[%s1] sm:$0x1]
  %v48 = vlaneseq
  %v49 = vshrl.u32 %v48, 7
  %v50 = vsub.s32 0, %v49
  %v51 = vrot.slane %v46, %v50
  %v53 = vmul.f32 %v44, %v51
  %v54 = vmul.f32 %v45, %v51
  %v55 = vld [vmem:[%s2] sm:$0x1]
  %v57 = vlaneseq
  %v58 = vshrl.u32 %v57, 7
  %v59 = vsub.s32 0, %v58
  %v60 = vrot.slane %v55, %v59
  %v62 = vadd.f32 %v53, %v60
  %v63 = vadd.f32 %v54, %v60
  %v64 = vpack.c.bf16 %v63, %v62
  %v65 = vld [vmem:[%s3] sm:$0xff]
  %v66 = vld [vmem:[%s3 + $0x8] sm:$0xff]
  %v67 = vld [vmem:[%s3 + $0x10] sm:$0xff]
  %v68 = vld [vmem:[%s3 + $0x18] sm:$0xff]
  %v69 = vld [vmem:[%s3 + $0x20] sm:$0xff]
  %v70 = vld [vmem:[%s3 + $0x28] sm:$0xff]
  %v71 = vld [vmem:[%s3 + $0x30] sm:$0xff]
  %v72 = vld [vmem:[%s3 + $0x38] sm:$0xff]
  %v73 = vld [vmem:[%s3 + $0x40] sm:$0xff]
  %v74 = vld [vmem:[%s3 + $0x48] sm:$0xff]
  %v75 = vld [vmem:[%s3 + $0x50] sm:$0xff]
  %v76 = vld [vmem:[%s3 + $0x58] sm:$0xff]
  %v77 = vld [vmem:[%s3 + $0x60] sm:$0xff]
  %v78 = vld [vmem:[%s3 + $0x68] sm:$0xff]
  %v79 = vld [vmem:[%s3 + $0x70] sm:$0xff]
  %v80 = vld [vmem:[%s3 + $0x78] sm:$0xff]
  %v81 = vld [vmem:[%s4] sm:$0x3]
  %v83 = vlaneseq
  %v84 = vshrl.u32 %v83, 7
  %v85 = vsub.s32 0, %v84
  %v86 = vrot.slane %v81, %v85
  %v87 = vlaneseq
  %v88 = vshrl.u32 %v87, 7
  %v89 = vsub.s32 1, %v88
  %v90 = vrot.slane %v81, %v89
  %v109 = vunpack.c.l.b16 %v65
  %v110 = vunpack.c.h.b16 %v65
  %v111 = vunpack.c.l.b16 %v66
  %v112 = vunpack.c.h.b16 %v66
  %v113 = vunpack.c.l.b16 %v67
  %v114 = vunpack.c.h.b16 %v67
  %v115 = vunpack.c.l.b16 %v68
  %v116 = vunpack.c.h.b16 %v68
  %v117 = vunpack.c.l.b16 %v69
  %v118 = vunpack.c.h.b16 %v69
  %v119 = vunpack.c.l.b16 %v70
  %v120 = vunpack.c.h.b16 %v70
  %v121 = vunpack.c.l.b16 %v71
  %v122 = vunpack.c.h.b16 %v71
  %v123 = vunpack.c.l.b16 %v72
  %v124 = vunpack.c.h.b16 %v72
  %v125 = vunpack.c.l.b16 %v73
  %v126 = vunpack.c.h.b16 %v73
  %v127 = vunpack.c.l.b16 %v74
  %v128 = vunpack.c.h.b16 %v74
  %v129 = vunpack.c.l.b16 %v75
  %v130 = vunpack.c.h.b16 %v75
  %v131 = vunpack.c.l.b16 %v76
  %v132 = vunpack.c.h.b16 %v76
  %v133 = vunpack.c.l.b16 %v77
  %v134 = vunpack.c.h.b16 %v77
  %v135 = vunpack.c.l.b16 %v78
  %v136 = vunpack.c.h.b16 %v78
  %v137 = vunpack.c.l.b16 %v79
  %v138 = vunpack.c.h.b16 %v79
  %v139 = vunpack.c.l.b16 %v80
  %v140 = vunpack.c.h.b16 %v80
  %v141 = vpack.c.b16 %v111, %v109
  %v142 = vpack.c.b16 %v112, %v110
  %v143 = vpack.c.b16 %v115, %v113
  %v144 = vpack.c.b16 %v116, %v114
  %v145 = vpack.c.b16 %v119, %v117
  %v146 = vpack.c.b16 %v120, %v118
  %v147 = vpack.c.b16 %v123, %v121
  %v148 = vpack.c.b16 %v124, %v122
  %v149 = vpack.c.b16 %v127, %v125
  %v150 = vpack.c.b16 %v128, %v126
  %v151 = vpack.c.b16 %v131, %v129
  %v152 = vpack.c.b16 %v132, %v130
  %v153 = vpack.c.b16 %v135, %v133
  %v154 = vpack.c.b16 %v136, %v134
  %v155 = vpack.c.b16 %v139, %v137
  %v156 = vpack.c.b16 %v140, %v138
  %173 = vmatprep.subr.bf16.mxu0 %v142
  %174 = vmatpush1.bf16.msra.mxu0 %v141
  %175 = vmatprep.subr.bf16.mxu0 %v144
  %176 = vmatpush1.bf16.msra.mxu0 %v143
  %177 = vmatprep.subr.bf16.mxu0 %v146
  %178 = vmatpush1.bf16.msra.mxu0 %v145
  %179 = vmatprep.subr.bf16.mxu0 %v148
  %180 = vmatpush1.bf16.msra.mxu0 %v147
  %181 = vmatprep.subr.bf16.mxu0 %v150
  %182 = vmatpush1.bf16.msra.mxu0 %v149
  %183 = vmatprep.subr.bf16.mxu0 %v152
  %184 = vmatpush1.bf16.msra.mxu0 %v151
  %185 = vmatprep.subr.bf16.mxu0 %v154
  %186 = vmatpush1.bf16.msra.mxu0 %v153
  %187 = vmatprep.subr.bf16.mxu0 %v156
  %188 = vmatpush1.bf16.msra.mxu0 %v155
  %189 = vmatprep.subr.bf16.mxu0 0
  %190 = vmatpush1.bf16.msra.mxu0 0
  %191 = vmatprep.subr.bf16.mxu0 0
  %192 = vmatpush1.bf16.msra.mxu0 0
  %193 = vmatprep.subr.bf16.mxu0 0
  %194 = vmatpush1.bf16.msra.mxu0 0
  %195 = vmatprep.subr.bf16.mxu0 0
  %196 = vmatpush1.bf16.msra.mxu0 0
  %197 = vmatprep.subr.bf16.mxu0 0
  %198 = vmatpush1.bf16.msra.mxu0 0
  %199 = vmatprep.subr.bf16.mxu0 0
  %200 = vmatpush1.bf16.msra.mxu0 0
  %201 = vmatprep.subr.bf16.mxu0 0
  %202 = vmatpush1.bf16.msra.mxu0 0
  %203 = vmatprep.subr.bf16.mxu0 0
  %204 = vmatpush1.bf16.msra.mxu0 0
  %205 = vmatprep.mubr.bf16.mxu0 0
  %206 = vmatmul.mubr.bf16.gmra.mrb[0].mxu0 %v64
  %v207 = vpop.f32.mrb[0].mxu0
  %v208 = vadd.f32 %v86, %v207
  %v209 = vpop.f32.mrb[0].mxu0
  %v210 = vadd.f32 %v90, %v209
  %v211 = vpop.f32.mrb[0].mxu0
  %v212 = vadd.f32 %v86, %v211
  %v213 = vpop.f32.mrb[0].mxu0
  %v214 = vadd.f32 %v90, %v213
  %215 = vdwg.mxu0
  %v216 = vmul.f32 %v208, %v208
  %v217 = vmul.f32 %v210, %v210
  %v218 = vmul.f32 %v212, %v212
  %v219 = vmul.f32 %v214, %v214
  %v220 = vmul.f32 %v208, %v216
  %v221 = vmul.f32 %v210, %v217
  %v222 = vmul.f32 %v212, %v218
  %v223 = vmul.f32 %v214, %v219
  %v224 = vmul.f32 %v220, 0.044715
  %v225 = vmul.f32 %v221, 0.044715
  %v226 = vmul.f32 %v222, 0.044715
  %v227 = vmul.f32 %v223, 0.044715
  %v228 = vadd.f32 %v208, %v224
  %v229 = vadd.f32 %v210, %v225
  %v230 = vadd.f32 %v212, %v226
  %v231 = vadd.f32 %v214, %v227
  %v232 = vmul.f32 %v228, 0.7978846
  %v233 = vmul.f32 %v229, 0.7978846
  %v234 = vmul.f32 %v230, 0.7978846
  %v235 = vmul.f32 %v231, 0.7978846
  %v236 = vtanh.pop %v232
  %v237 = vtanh.pop %v233
  %v238 = vtanh.pop %v234
  %v239 = vtanh.pop %v235
  %v240 = vadd.f32 %v236, 1.0
  %v241 = vadd.f32 %v237, 1.0
  %v242 = vadd.f32 %v238, 1.0
  %v243 = vadd.f32 %v239, 1.0
  %v244 = vmul.f32 %v240, 0.5
  %v245 = vmul.f32 %v241, 0.5
  %v246 = vmul.f32 %v242, 0.5
  %v247 = vmul.f32 %v243, 0.5
  %v248 = vmul.f32 %v208, %v244
  %v249 = vmul.f32 %v210, %v245
  %v250 = vmul.f32 %v212, %v246
  %v251 = vmul.f32 %v214, %v247
  %v252 = vpack.c.bf16 %v250, %v248
  %v253 = vpack.c.bf16 %v251, %v249
  %v256 = vunpack.c.l.b16 %v252
  %v257 = vunpack.c.l.b16 %v253
  %v258 = vunpack.c.h.b16 %v252
  %v259 = vunpack.c.h.b16 %v253
  %v260 = vpack.c.b16 %v257, %v256
  %v261 = vpack.c.b16 %v259, %v258
  %264 = vst [vmem:[%s5] sm:$0xff] %v260
  %265 = vst [vmem:[%s5 + $0x8] sm:$0xff] %v261
  // Predicated region
  $region22: #{language_model_forward.14} parent=0 // pred_check
    _
  $region23: #{language_model_forward.14} parent=0 // pred_check_branch
    %267 = sbr.rel (0) target = $region25
  $region24: #{language_model_forward.14} parent=0 // pred_region
    _
  $region25: #{language_model_forward.14} parent=0 // pred_fallthru
    _
  // Predicated region
  $region26: #{language_model_forward.14} parent=0 // pred_check
    _
  $region27: #{language_model_forward.14} parent=0 // pred_check_branch
    %269 = sbr.rel (0) target = $region29
  $region28: #{language_model_forward.14} parent=0 // pred_region
    _
  $region29: #{language_model_forward.14} parent=0 // pred_fallthru
    _

// kernel: language_model_forward.11
$region0: #{language_model_forward.11}
  #allocation0 [shape = 'u32[]', space=smem, size = 0x4, offset = 0x4, fixed_abs, tag = 'smem constant byte address 0x4 - core index']
  #allocation1 [shape = 'u32[144,128]{1,0:T(1,128)}', space=vmem, size = 0x12000, scoped, tag = 'internal scratch']
  %s0 = inlined_call_operand.vmem [shape: f32[16,128], index: 0, kind: input, shape index: {}]
  %s1 = inlined_call_operand.vmem [shape: f32[1,128], index: 1, kind: input, shape index: {}]
  %s2 = inlined_call_operand.vmem [shape: f32[1,128], index: 2, kind: input, shape index: {}]
  %s3 = inlined_call_operand.vmem [shape: bf16[128,384], index: 3, kind: input, shape index: {}]
  %s4 = inlined_call_operand.vmem [shape: f32[1,384], index: 4, kind: input, shape index: {}]
  %s5 = inlined_call_operand.vmem [shape: bf16[16,384], index: 5, kind: output, shape index: {}]
  %s6 = sld [smem:[#allocation0]]
  $region30: #{language_model_forward.11} parent=0
    _
  %s8 = ssub.s32 1, %s6
  %s9 = scalar_select 0, %s8, %s6
  // Predicated region
  $region2: #{language_model_forward.11} parent=0 // pred_check
    _
  $region3: #{language_model_forward.11} parent=0 // pred_check_branch
    %11 = sbr.rel (0) target = $region5
  $region4: #{language_model_forward.11} parent=0 // pred_region
    _
  $region5: #{language_model_forward.11} parent=0 // pred_fallthru
    _
  // Predicated region
  $region6: #{language_model_forward.11} parent=0 // pred_check
    _
  $region7: #{language_model_forward.11} parent=0 // pred_check_branch
    %13 = sbr.rel (0) target = $region9
  $region8: #{language_model_forward.11} parent=0 // pred_region
    _
  $region9: #{language_model_forward.11} parent=0 // pred_fallthru
    _
  // Predicated region
  $region10: #{language_model_forward.11} parent=0 // pred_check
    _
  $region11: #{language_model_forward.11} parent=0 // pred_check_branch
    %15 = sbr.rel (0) target = $region13
  $region12: #{language_model_forward.11} parent=0 // pred_region
    _
  $region13: #{language_model_forward.11} parent=0 // pred_fallthru
    _
  // Predicated region
  $region14: #{language_model_forward.11} parent=0 // pred_check
    _
  $region15: #{language_model_forward.11} parent=0 // pred_check_branch
    %17 = sbr.rel (0) target = $region17
  $region16: #{language_model_forward.11} parent=0 // pred_region
    _
  $region17: #{language_model_forward.11} parent=0 // pred_fallthru
    _
  // Predicated region
  $region18: #{language_model_forward.11} parent=0 // pred_check
    _
  $region19: #{language_model_forward.11} parent=0 // pred_check_branch
    %19 = sbr.rel (0) target = $region21
  $region20: #{language_model_forward.11} parent=0 // pred_region
    _
  $region21: #{language_model_forward.11} parent=0 // pred_fallthru
    _
  %v21 = vld [vmem:[%s0] sm:$0xff]
  %v22 = vld [vmem:[%s0 + $0x8] sm:$0xff]
  %23 = vadd.xlane.f32.xlu0 %v21
  %v24 = vpop.xlane.xlu0 %23
  %25 = vadd.xlane.f32.xlu0 %v22
  %v26 = vpop.xlane.xlu0 %25
  %v27 = vrcp.pop 128.0
  %v28 = vmul.f32 %v24, %v27
  %v29 = vmul.f32 %v26, %v27
  %v30 = vsub.f32 %v21, %v28
  %v31 = vsub.f32 %v22, %v29
  %v32 = vmul.f32 %v30, %v30
  %v33 = vmul.f32 %v31, %v31
  %34 = vadd.xlane.f32.xlu0 %v32
  %v35 = vpop.xlane.xlu0 %34
  %36 = vadd.xlane.f32.xlu0 %v33
  %v37 = vpop.xlane.xlu0 %36
  %v38 = vmul.f32 %v35, %v27
  %v39 = vmul.f32 %v37, %v27
  %v40 = vadd.f32 %v38, 1e-05
  %v41 = vadd.f32 %v39, 1e-05
  %v42 = vrsqrt.pop %v40
  %v43 = vrsqrt.pop %v41
  %v44 = vmul.f32 %v30, %v42
  %v45 = vmul.f32 %v31, %v43
  %v46 = vld [vmem:[%s1] sm:$0x1]
  %v48 = vlaneseq
  %v49 = vshrl.u32 %v48, 7
  %v50 = vsub.s32 0, %v49
  %v51 = vrot.slane %v46, %v50
  %v53 = vmul.f32 %v44, %v51
  %v54 = vmul.f32 %v45, %v51
  %v55 = vld [vmem:[%s2] sm:$0x1]
  %v57 = vlaneseq
  %v58 = vshrl.u32 %v57, 7
  %v59 = vsub.s32 0, %v58
  %v60 = vrot.slane %v55, %v59
  %v62 = vadd.f32 %v53, %v60
  %v63 = vadd.f32 %v54, %v60
  %v64 = vpack.c.bf16 %v63, %v62
  %v65 = vld [vmem:[%s3] sm:$0xff]
  %v66 = vld [vmem:[%s3 + $0x8] sm:$0xf]
  %v67 = vld [vmem:[%s3 + $0xc] sm:$0xff]
  %v68 = vld [vmem:[%s3 + $0x14] sm:$0xf]
  %v69 = vld [vmem:[%s3 + $0x18] sm:$0xff]
  %v70 = vld [vmem:[%s3 + $0x20] sm:$0xf]
  %v71 = vld [vmem:[%s3 + $0x24] sm:$0xff]
  %v72 = vld [vmem:[%s3 + $0x2c] sm:$0xf]
  %v73 = vld [vmem:[%s3 + $0x30] sm:$0xff]
  %v74 = vld [vmem:[%s3 + $0x38] sm:$0xf]
  %v75 = vld [vmem:[%s3 + $0x3c] sm:$0xff]
  %v76 = vld [vmem:[%s3 + $0x44] sm:$0xf]
  %v77 = vld [vmem:[%s3 + $0x48] sm:$0xff]
  %v78 = vld [vmem:[%s3 + $0x50] sm:$0xf]
  %v79 = vld [vmem:[%s3 + $0x54] sm:$0xff]
  %v80 = vld [vmem:[%s3 + $0x5c] sm:$0xf]
  %v81 = vld [vmem:[%s3 + $0x60] sm:$0xff]
  %v82 = vld [vmem:[%s3 + $0x68] sm:$0xf]
  %v83 = vld [vmem:[%s3 + $0x6c] sm:$0xff]
  %v84 = vld [vmem:[%s3 + $0x74] sm:$0xf]
  %v85 = vld [vmem:[%s3 + $0x78] sm:$0xff]
  %v86 = vld [vmem:[%s3 + $0x80] sm:$0xf]
  %v87 = vld [vmem:[%s3 + $0x84] sm:$0xff]
  %v88 = vld [vmem:[%s3 + $0x8c] sm:$0xf]
  %v89 = vld [vmem:[%s3 + $0x90] sm:$0xff]
  %v90 = vld [vmem:[%s3 + $0x98] sm:$0xf]
  %v91 = vld [vmem:[%s3 + $0x9c] sm:$0xff]
  %v92 = vld [vmem:[%s3 + $0xa4] sm:$0xf]
  %v93 = vld [vmem:[%s3 + $0xa8] sm:$0xff]
  %v94 = vld [vmem:[%s3 + $0xb0] sm:$0xf]
  %v95 = vld [vmem:[%s3 + $0xb4] sm:$0xff]
  %v96 = vld [vmem:[%s3 + $0xbc] sm:$0xf]
  %v97 = vld [vmem:[%s4] sm:$0x7]
  %v99 = vlaneseq
  %v100 = vshrl.u32 %v99, 7
  %v101 = vsub.s32 0, %v100
  %v102 = vrot.slane %v97, %v101
  %v103 = vlaneseq
  %v104 = vshrl.u32 %v103, 7
  %v105 = vsub.s32 1, %v104
  %v106 = vrot.slane %v97, %v105
  %v107 = vlaneseq
  %v108 = vshrl.u32 %v107, 7
  %v109 = vsub.s32 2, %v108
  %v110 = vrot.slane %v97, %v109
  %v146 = vunpack.c.l.b16 %v65
  %v147 = vunpack.c.h.b16 %v65
  %v148 = vunpack.c.l.b16 %v66
  %v149 = vunpack.c.l.b16 %v67
  %v150 = vunpack.c.h.b16 %v67
  %v151 = vunpack.c.l.b16 %v68
  %v152 = vunpack.c.l.b16 %v69
  %v153 = vunpack.c.h.b16 %v69
  %v154 = vunpack.c.l.b16 %v70
  %v155 = vunpack.c.l.b16 %v71
  %v156 = vunpack.c.h.b16 %v71
  %v157 = vunpack.c.l.b16 %v72
  %v158 = vunpack.c.l.b16 %v73
  %v159 = vunpack.c.h.b16 %v73
  %v160 = vunpack.c.l.b16 %v74
  %v161 = vunpack.c.l.b16 %v75
  %v162 = vunpack.c.h.b16 %v75
  %v163 = vunpack.c.l.b16 %v76
  %v164 = vunpack.c.l.b16 %v77
  %v165 = vunpack.c.h.b16 %v77
  %v166 = vunpack.c.l.b16 %v78
  %v167 = vunpack.c.l.b16 %v79
  %v168 = vunpack.c.h.b16 %v79
  %v169 = vunpack.c.l.b16 %v80
  %v170 = vunpack.c.l.b16 %v81
  %v171 = vunpack.c.h.b16 %v81
  %v172 = vunpack.c.l.b16 %v82
  %v173 = vunpack.c.l.b16 %v83
  %v174 = vunpack.c.h.b16 %v83
  %v175 = vunpack.c.l.b16 %v84
  %v176 = vunpack.c.l.b16 %v85
  %v177 = vunpack.c.h.b16 %v85
  %v178 = vunpack.c.l.b16 %v86
  %v179 = vunpack.c.l.b16 %v87
  %v180 = vunpack.c.h.b16 %v87
  %v181 = vunpack.c.l.b16 %v88
  %v182 = vunpack.c.l.b16 %v89
  %v183 = vunpack.c.h.b16 %v89
  %v184 = vunpack.c.l.b16 %v90
  %v185 = vunpack.c.l.b16 %v91
  %v186 = vunpack.c.h.b16 %v91
  %v187 = vunpack.c.l.b16 %v92
  %v188 = vunpack.c.l.b16 %v93
  %v189 = vunpack.c.h.b16 %v93
  %v190 = vunpack.c.l.b16 %v94
  %v191 = vunpack.c.l.b16 %v95
  %v192 = vunpack.c.h.b16 %v95
  %v193 = vunpack.c.l.b16 %v96
  %v194 = vpack.c.b16 %v149, %v146
  %v195 = vpack.c.b16 %v150, %v147
  %v196 = vpack.c.b16 %v151, %v148
  %v197 = vpack.c.b16 %v155, %v152
  %v198 = vpack.c.b16 %v156, %v153
  %v199 = vpack.c.b16 %v157, %v154
  %v200 = vpack.c.b16 %v161, %v158
  %v201 = vpack.c.b16 %v162, %v159
  %v202 = vpack.c.b16 %v163, %v160
  %v203 = vpack.c.b16 %v167, %v164
  %v204 = vpack.c.b16 %v168, %v165
  %v205 = vpack.c.b16 %v169, %v166
  %v206 = vpack.c.b16 %v173, %v170
  %v207 = vpack.c.b16 %v174, %v171
  %v208 = vpack.c.b16 %v175, %v172
  %v209 = vpack.c.b16 %v179, %v176
  %v210 = vpack.c.b16 %v180, %v177
  %v211 = vpack.c.b16 %v181, %v178
  %v212 = vpack.c.b16 %v185, %v182
  %v213 = vpack.c.b16 %v186, %v183
  %v214 = vpack.c.b16 %v187, %v184
  %v215 = vpack.c.b16 %v191, %v188
  %v216 = vpack.c.b16 %v192, %v189
  %v217 = vpack.c.b16 %v193, %v190
  %242 = vmatprep.subr.bf16.mxu0 %v195
  %243 = vmatpush1.bf16.msra.mxu0 %v194
  %244 = vmatprep.subr.bf16.mxu0 %v198
  %245 = vmatpush1.bf16.msra.mxu0 %v197
  %246 = vmatprep.subr.bf16.mxu0 %v201
  %247 = vmatpush1.bf16.msra.mxu0 %v200
  %248 = vmatprep.subr.bf16.mxu0 %v204
  %249 = vmatpush1.bf16.msra.mxu0 %v203
  %250 = vmatprep.subr.bf16.mxu0 %v207
  %251 = vmatpush1.bf16.msra.mxu0 %v206
  %252 = vmatprep.subr.bf16.mxu0 %v210
  %253 = vmatpush1.bf16.msra.mxu0 %v209
  %254 = vmatprep.subr.bf16.mxu0 %v213
  %255 = vmatpush1.bf16.msra.mxu0 %v212
  %256 = vmatprep.subr.bf16.mxu0 %v216
  %257 = vmatpush1.bf16.msra.mxu0 %v215
  %258 = vmatprep.subr.bf16.mxu0 0
  %259 = vmatpush1.bf16.msra.mxu0 0
  %260 = vmatprep.subr.bf16.mxu0 0
  %261 = vmatpush1.bf16.msra.mxu0 0
  %262 = vmatprep.subr.bf16.mxu0 0
  %263 = vmatpush1.bf16.msra.mxu0 0
  %264 = vmatprep.subr.bf16.mxu0 0
  %265 = vmatpush1.bf16.msra.mxu0 0
  %266 = vmatprep.subr.bf16.mxu0 0
  %267 = vmatpush1.bf16.msra.mxu0 0
  %268 = vmatprep.subr.bf16.mxu0 0
  %269 = vmatpush1.bf16.msra.mxu0 0
  %270 = vmatprep.subr.bf16.mxu0 0
  %271 = vmatpush1.bf16.msra.mxu0 0
  %272 = vmatprep.subr.bf16.mxu0 0
  %273 = vmatpush1.bf16.msra.mxu0 0
  %274 = vmatprep.mubr.bf16.mxu0 0
  %275 = vmatmul.mubr.bf16.gmra.mrb[0].mxu0 %v64
  %v276 = vpop.f32.mrb[0].mxu0
  %v277 = vadd.f32 %v102, %v276
  %v278 = vpop.f32.mrb[0].mxu0
  %v279 = vadd.f32 %v106, %v278
  %v280 = vpop.f32.mrb[0].mxu0
  %v281 = vadd.f32 %v102, %v280
  %v282 = vpop.f32.mrb[0].mxu0
  %v283 = vadd.f32 %v106, %v282
  %284 = vdwg.mxu0
  %285 = vmatprep.subr.bf16.mxu0 0
  %286 = vmatpush1.bf16.msra.mxu0 %v196
  %287 = vmatprep.subr.bf16.mxu0 0
  %288 = vmatpush1.bf16.msra.mxu0 %v199
  %289 = vmatprep.subr.bf16.mxu0 0
  %290 = vmatpush1.bf16.msra.mxu0 %v202
  %291 = vmatprep.subr.bf16.mxu0 0
  %292 = vmatpush1.bf16.msra.mxu0 %v205
  %293 = vmatprep.subr.bf16.mxu0 0
  %294 = vmatpush1.bf16.msra.mxu0 %v208
  %295 = vmatprep.subr.bf16.mxu0 0
  %296 = vmatpush1.bf16.msra.mxu0 %v211
  %297 = vmatprep.subr.bf16.mxu0 0
  %298 = vmatpush1.bf16.msra.mxu0 %v214
  %299 = vmatprep.subr.bf16.mxu0 0
  %300 = vmatpush1.bf16.msra.mxu0 %v217
  %301 = vmatprep.subr.bf16.mxu0 0
  %302 = vmatpush1.bf16.msra.mxu0 0
  %303 = vmatprep.subr.bf16.mxu0 0
  %304 = vmatpush1.bf16.msra.mxu0 0
  %305 = vmatprep.subr.bf16.mxu0 0
  %306 = vmatpush1.bf16.msra.mxu0 0
  %307 = vmatprep.subr.bf16.mxu0 0
  %308 = vmatpush1.bf16.msra.mxu0 0
  %309 = vmatprep.subr.bf16.mxu0 0
  %310 = vmatpush1.bf16.msra.mxu0 0
  %311 = vmatprep.subr.bf16.mxu0 0
  %312 = vmatpush1.bf16.msra.mxu0 0
  %313 = vmatprep.subr.bf16.mxu0 0
  %314 = vmatpush1.bf16.msra.mxu0 0
  %315 = vmatprep.subr.bf16.mxu0 0
  %316 = vmatpush1.bf16.msra.mxu0 0
  %317 = vmatprep.mubr.bf16.mxu0 0
  %318 = vmatmul.mubr.bf16.gmra.mrb[0].mxu0 %v64
  %v319 = vpop.f32.mrb[0].mxu0
  %v320 = vadd.f32 %v110, %v319
  %v321 = vpop.f32.mrb[0].mxu0
  %v322 = vpop.f32.mrb[0].mxu0
  %v323 = vadd.f32 %v110, %v322
  %v324 = vpop.f32.mrb[0].mxu0
  %325 = vdwg.mxu0
  %v326 = vpack.c.bf16 %v281, %v277
  %v327 = vpack.c.bf16 %v283, %v279
  %v328 = vpack.c.bf16 %v323, %v320
  %v332 = vunpack.c.l.b16 %v326
  %v333 = vunpack.c.l.b16 %v327
  %v334 = vunpack.c.l.b16 %v328
  %v335 = vunpack.c.h.b16 %v326
  %v336 = vunpack.c.h.b16 %v327
  %v337 = vunpack.c.h.b16 %v328
  %v338 = vpack.c.b16 %v333, %v332
  %v339 = vpack.c.b16 %v334, %v334
  %v340 = vpack.c.b16 %v336, %v335
  %v341 = vpack.c.b16 %v337, %v337
  %346 = vst [vmem:[%s5] sm:$0xff] %v338
  %347 = vst [vmem:[%s5 + $0x8] sm:$0xf] %v339
  %348 = vst [vmem:[%s5 + $0xc] sm:$0xff] %v340
  %349 = vst [vmem:[%s5 + $0x14] sm:$0xf] %v341
  // Predicated region
  $region22: #{language_model_forward.11} parent=0 // pred_check
    _
  $region23: #{language_model_forward.11} parent=0 // pred_check_branch
    %351 = sbr.rel (0) target = $region25
  $region24: #{language_model_forward.11} parent=0 // pred_region
    _
  $region25: #{language_model_forward.11} parent=0 // pred_fallthru
    _
  // Predicated region
  $region26: #{language_model_forward.11} parent=0 // pred_check
    _
  $region27: #{language_model_forward.11} parent=0 // pred_check_branch
    %353 = sbr.rel (0) target = $region29
  $region28: #{language_model_forward.11} parent=0 // pred_region
    _
  $region29: #{language_model_forward.11} parent=0 // pred_fallthru
    _

// kernel: language_model_forward.12
$region0: #{language_model_forward.12}
  #allocation0 [shape = 'u32[]', space=smem, size = 0x4, offset = 0x4, fixed_abs, tag = 'smem constant byte address 0x4 - core index']
  #allocation1 [shape = 'u32[144,128]{1,0:T(1,128)}', space=vmem, size = 0x12000, scoped, tag = 'internal scratch']
  #allocation2 [shape = 'f32[4,8,1]{2,1,0:T(8,128)}', space=vmem, size = 0x4000, scoped, tag = 'scratch operand']
  #allocation3 [shape = 'f32[4,8,1]{2,1,0:T(8,128)}', space=vmem, size = 0x4000, scoped, tag = 'scratch operand']
  #allocation4 [shape = 'f32[4,8,32]{2,1,0:T(8,128)}', space=vmem, size = 0x4000, scoped, tag = 'scratch operand']
  %s0 = inlined_call_operand.vmem [shape: bf16[2,8,384], index: 0, kind: input, shape index: {}, may-alias: {0,1}]
  %s1 = inlined_call_operand.vmem [shape: bf16[2,8,384], index: 1, kind: input, shape index: {}, may-alias: {0,1}]
  %s2 = inlined_call_operand.vmem [shape: f32[2,1,8], index: 2, kind: input, shape index: {}]
  %s3 = inlined_call_operand.vmem [shape: bf16[2,8,128], index: 3, kind: output, shape index: {}]
  %s4 = sld [smem:[#allocation0]]
  $region57: #{language_model_forward.12} parent=0
    _
  %s6 = ssub.s32 1, %s4
  %s7 = scalar_select 0, %s6, %s4
  loop: start=0, step=1, limit=4
  $region2: #{language_model_forward.12} parent=0 // loop_pre_header
    _
  $region3: #{language_model_forward.12} parent=0 // loop_header
    %s9 = sphi 0, %s13
    %p10 = scmp.ge.s32.totalorder %s9, 4
    %s16 = sphi 0, %s35
    %s17 = sphi 0, %s31
    %s18 = sphi 0, %s27
    %s19 = sphi 0, %s16
    %s20 = sphi 0, %s17
    %s21 = sphi 0, %s18
    %s22 = sphi 0, %s19
    %s23 = sphi 0, %s20
    %s24 = sphi 0, %s21
    %s40 = sphi 0, %s42
    %s43 = sphi 0, %s40
    %s44 = sphi 0, %s43
    %s60 = sphi 0, %s44
    %s68 = sphi 0, %s70
    %s71 = sphi 0, %s68
    %s72 = sphi 0, %s71
    %s88 = sphi 0, %s72
    %s96 = sphi 0, %s98
    %s99 = sphi 0, %s96
    %s100 = sphi 0, %s99
    %s116 = sphi 0, %s100
    %s124 = sphi 0, %s126
    %s127 = sphi 0, %s124
    %s128 = sphi 0, %s127
    %s144 = sphi 0, %s128
  $region4: #{language_model_forward.12} parent=0 // loop_header_branch
    %12 = sbr.rel (%p10) target = $region8
  $region5: #{language_model_forward.12} parent=0 // loop_body
    %s14 = ssub.s32 %s9, 1
    %s15 = ssub.s32 %s9, 2
    %s25 = sadd.s32 1, %s18
    %p26 = scmp.ge.s32.totalorder %s25, 1
    %s27 = scalar_select %p26, 0, %s25
    %s28 = sadd.s32 1, %s17
    %s29 = scalar_select %p26, %s28, %s17
    %p30 = scmp.ge.s32.totalorder %s29, 1
    %s31 = scalar_select %p30, 0, %s29
    %s32 = sadd.s32 1, %s16
    %s33 = scalar_select %p30, %s32, %s16
    %p34 = scmp.ge.s32.totalorder %s33, 2
    %s35 = scalar_select %p34, 0, %s33
    %s36 = ssub.s32 %s16, %s35
    %s37 = ssub.s32 %s17, %s31
    %s38 = sor.u32 %s36, %s37
    %p39 = scmp.eq.s32.totalorder %s38, 0
    %s41 = sadd.s32 %s40, 1
    %s42 = scalar_select %p39, %s40, %s41
    %p45 = pneg %p39
    %p46 = scmp.eq.s32.totalorder %s9, 1
    %p47 = por %p45, %p46
    %p48 = scmp.ne.s32.totalorder %s40, %s43
    %p49 = scmp.eq.s32.totalorder %s9, 0
    %p50 = por %p48, %p49
    %p51 = scmp.ne.s32.totalorder %s40, %s43
    %p52 = scmp.eq.s32.totalorder %s14, 1
    %p53 = por %p51, %p52
    %p54 = scmp.ne.s32.totalorder %s43, %s44
    %p55 = scmp.eq.s32.totalorder %s14, 0
    %p56 = por %p54, %p55
    %p57 = scmp.ne.s32.totalorder %s43, %s44
    %p58 = scmp.eq.s32.totalorder %s15, 1
    %p59 = por %p57, %p58
    %p61 = scmp.ne.s32.totalorder %s44, %s60
    %p62 = scmp.eq.s32.totalorder %s15, 0
    %p63 = por %p61, %p62
    %s64 = ssub.s32 %s16, %s35
    %s65 = ssub.s32 %s18, %s27
    %s66 = sor.u32 %s64, %s65
    %p67 = scmp.eq.s32.totalorder %s66, 0
    %s69 = sadd.s32 %s68, 1
    %s70 = scalar_select %p67, %s68, %s69
    %p73 = pneg %p67
    %p74 = scmp.eq.s32.totalorder %s9, 1
    %p75 = por %p73, %p74
    %p76 = scmp.ne.s32.totalorder %s68, %s71
    %p77 = scmp.eq.s32.totalorder %s9, 0
    %p78 = por %p76, %p77
    %p79 = scmp.ne.s32.totalorder %s68, %s71
    %p80 = scmp.eq.s32.totalorder %s14, 1
    %p81 = por %p79, %p80
    %p82 = scmp.ne.s32.totalorder %s71, %s72
    %p83 = scmp.eq.s32.totalorder %s14, 0
    %p84 = por %p82, %p83
    %p85 = scmp.ne.s32.totalorder %s71, %s72
    %p86 = scmp.eq.s32.totalorder %s15, 1
    %p87 = por %p85, %p86
    %p89 = scmp.ne.s32.totalorder %s72, %s88
    %p90 = scmp.eq.s32.totalorder %s15, 0
    %p91 = por %p89, %p90
    %s92 = ssub.s32 %s16, %s35
    %s93 = ssub.s32 %s18, %s27
    %s94 = sor.u32 %s92, %s93
    %p95 = scmp.eq.s32.totalorder %s94, 0
    %s97 = sadd.s32 %s96, 1
    %s98 = scalar_select %p95, %s96, %s97
    %p101 = pneg %p95
    %p102 = scmp.eq.s32.totalorder %s9, 1
    %p103 = por %p101, %p102
    %p104 = scmp.ne.s32.totalorder %s96, %s99
    %p105 = scmp.eq.s32.totalorder %s9, 0
    %p106 = por %p104, %p105
    %p107 = scmp.ne.s32.totalorder %s96, %s99
    %p108 = scmp.eq.s32.totalorder %s14, 1
    %p109 = por %p107, %p108
    %p110 = scmp.ne.s32.totalorder %s99, %s100
    %p111 = scmp.eq.s32.totalorder %s14, 0
    %p112 = por %p110, %p111
    %p113 = scmp.ne.s32.totalorder %s99, %s100
    %p114 = scmp.eq.s32.totalorder %s15, 1
    %p115 = por %p113, %p114
    %p117 = scmp.ne.s32.totalorder %s100, %s116
    %p118 = scmp.eq.s32.totalorder %s15, 0
    %p119 = por %p117, %p118
    %s120 = ssub.s32 %s16, %s35
    %s121 = ssub.s32 %s17, %s31
    %s122 = sor.u32 %s120, %s121
    %p123 = scmp.eq.s32.totalorder %s122, 0
    %s125 = sadd.s32 %s124, 1
    %s126 = scalar_select %p123, %s124, %s125
    %p129 = pneg %p123
    %p130 = scmp.eq.s32.totalorder %s9, 1
    %p131 = por %p129, %p130
    %p132 = scmp.ne.s32.totalorder %s124, %s127
    %p133 = scmp.eq.s32.totalorder %s9, 0
    %p134 = por %p132, %p133
    %p135 = scmp.ne.s32.totalorder %s124, %s127
    %p136 = scmp.eq.s32.totalorder %s14, 1
    %p137 = por %p135, %p136
    %p138 = scmp.ne.s32.totalorder %s127, %s128
    %p139 = scmp.eq.s32.totalorder %s14, 0
    %p140 = por %p138, %p139
    %p141 = scmp.ne.s32.totalorder %s127, %s128
    %p142 = scmp.eq.s32.totalorder %s15, 1
    %p143 = por %p141, %p142
    %p145 = scmp.ne.s32.totalorder %s128, %s144
    %p146 = scmp.eq.s32.totalorder %s15, 0
    %p147 = por %p145, %p146
    %p148 = scmp.le.s32.totalorder 1, %s9
    %p149 = scmp.lt.s32.totalorder %s9, 3
    %p150 = pnand %p148, %p149
    %p151 = pneg %p150
    // Predicated region
    $region9: #{language_model_forward.12} parent=5 // pred_check
      _
    $region10: #{language_model_forward.12} parent=5 // pred_check_branch
      %153 = sbr.rel (%p150) target = $region12
    $region11: #{language_model_forward.12} parent=5 // pred_region
      %s154 = ssub.s32 %s9, 1
    $region12: #{language_model_forward.12} parent=5 // pred_fallthru
      _
    %p155 = scmp.lt.s32.totalorder %s9, 2
    // Predicated region
    $region13: #{language_model_forward.12} parent=5 // pred_check
      %p156 = pneg %p155
    $region14: #{language_model_forward.12} parent=5 // pred_check_branch
      %158 = sbr.rel (%p156) target = $region16
    $region15: #{language_model_forward.12} parent=5 // pred_region
      // Predicated region
      $region17: #{language_model_forward.12} parent=15 // pred_check
        %p159 = pneg %p50
      $region18: #{language_model_forward.12} parent=15 // pred_check_branch
        %161 = sbr.rel (%p159) target = $region20
      $region19: #{language_model_forward.12} parent=15 // pred_region
        %p162 = scmp.lt.s32.totalorder %s16, 1
        %s163 = scalar_select %p162, %s16, 1
        %p164 = scmp.lt.s32.totalorder %s17, 0
        %s165 = scalar_select %p164, %s17, 0
        %s166 = smul.addr %s165, 3
        %s167 = smul.addr %s163, 3
        %s168 = sadd.s32 %s166, %s167
        %s169 = smul.addr %s168, 4
        %s170 = scalar_lea.vmem %s0, %s169
      $region20: #{language_model_forward.12} parent=15 // pred_fallthru
        _
      // Predicated region
      $region21: #{language_model_forward.12} parent=15 // pred_check
        %p171 = pneg %p78
      $region22: #{language_model_forward.12} parent=15 // pred_check_branch
        %173 = sbr.rel (%p171) target = $region24
      $region23: #{language_model_forward.12} parent=15 // pred_region
        %p174 = scmp.lt.s32.totalorder %s16, 1
        %s175 = scalar_select %p174, %s16, 1
        %p176 = scmp.lt.s32.totalorder %s18, 0
        %s177 = scalar_select %p176, %s18, 0
        %s178 = smul.addr %s177, 3
        %s179 = smul.addr %s175, 3
        %s180 = sadd.s32 %s178, %s179
        %s181 = smul.addr %s180, 4
        %s182 = scalar_lea.vmem %s1, %s181
      $region24: #{language_model_forward.12} parent=15 // pred_fallthru
        _
      // Predicated region
      $region25: #{language_model_forward.12} parent=15 // pred_check
        %p183 = pneg %p106
      $region26: #{language_model_forward.12} parent=15 // pred_check_branch
        %185 = sbr.rel (%p183) target = $region28
      $region27: #{language_model_forward.12} parent=15 // pred_region
        %p186 = scmp.lt.s32.totalorder %s16, 1
        %s187 = scalar_select %p186, %s16, 1
        %p188 = scmp.lt.s32.totalorder %s18, 0
        %s189 = scalar_select %p188, %s18, 0
        %s190 = sadd.s32 %s189, %s187
        %s191 = scalar_lea.vmem %s2, %s190
      $region28: #{language_model_forward.12} parent=15 // pred_fallthru
        _
    $region16: #{language_model_forward.12} parent=5 // pred_fallthru
      _
    %p192 = scmp.le.s32.totalorder 1, %s9
    %p193 = scmp.lt.s32.totalorder %s9, 3
    %p194 = pnand %p192, %p193
    %p195 = pneg %p194
    // Predicated region
    $region29: #{language_model_forward.12} parent=5 // pred_check
      _
    $region30: #{language_model_forward.12} parent=5 // pred_check_branch
      %197 = sbr.rel (%p194) target = $region32
    $region31: #{language_model_forward.12} parent=5 // pred_region
      %s198 = ssub.s32 %s9, 1
      %p199 = scmp.lt.s32.totalorder %s19, 1
      %s200 = scalar_select %p199, %s19, 1
      %p201 = scmp.lt.s32.totalorder %s20, 0
      %s202 = scalar_select %p201, %s20, 0
      %s203 = smul.addr %s202, 3
      %s204 = smul.addr %s200, 3
      %s205 = sadd.s32 %s203, %s204
      %s206 = smul.addr %s205, 4
      %s207 = scalar_lea.vmem %s0, %s206
      %p208 = pneg %p56
      %p209 = pneg %p53
      %p210 = scmp.lt.s32.totalorder %s19, 1
      %s211 = scalar_select %p210, %s19, 1
      %p212 = scmp.lt.s32.totalorder %s21, 0
      %s213 = scalar_select %p212, %s21, 0
      %s214 = smul.addr %s213, 3
      %s215 = smul.addr %s211, 3
      %s216 = sadd.s32 %s214, %s215
      %s217 = smul.addr %s216, 4
      %s218 = scalar_lea.vmem %s1, %s217
      %p219 = pneg %p84
      %p220 = pneg %p81
      %p221 = scmp.lt.s32.totalorder %s19, 1
      %s222 = scalar_select %p221, %s19, 1
      %p223 = scmp.lt.s32.totalorder %s21, 0
      %s224 = scalar_select %p223, %s21, 0
      %s225 = sadd.s32 %s224, %s222
      %s226 = scalar_lea.vmem %s2, %s225
      %p227 = pneg %p112
      %p228 = pneg %p109
      %p229 = pneg %p140
      %p230 = pneg %p137
      %p231 = scmp.lt.s32.totalorder %s19, 1
      %s232 = scalar_select %p231, %s19, 1
      %p233 = scmp.lt.s32.totalorder %s20, 0
      %s234 = scalar_select %p233, %s20, 0
      %s235 = sadd.s32 %s234, %s232
      %s236 = smul.addr %s235, 4
      %s237 = scalar_lea.vmem %s3, %s236
      %p238 = scmp.lt.s32.totalorder %s19, 1
      %s239 = scalar_select %p238, %s19, 1
      %p240 = scmp.lt.s32.totalorder %s20, 0
      %s241 = scalar_select %p240, %s20, 0
      %s242 = smul.addr %s241, 3
      %s243 = smul.addr %s239, 3
      %s244 = sadd.s32 %s242, %s243
      %s245 = smul.addr %s244, 4
      %s246 = scalar_lea.vmem %s0, %s245
      %p247 = scmp.lt.s32.totalorder %s19, 1
      %s248 = scalar_select %p247, %s19, 1
      %p249 = scmp.lt.s32.totalorder %s21, 0
      %s250 = scalar_select %p249, %s21, 0
      %s251 = smul.addr %s250, 3
      %s252 = smul.addr %s248, 3
      %s253 = sadd.s32 %s251, %s252
      %s254 = smul.addr %s253, 4
      %s255 = scalar_lea.vmem %s1, %s254
      %p256 = scmp.lt.s32.totalorder %s19, 1
      %s257 = scalar_select %p256, %s19, 1
      %p258 = scmp.lt.s32.totalorder %s21, 0
      %s259 = scalar_select %p258, %s21, 0
      %s260 = sadd.s32 %s259, %s257
      %s261 = scalar_lea.vmem %s2, %s260
      %p262 = scmp.lt.s32.totalorder %s19, 1
      %s263 = scalar_select %p262, %s19, 1
      %p264 = scmp.lt.s32.totalorder %s20, 0
      %s265 = scalar_select %p264, %s20, 0
      %s266 = sadd.s32 %s265, %s263
      %s267 = smul.addr %s266, 4
      %s268 = scalar_lea.vmem %s3, %s267
      %p270 = scmp.eq.s32.totalorder %s21, 0
      // Predicated region
      $region33: #{language_model_forward.12} parent=31 // pred_check
        %p271 = pneg %p270
      $region34: #{language_model_forward.12} parent=31 // pred_check_branch
        %273 = sbr.rel (%p271) target = $region36
      $region35: #{language_model_forward.12} parent=31 // pred_region
        %vm274 = vcmask 7168
        %275 = vst.msk [vmem:[#allocation2] sm:$0xff] %vm274, -1e+30
        %276 = vst.msk [vmem:[#allocation2 + $0x8] sm:$0xff] %vm274, -1e+30
        %277 = vst.msk [vmem:[#allocation2 + $0x10] sm:$0xff] %vm274, -1e+30
        %278 = vst.msk [vmem:[#allocation2 + $0x18] sm:$0xff] %vm274, -1e+30
        %279 = vst.msk [vmem:[#allocation3] sm:$0xff] %vm274, 0.0
        %280 = vst.msk [vmem:[#allocation3 + $0x8] sm:$0xff] %vm274, 0.0
        %281 = vst.msk [vmem:[#allocation3 + $0x10] sm:$0xff] %vm274, 0.0
        %282 = vst.msk [vmem:[#allocation3 + $0x18] sm:$0xff] %vm274, 0.0
        %vm283 = vcmask 261120
        %284 = vst.msk [vmem:[#allocation4] sm:$0xff] %vm283, 0.0
        %285 = vst.msk [vmem:[#allocation4 + $0x8] sm:$0xff] %vm283, 0.0
        %286 = vst.msk [vmem:[#allocation4 + $0x10] sm:$0xff] %vm283, 0.0
        %287 = vst.msk [vmem:[#allocation4 + $0x18] sm:$0xff] %vm283, 0.0
      $region36: #{language_model_forward.12} parent=31 // pred_fallthru
        _
      %s288 = smul.u32 %s20, 8
      %s289 = smul.u32 %s21, 8
      %s290 = sadd.s32 %s288, 7
      %p291 = scmp.le.s32.totalorder %s289, %s290
      // Predicated region
      $region37: #{language_model_forward.12} parent=31 // pred_check
        %p292 = pneg %p291
      $region38: #{language_model_forward.12} parent=31 // pred_check_branch
        %294 = sbr.rel (%p292) target = $region40
      $region39: #{language_model_forward.12} parent=31 // pred_region
        %v295 = vlaneseq
        %v296 = vshrl.u32 %v295, 7
        %v297 = vstv %s288
        %v298 = vadd.s32 %v297, %v296
        %v299 = vlaneseq
        %v300 = vand.u32 %v299, 127
        %v301 = vstv %s289
        %v302 = vadd.s32 %v301, %v300
        %vm303 = vcmp.ge.s32.totalorder %v298, %v302
        %v304 = vld [vmem:[%s261] sm:$0x1]
        %vm305 = vcmp.gt.f32.partialorder %v304, 0.5
        %v306 = vsel %vm305, 1, 0
        %v307 = vlaneseq
        %v308 = vshrl.u32 %v307, 7
        %v309 = vsub.s32 0, %v308
        %v310 = vrot.slane %v306, %v309
        %vm311 = vcmp.eq.s32.totalorder %v310, 1
        %vm312 = vmand %vm303, %vm311
        %v313 = vld [vmem:[%s246] sm:$0xff]
        %v314 = vld [vmem:[%s255] sm:$0xff]
        %v315 = vld [vmem:[%s255 + $0x8] sm:$0xf]
        %v316 = vunpack.c.l.bf16 %v313
        %v317 = vmul.f32 %v316, 0.17677669
        %v318 = vpack.c.bf16 %v317, %v317
        %v320 = vunpack.c.h.b16 %v314
        %v321 = vpack.c.b16 %v320, %v320
        %vm322 = vcmask 261120
        %v324 = vsel %vm322, %v318, 0
        %v327 = vsel %vm322, %v321, 0
        %329 = vmatprep.subr.bf16.mxu0 0
        %330 = vmatpush1.bf16.xpose.msra.mxu0 %v327
        %331 = vmatprep.subr.bf16.mxu0 0
        %332 = vmatpush1.bf16.xpose.msra.mxu0 0
        %333 = vmatprep.subr.bf16.mxu0 0
        %334 = vmatpush1.bf16.xpose.msra.mxu0 0
        %335 = vmatprep.subr.bf16.mxu0 0
        %336 = vmatpush1.bf16.xpose.msra.mxu0 0
        %337 = vmatprep.subr.bf16.mxu0 0
        %338 = vmatpush1.bf16.xpose.msra.mxu0 0
        %339 = vmatprep.subr.bf16.mxu0 0
        %340 = vmatpush1.bf16.xpose.msra.mxu0 0
        %341 = vmatprep.subr.bf16.mxu0 0
        %342 = vmatpush1.bf16.xpose.msra.mxu0 0
        %343 = vmatprep.subr.bf16.mxu0 0
        %344 = vmatpush1.bf16.xpose.msra.mxu0 0
        %345 = vmatprep.subr.bf16.mxu0 0
        %346 = vmatpush1.bf16.xpose.msra.mxu0 0
        %347 = vmatprep.subr.bf16.mxu0 0
        %348 = vmatpush1.bf16.xpose.msra.mxu0 0
        %349 = vmatprep.subr.bf16.mxu0 0
        %350 = vmatpush1.bf16.xpose.msra.mxu0 0
        %351 = vmatprep.subr.bf16.mxu0 0
        %352 = vmatpush1.bf16.xpose.msra.mxu0 0
        %353 = vmatprep.subr.bf16.mxu0 0
        %354 = vmatpush1.bf16.xpose.msra.mxu0 0
        %355 = vmatprep.subr.bf16.mxu0 0
        %356 = vmatpush1.bf16.xpose.msra.mxu0 0
        %357 = vmatprep.subr.bf16.mxu0 0
        %358 = vmatpush1.bf16.xpose.msra.mxu0 0
        %359 = vmatprep.subr.bf16.mxu0 0
        %360 = vmatpush1.bf16.xpose.msra.mxu0 0
        %361 = vmatprep.mubr.bf16.mxu0 0
        %362 = vmatmul.mubr.bf16.gmra.mrb[0].mxu0 %v324
        %v363 = vpop.f32.mrb[0].mxu0
        %v364 = vadd.f32 0.0, %v363
        %v365 = vpop.f32.mrb[0].mxu0
        %v366 = vpop.f32.mrb[0].mxu0
        %v367 = vpop.f32.mrb[0].mxu0
        %368 = vdwg.mxu0
        %v369 = vsel %vm312, %v364, -1e+30
        %v370 = vld [vmem:[#allocation2] sm:$0xff]
        %vm371 = vcmask 64512
        %v372 = vsel %vm371, %v369, -inf
        %373 = vmax.xlane.f32.xlu0 %v372
        %v374 = vpop.xlane.xlu0 %373
        %v375 = vmax.f32 %v370, %v374
        %v376 = vsub.f32 %v370, %v375
        %v377 = vmul.f32 %v376, 1.442695
        %v378 = vpow.pop %v377
        %380 = vset.pattern.permute.xlu0 0
        %381 = vperm.xlu0 %380, %v375
        %v382 = vpop.permute.xlu0 %381
        %v384 = vsub.f32 %v369, %v382
        %v385 = vmul.f32 %v384, 1.442695
        %v386 = vpow.pop %v385
        %v387 = vld [vmem:[#allocation3] sm:$0xff]
        %v388 = vmul.f32 %v378, %v387
        %v389 = vsel %vm371, %v386, 0.0
        %390 = vadd.xlane.f32.xlu0 %v389
        %v391 = vpop.xlane.xlu0 %390
        %v392 = vadd.f32 %v388, %v391
        %vm393 = vcmask 7168
        %394 = vst.msk [vmem:[#allocation3] sm:$0xff] %vm393, %v392
        %v395 = vld [vmem:[#allocation4] sm:$0xff]
        %397 = vset.pattern.permute.xlu0 0
        %398 = vperm.xlu0 %397, %v378
        %v399 = vpop.permute.xlu0 %398
        %v401 = vmul.f32 %v399, %v395
        %v402 = vpack.c.bf16 %v386, %v386
        %v404 = vsel %vm371, %v402, 0
        %vm406 = vcmask 1043456
        %v408 = vsel %vm406, %v315, 0
        %410 = vmatprep.subr.bf16.mxu0 0
        %411 = vmatpush1.bf16.msra.mxu0 %v408
        %412 = vmatprep.subr.bf16.mxu0 0
        %413 = vmatpush1.bf16.msra.mxu0 0
        %414 = vmatprep.subr.bf16.mxu0 0
        %415 = vmatpush1.bf16.msra.mxu0 0
        %416 = vmatprep.subr.bf16.mxu0 0
        %417 = vmatpush1.bf16.msra.mxu0 0
        %418 = vmatprep.subr.bf16.mxu0 0
        %419 = vmatpush1.bf16.msra.mxu0 0
        %420 = vmatprep.subr.bf16.mxu0 0
        %421 = vmatpush1.bf16.msra.mxu0 0
        %422 = vmatprep.subr.bf16.mxu0 0
        %423 = vmatpush1.bf16.msra.mxu0 0
        %424 = vmatprep.subr.bf16.mxu0 0
        %425 = vmatpush1.bf16.msra.mxu0 0
        %426 = vmatprep.subr.bf16.mxu0 0
        %427 = vmatpush1.bf16.msra.mxu0 0
        %428 = vmatprep.subr.bf16.mxu0 0
        %429 = vmatpush1.bf16.msra.mxu0 0
        %430 = vmatprep.subr.bf16.mxu0 0
        %431 = vmatpush1.bf16.msra.mxu0 0
        %432 = vmatprep.subr.bf16.mxu0 0
        %433 = vmatpush1.bf16.msra.mxu0 0
        %434 = vmatprep.subr.bf16.mxu0 0
        %435 = vmatpush1.bf16.msra.mxu0 0
        %436 = vmatprep.subr.bf16.mxu0 0
        %437 = vmatpush1.bf16.msra.mxu0 0
        %438 = vmatprep.subr.bf16.mxu0 0
        %439 = vmatpush1.bf16.msra.mxu0 0
        %440 = vmatprep.subr.bf16.mxu0 0
        %441 = vmatpush1.bf16.msra.mxu0 0
        %442 = vmatprep.mubr.bf16.mxu0 0
        %443 = vmatmul.mubr.bf16.gmra.mrb[0].mxu0 %v404
        %v444 = vpop.f32.mrb[0].mxu0
        %v445 = vadd.f32 0.0, %v444
        %v446 = vpop.f32.mrb[0].mxu0
        %v447 = vpop.f32.mrb[0].mxu0
        %v448 = vpop.f32.mrb[0].mxu0
        %449 = vdwg.mxu0
        %v450 = vadd.f32 %v401, %v445
        %451 = vst.msk [vmem:[#allocation4] sm:$0xff] %vm322, %v450
        %452 = vst.msk [vmem:[#allocation2] sm:$0xff] %vm393, %v375
        %454 = vrot.lane.b32.xlu0 %v318, 96
        %v455 = vpop.permute.xlu0 %454
        %456 = vrot.lane.b32.xlu0 %v321, 96
        %v457 = vpop.permute.xlu0 %456
        %v459 = vsel %vm322, %v455, 0
        %v462 = vsel %vm322, %v457, 0
        %464 = vmatprep.subr.bf16.mxu0 0
        %465 = vmatpush1.bf16.xpose.msra.mxu0 %v462
        %466 = vmatprep.subr.bf16.mxu0 0
        %467 = vmatpush1.bf16.xpose.msra.mxu0 0
        %468 = vmatprep.subr.bf16.mxu0 0
        %469 = vmatpush1.bf16.xpose.msra.mxu0 0
        %470 = vmatprep.subr.bf16.mxu0 0
        %471 = vmatpush1.bf16.xpose.msra.mxu0 0
        %472 = vmatprep.subr.bf16.mxu0 0
        %473 = vmatpush1.bf16.xpose.msra.mxu0 0
        %474 = vmatprep.subr.bf16.mxu0 0
        %475 = vmatpush1.bf16.xpose.msra.mxu0 0
        %476 = vmatprep.subr.bf16.mxu0 0
        %477 = vmatpush1.bf16.xpose.msra.mxu0 0
        %478 = vmatprep.subr.bf16.mxu0 0
        %479 = vmatpush1.bf16.xpose.msra.mxu0 0
        %480 = vmatprep.subr.bf16.mxu0 0
        %481 = vmatpush1.bf16.xpose.msra.mxu0 0
        %482 = vmatprep.subr.bf16.mxu0 0
        %483 = vmatpush1.bf16.xpose.msra.mxu0 0
        %484 = vmatprep.subr.bf16.mxu0 0
        %485 = vmatpush1.bf16.xpose.msra.mxu0 0
        %486 = vmatprep.subr.bf16.mxu0 0
        %487 = vmatpush1.bf16.xpose.msra.mxu0 0
        %488 = vmatprep.subr.bf16.mxu0 0
        %489 = vmatpush1.bf16.xpose.msra.mxu0 0
        %490 = vmatprep.subr.bf16.mxu0 0
        %491 = vmatpush1.bf16.xpose.msra.mxu0 0
        %492 = vmatprep.subr.bf16.mxu0 0
        %493 = vmatpush1.bf16.xpose.msra.mxu0 0
        %494 = vmatprep.subr.bf16.mxu0 0
        %495 = vmatpush1.bf16.xpose.msra.mxu0 0
        %496 = vmatprep.mubr.bf16.mxu0 0
        %497 = vmatmul.mubr.bf16.gmra.mrb[0].mxu0 %v459
        %v498 = vpop.f32.mrb[0].mxu0
        %v499 = vadd.f32 0.0, %v498
        %v500 = vpop.f32.mrb[0].mxu0
        %v501 = vpop.f32.mrb[0].mxu0
        %v502 = vpop.f32.mrb[0].mxu0
        %503 = vdwg.mxu0
        %v504 = vsel %vm312, %v499, -1e+30
        %s505 = scalar_lea.vmem [#allocation2], 8
        %v506 = vld [vmem:[%s505] sm:$0xff]
        %v507 = vsel %vm371, %v504, -inf
        %508 = vmax.xlane.f32.xlu0 %v507
        %v509 = vpop.xlane.xlu0 %508
        %v510 = vmax.f32 %v506, %v509
        %v511 = vsub.f32 %v506, %v510
        %v512 = vmul.f32 %v511, 1.442695
        %v513 = vpow.pop %v512
        %515 = vset.pattern.permute.xlu0 0
        %516 = vperm.xlu0 %515, %v510
        %v517 = vpop.permute.xlu0 %516
        %v519 = vsub.f32 %v504, %v517
        %v520 = vmul.f32 %v519, 1.442695
        %v521 = vpow.pop %v520
        %s522 = scalar_lea.vmem [#allocation3], 8
        %v523 = vld [vmem:[%s522] sm:$0xff]
        %v524 = vmul.f32 %v513, %v523
        %v525 = vsel %vm371, %v521, 0.0
        %526 = vadd.xlane.f32.xlu0 %v525
        %v527 = vpop.xlane.xlu0 %526
        %v528 = vadd.f32 %v524, %v527
        %529 = vst.msk [vmem:[%s522] sm:$0xff] %vm393, %v528
        %s530 = scalar_lea.vmem [#allocation4], 8
        %v531 = vld [vmem:[%s530] sm:$0xff]
        %533 = vset.pattern.permute.xlu0 0
        %534 = vperm.xlu0 %533, %v513
        %v535 = vpop.permute.xlu0 %534
        %v537 = vmul.f32 %v535, %v531
        %v538 = vpack.c.bf16 %v521, %v521
        %v540 = vunpack.c.l.b16 %v315
        %v541 = vpack.c.b16 %v540, %v540
        %542 = vrot.lane.b32.xlu0 %v541, 96
        %v543 = vpop.permute.xlu0 %542
        %v545 = vsel %vm371, %v538, 0
        %v548 = vsel %vm406, %v543, 0
        %550 = vmatprep.subr.bf16.mxu0 0
        %551 = vmatpush1.bf16.msra.mxu0 %v548
        %552 = vmatprep.subr.bf16.mxu0 0
        %553 = vmatpush1.bf16.msra.mxu0 0
        %554 = vmatprep.subr.bf16.mxu0 0
        %555 = vmatpush1.bf16.msra.mxu0 0
        %556 = vmatprep.subr.bf16.mxu0 0
        %557 = vmatpush1.bf16.msra.mxu0 0
        %558 = vmatprep.subr.bf16.mxu0 0
        %559 = vmatpush1.bf16.msra.mxu0 0
        %560 = vmatprep.subr.bf16.mxu0 0
        %561 = vmatpush1.bf16.msra.mxu0 0
        %562 = vmatprep.subr.bf16.mxu0 0
        %563 = vmatpush1.bf16.msra.mxu0 0
        %564 = vmatprep.subr.bf16.mxu0 0
        %565 = vmatpush1.bf16.msra.mxu0 0
        %566 = vmatprep.subr.bf16.mxu0 0
        %567 = vmatpush1.bf16.msra.mxu0 0
        %568 = vmatprep.subr.bf16.mxu0 0
        %569 = vmatpush1.bf16.msra.mxu0 0
        %570 = vmatprep.subr.bf16.mxu0 0
        %571 = vmatpush1.bf16.msra.mxu0 0
        %572 = vmatprep.subr.bf16.mxu0 0
        %573 = vmatpush1.bf16.msra.mxu0 0
        %574 = vmatprep.subr.bf16.mxu0 0
        %575 = vmatpush1.bf16.msra.mxu0 0
        %576 = vmatprep.subr.bf16.mxu0 0
        %577 = vmatpush1.bf16.msra.mxu0 0
        %578 = vmatprep.subr.bf16.mxu0 0
        %579 = vmatpush1.bf16.msra.mxu0 0
        %580 = vmatprep.subr.bf16.mxu0 0
        %581 = vmatpush1.bf16.msra.mxu0 0
        %582 = vmatprep.mubr.bf16.mxu0 0
        %583 = vmatmul.mubr.bf16.gmra.mrb[0].mxu0 %v545
        %v584 = vpop.f32.mrb[0].mxu0
        %v585 = vadd.f32 0.0, %v584
        %v586 = vpop.f32.mrb[0].mxu0
        %v587 = vpop.f32.mrb[0].mxu0
        %v588 = vpop.f32.mrb[0].mxu0
        %589 = vdwg.mxu0
        %v590 = vadd.f32 %v537, %v585
        %591 = vst.msk [vmem:[%s530] sm:$0xff] %vm322, %v590
        %592 = vst.msk [vmem:[%s505] sm:$0xff] %vm393, %v510
        %593 = vrot.lane.b32.xlu0 %v318, 64
        %v594 = vpop.permute.xlu0 %593
        %595 = vrot.lane.b32.xlu0 %v321, 64
        %v596 = vpop.permute.xlu0 %595
        %v598 = vsel %vm322, %v594, 0
        %v601 = vsel %vm322, %v596, 0
        %603 = vmatprep.subr.bf16.mxu0 0
        %604 = vmatpush1.bf16.xpose.msra.mxu0 %v601
        %605 = vmatprep.subr.bf16.mxu0 0
        %606 = vmatpush1.bf16.xpose.msra.mxu0 0
        %607 = vmatprep.subr.bf16.mxu0 0
        %608 = vmatpush1.bf16.xpose.msra.mxu0 0
        %609 = vmatprep.subr.bf16.mxu0 0
        %610 = vmatpush1.bf16.xpose.msra.mxu0 0
        %611 = vmatprep.subr.bf16.mxu0 0
        %612 = vmatpush1.bf16.xpose.msra.mxu0 0
        %613 = vmatprep.subr.bf16.mxu0 0
        %614 = vmatpush1.bf16.xpose.msra.mxu0 0
        %615 = vmatprep.subr.bf16.mxu0 0
        %616 = vmatpush1.bf16.xpose.msra.mxu0 0
        %617 = vmatprep.subr.bf16.mxu0 0
        %618 = vmatpush1.bf16.xpose.msra.mxu0 0
        %619 = vmatprep.subr.bf16.mxu0 0
        %620 = vmatpush1.bf16.xpose.msra.mxu0 0
        %621 = vmatprep.subr.bf16.mxu0 0
        %622 = vmatpush1.bf16.xpose.msra.mxu0 0
        %623 = vmatprep.subr.bf16.mxu0 0
        %624 = vmatpush1.bf16.xpose.msra.mxu0 0
        %625 = vmatprep.subr.bf16.mxu0 0
        %626 = vmatpush1.bf16.xpose.msra.mxu0 0
        %627 = vmatprep.subr.bf16.mxu0 0
        %628 = vmatpush1.bf16.xpose.msra.mxu0 0
        %629 = vmatprep.subr.bf16.mxu0 0
        %630 = vmatpush1.bf16.xpose.msra.mxu0 0
        %631 = vmatprep.subr.bf16.mxu0 0
        %632 = vmatpush1.bf16.xpose.msra.mxu0 0
        %633 = vmatprep.subr.bf16.mxu0 0
        %634 = vmatpush1.bf16.xpose.msra.mxu0 0
        %635 = vmatprep.mubr.bf16.mxu0 0
        %636 = vmatmul.mubr.bf16.gmra.mrb[0].mxu0 %v598
        %v637 = vpop.f32.mrb[0].mxu0
        %v638 = vadd.f32 0.0, %v637
        %v639 = vpop.f32.mrb[0].mxu0
        %v640 = vpop.f32.mrb[0].mxu0
        %v641 = vpop.f32.mrb[0].mxu0
        %642 = vdwg.mxu0
        %v643 = vsel %vm312, %v638, -1e+30
        %s644 = scalar_lea.vmem [#allocation2], 16
        %v645 = vld [vmem:[%s644] sm:$0xff]
        %v646 = vsel %vm371, %v643, -inf
        %647 = vmax.xlane.f32.xlu0 %v646
        %v648 = vpop.xlane.xlu0 %647
        %v649 = vmax.f32 %v645, %v648
        %v650 = vsub.f32 %v645, %v649
        %v651 = vmul.f32 %v650, 1.442695
        %v652 = vpow.pop %v651
        %654 = vset.pattern.permute.xlu0 0
        %655 = vperm.xlu0 %654, %v649
        %v656 = vpop.permute.xlu0 %655
        %v658 = vsub.f32 %v643, %v656
        %v659 = vmul.f32 %v658, 1.442695
        %v660 = vpow.pop %v659
        %s661 = scalar_lea.vmem [#allocation3], 16
        %v662 = vld [vmem:[%s661] sm:$0xff]
        %v663 = vmul.f32 %v652, %v662
        %v664 = vsel %vm371, %v660, 0.0
        %665 = vadd.xlane.f32.xlu0 %v664
        %v666 = vpop.xlane.xlu0 %665
        %v667 = vadd.f32 %v663, %v666
        %668 = vst.msk [vmem:[%s661] sm:$0xff] %vm393, %v667
        %s669 = scalar_lea.vmem [#allocation4], 16
        %v670 = vld [vmem:[%s669] sm:$0xff]
        %672 = vset.pattern.permute.xlu0 0
        %673 = vperm.xlu0 %672, %v652
        %v674 = vpop.permute.xlu0 %673
        %v676 = vmul.f32 %v674, %v670
        %v677 = vpack.c.bf16 %v660, %v660
        %678 = vrot.lane.b32.xlu0 %v541, 64
        %v679 = vpop.permute.xlu0 %678
        %v681 = vsel %vm371, %v677, 0
        %v684 = vsel %vm406, %v679, 0
        %686 = vmatprep.subr.bf16.mxu0 0
        %687 = vmatpush1.bf16.msra.mxu0 %v684
        %688 = vmatprep.subr.bf16.mxu0 0
        %689 = vmatpush1.bf16.msra.mxu0 0
        %690 = vmatprep.subr.bf16.mxu0 0
        %691 = vmatpush1.bf16.msra.mxu0 0
        %692 = vmatprep.subr.bf16.mxu0 0
        %693 = vmatpush1.bf16.msra.mxu0 0
        %694 = vmatprep.subr.bf16.mxu0 0
        %695 = vmatpush1.bf16.msra.mxu0 0
        %696 = vmatprep.subr.bf16.mxu0 0
        %697 = vmatpush1.bf16.msra.mxu0 0
        %698 = vmatprep.subr.bf16.mxu0 0
        %699 = vmatpush1.bf16.msra.mxu0 0
        %700 = vmatprep.subr.bf16.mxu0 0
        %701 = vmatpush1.bf16.msra.mxu0 0
        %702 = vmatprep.subr.bf16.mxu0 0
        %703 = vmatpush1.bf16.msra.mxu0 0
        %704 = vmatprep.subr.bf16.mxu0 0
        %705 = vmatpush1.bf16.msra.mxu0 0
        %706 = vmatprep.subr.bf16.mxu0 0
        %707 = vmatpush1.bf16.msra.mxu0 0
        %708 = vmatprep.subr.bf16.mxu0 0
        %709 = vmatpush1.bf16.msra.mxu0 0
        %710 = vmatprep.subr.bf16.mxu0 0
        %711 = vmatpush1.bf16.msra.mxu0 0
        %712 = vmatprep.subr.bf16.mxu0 0
        %713 = vmatpush1.bf16.msra.mxu0 0
        %714 = vmatprep.subr.bf16.mxu0 0
        %715 = vmatpush1.bf16.msra.mxu0 0
        %716 = vmatprep.subr.bf16.mxu0 0
        %717 = vmatpush1.bf16.msra.mxu0 0
        %718 = vmatprep.mubr.bf16.mxu0 0
        %719 = vmatmul.mubr.bf16.gmra.mrb[0].mxu0 %v681
        %v720 = vpop.f32.mrb[0].mxu0
        %v721 = vadd.f32 0.0, %v720
        %v722 = vpop.f32.mrb[0].mxu0
        %v723 = vpop.f32.mrb[0].mxu0
        %v724 = vpop.f32.mrb[0].mxu0
        %725 = vdwg.mxu0
        %v726 = vadd.f32 %v676, %v721
        %727 = vst.msk [vmem:[%s669] sm:$0xff] %vm322, %v726
        %728 = vst.msk [vmem:[%s644] sm:$0xff] %vm393, %v649
        %729 = vrot.lane.b32.xlu0 %v318, 32
        %v730 = vpop.permute.xlu0 %729
        %731 = vrot.lane.b32.xlu0 %v321, 32
        %v732 = vpop.permute.xlu0 %731
        %v734 = vsel %vm322, %v730, 0
        %v737 = vsel %vm322, %v732, 0
        %739 = vmatprep.subr.bf16.mxu0 0
        %740 = vmatpush1.bf16.xpose.msra.mxu0 %v737
        %741 = vmatprep.subr.bf16.mxu0 0
        %742 = vmatpush1.bf16.xpose.msra.mxu0 0
        %743 = vmatprep.subr.bf16.mxu0 0
        %744 = vmatpush1.bf16.xpose.msra.mxu0 0
        %745 = vmatprep.subr.bf16.mxu0 0
        %746 = vmatpush1.bf16.xpose.msra.mxu0 0
        %747 = vmatprep.subr.bf16.mxu0 0
        %748 = vmatpush1.bf16.xpose.msra.mxu0 0
        %749 = vmatprep.subr.bf16.mxu0 0
        %750 = vmatpush1.bf16.xpose.msra.mxu0 0
        %751 = vmatprep.subr.bf16.mxu0 0
        %752 = vmatpush1.bf16.xpose.msra.mxu0 0
        %753 = vmatprep.subr.bf16.mxu0 0
        %754 = vmatpush1.bf16.xpose.msra.mxu0 0
        %755 = vmatprep.subr.bf16.mxu0 0
        %756 = vmatpush1.bf16.xpose.msra.mxu0 0
        %757 = vmatprep.subr.bf16.mxu0 0
        %758 = vmatpush1.bf16.xpose.msra.mxu0 0
        %759 = vmatprep.subr.bf16.mxu0 0
        %760 = vmatpush1.bf16.xpose.msra.mxu0 0
        %761 = vmatprep.subr.bf16.mxu0 0
        %762 = vmatpush1.bf16.xpose.msra.mxu0 0
        %763 = vmatprep.subr.bf16.mxu0 0
        %764 = vmatpush1.bf16.xpose.msra.mxu0 0
        %765 = vmatprep.subr.bf16.mxu0 0
        %766 = vmatpush1.bf16.xpose.msra.mxu0 0
        %767 = vmatprep.subr.bf16.mxu0 0
        %768 = vmatpush1.bf16.xpose.msra.mxu0 0
        %769 = vmatprep.subr.bf16.mxu0 0
        %770 = vmatpush1.bf16.xpose.msra.mxu0 0
        %771 = vmatprep.mubr.bf16.mxu0 0
        %772 = vmatmul.mubr.bf16.gmra.mrb[0].mxu0 %v734
        %v773 = vpop.f32.mrb[0].mxu0
        %v774 = vadd.f32 0.0, %v773
        %v775 = vpop.f32.mrb[0].mxu0
        %v776 = vpop.f32.mrb[0].mxu0
        %v777 = vpop.f32.mrb[0].mxu0
        %778 = vdwg.mxu0
        %v779 = vsel %vm312, %v774, -1e+30
        %s780 = scalar_lea.vmem [#allocation2], 24
        %v781 = vld [vmem:[%s780] sm:$0xff]
        %v782 = vsel %vm371, %v779, -inf
        %783 = vmax.xlane.f32.xlu0 %v782
        %v784 = vpop.xlane.xlu0 %783
        %v785 = vmax.f32 %v781, %v784
        %v786 = vsub.f32 %v781, %v785
        %v787 = vmul.f32 %v786, 1.442695
        %v788 = vpow.pop %v787
        %790 = vset.pattern.permute.xlu0 0
        %791 = vperm.xlu0 %790, %v785
        %v792 = vpop.permute.xlu0 %791
        %v794 = vsub.f32 %v779, %v792
        %v795 = vmul.f32 %v794, 1.442695
        %v796 = vpow.pop %v795
        %s797 = scalar_lea.vmem [#allocation3], 24
        %v798 = vld [vmem:[%s797] sm:$0xff]
        %v799 = vmul.f32 %v788, %v798
        %v800 = vsel %vm371, %v796, 0.0
        %801 = vadd.xlane.f32.xlu0 %v800
        %v802 = vpop.xlane.xlu0 %801
        %v803 = vadd.f32 %v799, %v802
        %804 = vst.msk [vmem:[%s797] sm:$0xff] %vm393, %v803
        %s805 = scalar_lea.vmem [#allocation4], 24
        %v806 = vld [vmem:[%s805] sm:$0xff]
        %808 = vset.pattern.permute.xlu0 0
        %809 = vperm.xlu0 %808, %v788
        %v810 = vpop.permute.xlu0 %809
        %v812 = vmul.f32 %v810, %v806
        %v813 = vpack.c.bf16 %v796, %v796
        %814 = vrot.lane.b32.xlu0 %v541, 32
        %v815 = vpop.permute.xlu0 %814
        %v817 = vsel %vm371, %v813, 0
        %v820 = vsel %vm406, %v815, 0
        %822 = vmatprep.subr.bf16.mxu0 0
        %823 = vmatpush1.bf16.msra.mxu0 %v820
        %824 = vmatprep.subr.bf16.mxu0 0
        %825 = vmatpush1.bf16.msra.mxu0 0
        %826 = vmatprep.subr.bf16.mxu0 0
        %827 = vmatpush1.bf16.msra.mxu0 0
        %828 = vmatprep.subr.bf16.mxu0 0
        %829 = vmatpush1.bf16.msra.mxu0 0
        %830 = vmatprep.subr.bf16.mxu0 0
        %831 = vmatpush1.bf16.msra.mxu0 0
        %832 = vmatprep.subr.bf16.mxu0 0
        %833 = vmatpush1.bf16.msra.mxu0 0
        %834 = vmatprep.subr.bf16.mxu0 0
        %835 = vmatpush1.bf16.msra.mxu0 0
        %836 = vmatprep.subr.bf16.mxu0 0
        %837 = vmatpush1.bf16.msra.mxu0 0
        %838 = vmatprep.subr.bf16.mxu0 0
        %839 = vmatpush1.bf16.msra.mxu0 0
        %840 = vmatprep.subr.bf16.mxu0 0
        %841 = vmatpush1.bf16.msra.mxu0 0
        %842 = vmatprep.subr.bf16.mxu0 0
        %843 = vmatpush1.bf16.msra.mxu0 0
        %844 = vmatprep.subr.bf16.mxu0 0
        %845 = vmatpush1.bf16.msra.mxu0 0
        %846 = vmatprep.subr.bf16.mxu0 0
        %847 = vmatpush1.bf16.msra.mxu0 0
        %848 = vmatprep.subr.bf16.mxu0 0
        %849 = vmatpush1.bf16.msra.mxu0 0
        %850 = vmatprep.subr.bf16.mxu0 0
        %851 = vmatpush1.bf16.msra.mxu0 0
        %852 = vmatprep.subr.bf16.mxu0 0
        %853 = vmatpush1.bf16.msra.mxu0 0
        %854 = vmatprep.mubr.bf16.mxu0 0
        %855 = vmatmul.mubr.bf16.gmra.mrb[0].mxu0 %v817
        %v856 = vpop.f32.mrb[0].mxu0
        %v857 = vadd.f32 0.0, %v856
        %v858 = vpop.f32.mrb[0].mxu0
        %v859 = vpop.f32.mrb[0].mxu0
        %v860 = vpop.f32.mrb[0].mxu0
        %861 = vdwg.mxu0
        %v862 = vadd.f32 %v812, %v857
        %863 = vst.msk [vmem:[%s805] sm:$0xff] %vm322, %v862
        %864 = vst.msk [vmem:[%s780] sm:$0xff] %vm393, %v785
      $region40: #{language_model_forward.12} parent=31 // pred_fallthru
        _
      // Predicated region
      $region41: #{language_model_forward.12} parent=31 // pred_check
        %p865 = pneg %p270
      $region42: #{language_model_forward.12} parent=31 // pred_check_branch
        %867 = sbr.rel (%p865) target = $region44
      $region43: #{language_model_forward.12} parent=31 // pred_region
        %v868 = vld [vmem:[#allocation3] sm:$0xff]
        %v869 = vrcp.pop %v868
        %v870 = vld [vmem:[#allocation4] sm:$0xff]
        %872 = vset.pattern.permute.xlu0 0
        %873 = vperm.xlu0 %872, %v869
        %v874 = vpop.permute.xlu0 %873
        %v876 = vmul.f32 %v870, %v874
        %s877 = scalar_lea.vmem [#allocation3], 8
        %v878 = vld [vmem:[%s877] sm:$0xff]
        %v879 = vrcp.pop %v878
        %s880 = scalar_lea.vmem [#allocation4], 8
        %v881 = vld [vmem:[%s880] sm:$0xff]
        %883 = vset.pattern.permute.xlu0 0
        %884 = vperm.xlu0 %883, %v879
        %v885 = vpop.permute.xlu0 %884
        %v887 = vmul.f32 %v881, %v885
        %s888 = scalar_lea.vmem [#allocation3], 16
        %v889 = vld [vmem:[%s888] sm:$0xff]
        %v890 = vrcp.pop %v889
        %s891 = scalar_lea.vmem [#allocation4], 16
        %v892 = vld [vmem:[%s891] sm:$0xff]
        %894 = vset.pattern.permute.xlu0 0
        %895 = vperm.xlu0 %894, %v890
        %v896 = vpop.permute.xlu0 %895
        %v898 = vmul.f32 %v892, %v896
        %s899 = scalar_lea.vmem [#allocation3], 24
        %v900 = vld [vmem:[%s899] sm:$0xff]
        %v901 = vrcp.pop %v900
        %s902 = scalar_lea.vmem [#allocation4], 24
        %v903 = vld [vmem:[%s902] sm:$0xff]
        %905 = vset.pattern.permute.xlu0 0
        %906 = vperm.xlu0 %905, %v901
        %v907 = vpop.permute.xlu0 %906
        %v909 = vmul.f32 %v903, %v907
        %911 = vrot.lane.b32.xlu0 %v887, 32
        %v912 = vpop.permute.xlu0 %911
        %915 = vrot.lane.b32.xlu0 %v898, 64
        %v916 = vpop.permute.xlu0 %915
        %919 = vrot.lane.b32.xlu0 %v909, 96
        %v920 = vpop.permute.xlu0 %919
        %vm922 = vcmask 261120
        %v923 = vsel %vm922, %v876, %v912
        %vm924 = vcmask 523264
        %v925 = vsel %vm924, %v923, %v916
        %vm926 = vcmask 785408
        %v927 = vsel %vm926, %v925, %v920
        %v928 = vpack.c.bf16 %v927, %v927
        %929 = vst [vmem:[%s268] sm:$0xf] %v928
      $region44: #{language_model_forward.12} parent=31 // pred_fallthru
        _
      %p930 = scmp.lt.s32.totalorder %s19, 1
      %s931 = scalar_select %p930, %s19, 1
      %p932 = scmp.lt.s32.totalorder %s20, 0
      %s933 = scalar_select %p932, %s20, 0
      %s934 = sadd.s32 %s933, %s931
      %s935 = smul.addr %s934, 4
      %s936 = scalar_lea.vmem %s3, %s935
      // Predicated region
      $region45: #{language_model_forward.12} parent=31 // pred_check
        %p937 = pneg %p137
      $region46: #{language_model_forward.12} parent=31 // pred_check_branch
        %939 = sbr.rel (%p937) target = $region48
      $region47: #{language_model_forward.12} parent=31 // pred_region
        _
      $region48: #{language_model_forward.12} parent=31 // pred_fallthru
        _
    $region32: #{language_model_forward.12} parent=5 // pred_fallthru
      _
    %p940 = scmp.le.s32.totalorder 2, %s9
    // Predicated region
    $region49: #{language_model_forward.12} parent=5 // pred_check
      %p941 = pneg %p940
    $region50: #{language_model_forward.12} parent=5 // pred_check_branch
      %943 = sbr.rel (%p941) target = $region52
    $region51: #{language_model_forward.12} parent=5 // pred_region
      %s944 = ssub.s32 %s9, 2
      // Predicated region
      $region53: #{language_model_forward.12} parent=51 // pred_check
        %p945 = pneg %p143
      $region54: #{language_model_forward.12} parent=51 // pred_check_branch
        %947 = sbr.rel (%p945) target = $region56
      $region55: #{language_model_forward.12} parent=51 // pred_region
        %p948 = scmp.lt.s32.totalorder %s22, 1
        %s949 = scalar_select %p948, %s22, 1
        %p950 = scmp.lt.s32.totalorder %s23, 0
        %s951 = scalar_select %p950, %s23, 0
        %s952 = sadd.s32 %s951, %s949
        %s953 = smul.addr %s952, 4
        %s954 = scalar_lea.vmem %s3, %s953
      $region56: #{language_model_forward.12} parent=51 // pred_fallthru
        _
    $region52: #{language_model_forward.12} parent=5 // pred_fallthru
      _
  $region6: #{language_model_forward.12} parent=0 // loop_footer
    %s13 = sadd.s32 1, %s9
  $region7: #{language_model_forward.12} parent=0 // loop_footer_branch
    %8 = sbr.rel target = $region3
  $region8: #{language_model_forward.12} parent=0 // loop_exit
    _

// kernel: language_model_forward.15
$region0: #{language_model_forward.15}
  #allocation0 [shape = 'u32[]', space=smem, size = 0x4, offset = 0x4, fixed_abs, tag = 'smem constant byte address 0x4 - core index']
  #allocation1 [shape = 'u32[144,128]{1,0:T(1,128)}', space=vmem, size = 0x12000, scoped, tag = 'internal scratch']
  #allocation2 [shape = 'f32[16,128]{1,0:T(8,128)}', space=vmem, size = 0x2000, scoped, tag = 'scratch operand']
  %s0 = inlined_call_operand.vmem [shape: bf16[16,256], index: 0, kind: input, shape index: {}]
  %s1 = inlined_call_operand.vmem [shape: bf16[256,128], index: 1, kind: input, shape index: {}]
  %s2 = inlined_call_operand.vmem [shape: f32[1,128], index: 2, kind: input, shape index: {}]
  %s3 = inlined_call_operand.vmem [shape: f32[16,128], index: 3, kind: input, shape index: {}]
  %s4 = inlined_call_operand.vmem [shape: f32[16,128], index: 4, kind: output, shape index: {}]
  %s5 = sld [smem:[#allocation0]]
  $region34: #{language_model_forward.15} parent=0
    _
  %s7 = ssub.s32 1, %s5
  %s8 = scalar_select 0, %s7, %s5
  // Predicated region
  $region2: #{language_model_forward.15} parent=0 // pred_check
    _
  $region3: #{language_model_forward.15} parent=0 // pred_check_branch
    %10 = sbr.rel (0) target = $region5
  $region4: #{language_model_forward.15} parent=0 // pred_region
    _
  $region5: #{language_model_forward.15} parent=0 // pred_fallthru
    _
  // Predicated region
  $region6: #{language_model_forward.15} parent=0 // pred_check
    _
  $region7: #{language_model_forward.15} parent=0 // pred_check_branch
    %12 = sbr.rel (0) target = $region9
  $region8: #{language_model_forward.15} parent=0 // pred_region
    _
  $region9: #{language_model_forward.15} parent=0 // pred_fallthru
    _
  // Predicated region
  $region10: #{language_model_forward.15} parent=0 // pred_check
    _
  $region11: #{language_model_forward.15} parent=0 // pred_check_branch
    %14 = sbr.rel (0) target = $region13
  $region12: #{language_model_forward.15} parent=0 // pred_region
    _
  $region13: #{language_model_forward.15} parent=0 // pred_fallthru
    _
  // Predicated region
  $region14: #{language_model_forward.15} parent=0 // pred_check
    _
  $region15: #{language_model_forward.15} parent=0 // pred_check_branch
    %16 = sbr.rel (0) target = $region17
  $region16: #{language_model_forward.15} parent=0 // pred_region
    _
  $region17: #{language_model_forward.15} parent=0 // pred_fallthru
    _
  %p18 = scmp.eq.s32.totalorder 0, 0
  // Predicated region
  $region18: #{language_model_forward.15} parent=0 // pred_check
    %p19 = pneg %p18
  $region19: #{language_model_forward.15} parent=0 // pred_check_branch
    %21 = sbr.rel (%p19) target = $region21
  $region20: #{language_model_forward.15} parent=0 // pred_region
    %22 = vst [vmem:[#allocation2] sm:$0xff] 0.0
    %23 = vst [vmem:[#allocation2 + $0x8] sm:$0xff] 0.0
  $region21: #{language_model_forward.15} parent=0 // pred_fallthru
    _
  %v24 = vld [vmem:[#allocation2] sm:$0xff]
  %v25 = vld [vmem:[#allocation2 + $0x8] sm:$0xff]
  %v26 = vld [vmem:[%s0] sm:$0xff]
  %v27 = vld [vmem:[%s0 + $0x8] sm:$0xff]
  %v28 = vld [vmem:[%s1] sm:$0xf]
  %v29 = vld [vmem:[%s1 + $0x4] sm:$0xf]
  %v30 = vld [vmem:[%s1 + $0x8] sm:$0xf]
  %v31 = vld [vmem:[%s1 + $0xc] sm:$0xf]
  %v32 = vld [vmem:[%s1 + $0x10] sm:$0xf]
  %v33 = vld [vmem:[%s1 + $0x14] sm:$0xf]
  %v34 = vld [vmem:[%s1 + $0x18] sm:$0xf]
  %v35 = vld [vmem:[%s1 + $0x1c] sm:$0xf]
  %v36 = vld [vmem:[%s1 + $0x20] sm:$0xf]
  %v37 = vld [vmem:[%s1 + $0x24] sm:$0xf]
  %v38 = vld [vmem:[%s1 + $0x28] sm:$0xf]
  %v39 = vld [vmem:[%s1 + $0x2c] sm:$0xf]
  %v40 = vld [vmem:[%s1 + $0x30] sm:$0xf]
  %v41 = vld [vmem:[%s1 + $0x34] sm:$0xf]
  %v42 = vld [vmem:[%s1 + $0x38] sm:$0xf]
  %v43 = vld [vmem:[%s1 + $0x3c] sm:$0xf]
  %v44 = vld [vmem:[%s1 + $0x40] sm:$0xf]
  %v45 = vld [vmem:[%s1 + $0x44] sm:$0xf]
  %v46 = vld [vmem:[%s1 + $0x48] sm:$0xf]
  %v47 = vld [vmem:[%s1 + $0x4c] sm:$0xf]
  %v48 = vld [vmem:[%s1 + $0x50] sm:$0xf]
  %v49 = vld [vmem:[%s1 + $0x54] sm:$0xf]
  %v50 = vld [vmem:[%s1 + $0x58] sm:$0xf]
  %v51 = vld [vmem:[%s1 + $0x5c] sm:$0xf]
  %v52 = vld [vmem:[%s1 + $0x60] sm:$0xf]
  %v53 = vld [vmem:[%s1 + $0x64] sm:$0xf]
  %v54 = vld [vmem:[%s1 + $0x68] sm:$0xf]
  %v55 = vld [vmem:[%s1 + $0x6c] sm:$0xf]
  %v56 = vld [vmem:[%s1 + $0x70] sm:$0xf]
  %v57 = vld [vmem:[%s1 + $0x74] sm:$0xf]
  %v58 = vld [vmem:[%s1 + $0x78] sm:$0xf]
  %v59 = vld [vmem:[%s1 + $0x7c] sm:$0xf]
  %v62 = vunpack.c.l.b16 %v26
  %v63 = vunpack.c.h.b16 %v26
  %v64 = vunpack.c.l.b16 %v27
  %v65 = vunpack.c.h.b16 %v27
  %v66 = vpack.c.b16 %v64, %v62
  %v67 = vpack.c.b16 %v65, %v63
  %v102 = vunpack.c.l.b16 %v28
  %v103 = vunpack.c.l.b16 %v29
  %v104 = vunpack.c.l.b16 %v30
  %v105 = vunpack.c.l.b16 %v31
  %v106 = vunpack.c.l.b16 %v32
  %v107 = vunpack.c.l.b16 %v33
  %v108 = vunpack.c.l.b16 %v34
  %v109 = vunpack.c.l.b16 %v35
  %v110 = vunpack.c.l.b16 %v36
  %v111 = vunpack.c.l.b16 %v37
  %v112 = vunpack.c.l.b16 %v38
  %v113 = vunpack.c.l.b16 %v39
  %v114 = vunpack.c.l.b16 %v40
  %v115 = vunpack.c.l.b16 %v41
  %v116 = vunpack.c.l.b16 %v42
  %v117 = vunpack.c.l.b16 %v43
  %v118 = vunpack.c.l.b16 %v44
  %v119 = vunpack.c.l.b16 %v45
  %v120 = vunpack.c.l.b16 %v46
  %v121 = vunpack.c.l.b16 %v47
  %v122 = vunpack.c.l.b16 %v48
  %v123 = vunpack.c.l.b16 %v49
  %v124 = vunpack.c.l.b16 %v50
  %v125 = vunpack.c.l.b16 %v51
  %v126 = vunpack.c.l.b16 %v52
  %v127 = vunpack.c.l.b16 %v53
  %v128 = vunpack.c.l.b16 %v54
  %v129 = vunpack.c.l.b16 %v55
  %v130 = vunpack.c.l.b16 %v56
  %v131 = vunpack.c.l.b16 %v57
  %v132 = vunpack.c.l.b16 %v58
  %v133 = vunpack.c.l.b16 %v59
  %v134 = vpack.c.b16 %v103, %v102
  %v135 = vpack.c.b16 %v105, %v104
  %v136 = vpack.c.b16 %v107, %v106
  %v137 = vpack.c.b16 %v109, %v108
  %v138 = vpack.c.b16 %v111, %v110
  %v139 = vpack.c.b16 %v113, %v112
  %v140 = vpack.c.b16 %v115, %v114
  %v141 = vpack.c.b16 %v117, %v116
  %v142 = vpack.c.b16 %v119, %v118
  %v143 = vpack.c.b16 %v121, %v120
  %v144 = vpack.c.b16 %v123, %v122
  %v145 = vpack.c.b16 %v125, %v124
  %v146 = vpack.c.b16 %v127, %v126
  %v147 = vpack.c.b16 %v129, %v128
  %v148 = vpack.c.b16 %v131, %v130
  %v149 = vpack.c.b16 %v133, %v132
  %166 = vmatprep.subr.bf16.mxu0 0
  %167 = vmatpush1.bf16.msra.mxu0 %v134
  %168 = vmatprep.subr.bf16.mxu0 0
  %169 = vmatpush1.bf16.msra.mxu0 %v135
  %170 = vmatprep.subr.bf16.mxu0 0
  %171 = vmatpush1.bf16.msra.mxu0 %v136
  %172 = vmatprep.subr.bf16.mxu0 0
  %173 = vmatpush1.bf16.msra.mxu0 %v137
  %174 = vmatprep.subr.bf16.mxu0 0
  %175 = vmatpush1.bf16.msra.mxu0 %v138
  %176 = vmatprep.subr.bf16.mxu0 0
  %177 = vmatpush1.bf16.msra.mxu0 %v139
  %178 = vmatprep.subr.bf16.mxu0 0
  %179 = vmatpush1.bf16.msra.mxu0 %v140
  %180 = vmatprep.subr.bf16.mxu0 0
  %181 = vmatpush1.bf16.msra.mxu0 %v141
  %182 = vmatprep.subr.bf16.mxu0 0
  %183 = vmatpush1.bf16.msra.mxu0 %v142
  %184 = vmatprep.subr.bf16.mxu0 0
  %185 = vmatpush1.bf16.msra.mxu0 %v143
  %186 = vmatprep.subr.bf16.mxu0 0
  %187 = vmatpush1.bf16.msra.mxu0 %v144
  %188 = vmatprep.subr.bf16.mxu0 0
  %189 = vmatpush1.bf16.msra.mxu0 %v145
  %190 = vmatprep.subr.bf16.mxu0 0
  %191 = vmatpush1.bf16.msra.mxu0 %v146
  %192 = vmatprep.subr.bf16.mxu0 0
  %193 = vmatpush1.bf16.msra.mxu0 %v147
  %194 = vmatprep.subr.bf16.mxu0 0
  %195 = vmatpush1.bf16.msra.mxu0 %v148
  %196 = vmatprep.subr.bf16.mxu0 0
  %197 = vmatpush1.bf16.msra.mxu0 %v149
  %198 = vmatprep.mubr.bf16.mxu0 %v67
  %199 = vmatmul.mubr.bf16.gmra.mrb[0].mxu0 %v66
  %v200 = vpop.f32.mrb[0].mxu0
  %v201 = vadd.f32 0.0, %v200
  %v202 = vpop.f32.mrb[0].mxu0
  %v203 = vpop.f32.mrb[0].mxu0
  %v204 = vadd.f32 0.0, %v203
  %v205 = vpop.f32.mrb[0].mxu0
  %206 = vdwg.mxu0
  %v207 = vadd.f32 %v24, %v201
  %v208 = vadd.f32 %v25, %v204
  %209 = vst [vmem:[#allocation2] sm:$0xff] %v207
  %210 = vst [vmem:[#allocation2 + $0x8] sm:$0xff] %v208
  // Predicated region
  $region22: #{language_model_forward.15} parent=0 // pred_check
    %p211 = pneg %p18
  $region23: #{language_model_forward.15} parent=0 // pred_check_branch
    %213 = sbr.rel (%p211) target = $region25
  $region24: #{language_model_forward.15} parent=0 // pred_region
    %v214 = vld [vmem:[#allocation2] sm:$0xff]
    %v215 = vld [vmem:[#allocation2 + $0x8] sm:$0xff]
    %v216 = vld [vmem:[%s2] sm:$0x1]
    %v218 = vlaneseq
    %v219 = vshrl.u32 %v218, 7
    %v220 = vsub.s32 0, %v219
    %v221 = vrot.slane %v216, %v220
    %v223 = vadd.f32 %v214, %v221
    %v224 = vadd.f32 %v215, %v221
    %v225 = vld [vmem:[%s3] sm:$0xff]
    %v226 = vld [vmem:[%s3 + $0x8] sm:$0xff]
    %v227 = vadd.f32 %v223, %v225
    %v228 = vadd.f32 %v224, %v226
    %229 = vst [vmem:[%s4] sm:$0xff] %v227
    %230 = vst [vmem:[%s4 + $0x8] sm:$0xff] %v228
  $region25: #{language_model_forward.15} parent=0 // pred_fallthru
    _
  // Predicated region
  $region26: #{language_model_forward.15} parent=0 // pred_check
    _
  $region27: #{language_model_forward.15} parent=0 // pred_check_branch
    %232 = sbr.rel (0) target = $region29
  $region28: #{language_model_forward.15} parent=0 // pred_region
    _
  $region29: #{language_model_forward.15} parent=0 // pred_fallthru
    _
  // Predicated region
  $region30: #{language_model_forward.15} parent=0 // pred_check
    _
  $region31: #{language_model_forward.15} parent=0 // pred_check_branch
    %234 = sbr.rel (0) target = $region33
  $region32: #{language_model_forward.15} parent=0 // pred_region
    _
  $region33: #{language_model_forward.15} parent=0 // pred_fallthru
    _

// kernel: language_model_forward.21
$region0: #{language_model_forward.21}
  #allocation0 [shape = 'u32[]', space=smem, size = 0x4, offset = 0x4, fixed_abs, tag = 'smem constant byte address 0x4 - core index']
  #allocation1 [shape = 'u32[144,128]{1,0:T(1,128)}', space=vmem, size = 0x12000, scoped, tag = 'internal scratch']
  %s0 = inlined_call_operand.vmem [shape: f32[16,128], index: 0, kind: input, shape index: {}]
  %s1 = inlined_call_operand.vmem [shape: f32[1,128], index: 1, kind: input, shape index: {}]
  %s2 = inlined_call_operand.vmem [shape: f32[1,128], index: 2, kind: input, shape index: {}]
  %s3 = inlined_call_operand.vmem [shape: bf16[128,256], index: 3, kind: input, shape index: {}]
  %s4 = inlined_call_operand.vmem [shape: f32[1,256], index: 4, kind: input, shape index: {}]
  %s5 = inlined_call_operand.hbm [shape: f32[16,256], index: 5, kind: output, shape index: {}]
  %s6 = sld [smem:[#allocation0]]
  $region30: #{language_model_forward.21} parent=0
    _
  %s8 = ssub.s32 1, %s6
  %s9 = scalar_select 0, %s8, %s6
  $region1: #{language_model_forward.21} parent=0
    #allocation2 [shape = 'u8[16384]{0}', space=vmem, size = 0x4000, scoped, tag = 'output window, operand 0, single buffered']
    #allocation3 [shape = 's32[1]{0}', space=sflag, size = 0x4, scoped, tag = 'scoped memory for language_model_forward.21']
    %10 = vsyncpa [#allocation3], 0
    // Predicated region
    $region2: #{language_model_forward.21} parent=1 // pred_check
      _
    $region3: #{language_model_forward.21} parent=1 // pred_check_branch
      %12 = sbr.rel (0) target = $region5
    $region4: #{language_model_forward.21} parent=1 // pred_region
      _
    $region5: #{language_model_forward.21} parent=1 // pred_fallthru
      _
    // Predicated region
    $region6: #{language_model_forward.21} parent=1 // pred_check
      _
    $region7: #{language_model_forward.21} parent=1 // pred_check_branch
      %14 = sbr.rel (0) target = $region9
    $region8: #{language_model_forward.21} parent=1 // pred_region
      _
    $region9: #{language_model_forward.21} parent=1 // pred_fallthru
      _
    // Predicated region
    $region10: #{language_model_forward.21} parent=1 // pred_check
      _
    $region11: #{language_model_forward.21} parent=1 // pred_check_branch
      %16 = sbr.rel (0) target = $region13
    $region12: #{language_model_forward.21} parent=1 // pred_region
      _
    $region13: #{language_model_forward.21} parent=1 // pred_fallthru
      _
    // Predicated region
    $region14: #{language_model_forward.21} parent=1 // pred_check
      _
    $region15: #{language_model_forward.21} parent=1 // pred_check_branch
      %18 = sbr.rel (0) target = $region17
    $region16: #{language_model_forward.21} parent=1 // pred_region
      _
    $region17: #{language_model_forward.21} parent=1 // pred_fallthru
      _
    // Predicated region
    $region18: #{language_model_forward.21} parent=1 // pred_check
      _
    $region19: #{language_model_forward.21} parent=1 // pred_check_branch
      %20 = sbr.rel (0) target = $region21
    $region20: #{language_model_forward.21} parent=1 // pred_region
      _
    $region21: #{language_model_forward.21} parent=1 // pred_fallthru
      _
    %v22 = vld [vmem:[%s0] sm:$0xff]
    %v23 = vld [vmem:[%s0 + $0x8] sm:$0xff]
    %24 = vadd.xlane.f32.xlu0 %v22
    %v25 = vpop.xlane.xlu0 %24
    %26 = vadd.xlane.f32.xlu0 %v23
    %v27 = vpop.xlane.xlu0 %26
    %v28 = vrcp.pop 128.0
    %v29 = vmul.f32 %v25, %v28
    %v30 = vmul.f32 %v27, %v28
    %v31 = vsub.f32 %v22, %v29
    %v32 = vsub.f32 %v23, %v30
    %v33 = vmul.f32 %v31, %v31
    %v34 = vmul.f32 %v32, %v32
    %35 = vadd.xlane.f32.xlu0 %v33
    %v36 = vpop.xlane.xlu0 %35
    %37 = vadd.xlane.f32.xlu0 %v34
    %v38 = vpop.xlane.xlu0 %37
    %v39 = vmul.f32 %v36, %v28
    %v40 = vmul.f32 %v38, %v28
    %v41 = vadd.f32 %v39, 1e-05
    %v42 = vadd.f32 %v40, 1e-05
    %v43 = vrsqrt.pop %v41
    %v44 = vrsqrt.pop %v42
    %v45 = vmul.f32 %v31, %v43
    %v46 = vmul.f32 %v32, %v44
    %v47 = vld [vmem:[%s1] sm:$0x1]
    %v49 = vlaneseq
    %v50 = vshrl.u32 %v49, 7
    %v51 = vsub.s32 0, %v50
    %v52 = vrot.slane %v47, %v51
    %v54 = vmul.f32 %v45, %v52
    %v55 = vmul.f32 %v46, %v52
    %v56 = vld [vmem:[%s2] sm:$0x1]
    %v58 = vlaneseq
    %v59 = vshrl.u32 %v58, 7
    %v60 = vsub.s32 0, %v59
    %v61 = vrot.slane %v56, %v60
    %v63 = vadd.f32 %v54, %v61
    %v64 = vadd.f32 %v55, %v61
    %v65 = vpack.c.bf16 %v64, %v63
    %v66 = vld [vmem:[%s3] sm:$0xff]
    %v67 = vld [vmem:[%s3 + $0x8] sm:$0xff]
    %v68 = vld [vmem:[%s3 + $0x10] sm:$0xff]
    %v69 = vld [vmem:[%s3 + $0x18] sm:$0xff]
    %v70 = vld [vmem:[%s3 + $0x20] sm:$0xff]
    %v71 = vld [vmem:[%s3 + $0x28] sm:$0xff]
    %v72 = vld [vmem:[%s3 + $0x30] sm:$0xff]
    %v73 = vld [vmem:[%s3 + $0x38] sm:$0xff]
    %v74 = vld [vmem:[%s3 + $0x40] sm:$0xff]
    %v75 = vld [vmem:[%s3 + $0x48] sm:$0xff]
    %v76 = vld [vmem:[%s3 + $0x50] sm:$0xff]
    %v77 = vld [vmem:[%s3 + $0x58] sm:$0xff]
    %v78 = vld [vmem:[%s3 + $0x60] sm:$0xff]
    %v79 = vld [vmem:[%s3 + $0x68] sm:$0xff]
    %v80 = vld [vmem:[%s3 + $0x70] sm:$0xff]
    %v81 = vld [vmem:[%s3 + $0x78] sm:$0xff]
    %v82 = vld [vmem:[%s4] sm:$0x3]
    %v84 = vlaneseq
    %v85 = vshrl.u32 %v84, 7
    %v86 = vsub.s32 0, %v85
    %v87 = vrot.slane %v82, %v86
    %v88 = vlaneseq
    %v89 = vshrl.u32 %v88, 7
    %v90 = vsub.s32 1, %v89
    %v91 = vrot.slane %v82, %v90
    %v110 = vunpack.c.l.b16 %v66
    %v111 = vunpack.c.h.b16 %v66
    %v112 = vunpack.c.l.b16 %v67
    %v113 = vunpack.c.h.b16 %v67
    %v114 = vunpack.c.l.b16 %v68
    %v115 = vunpack.c.h.b16 %v68
    %v116 = vunpack.c.l.b16 %v69
    %v117 = vunpack.c.h.b16 %v69
    %v118 = vunpack.c.l.b16 %v70
    %v119 = vunpack.c.h.b16 %v70
    %v120 = vunpack.c.l.b16 %v71
    %v121 = vunpack.c.h.b16 %v71
    %v122 = vunpack.c.l.b16 %v72
    %v123 = vunpack.c.h.b16 %v72
    %v124 = vunpack.c.l.b16 %v73
    %v125 = vunpack.c.h.b16 %v73
    %v126 = vunpack.c.l.b16 %v74
    %v127 = vunpack.c.h.b16 %v74
    %v128 = vunpack.c.l.b16 %v75
    %v129 = vunpack.c.h.b16 %v75
    %v130 = vunpack.c.l.b16 %v76
    %v131 = vunpack.c.h.b16 %v76
    %v132 = vunpack.c.l.b16 %v77
    %v133 = vunpack.c.h.b16 %v77
    %v134 = vunpack.c.l.b16 %v78
    %v135 = vunpack.c.h.b16 %v78
    %v136 = vunpack.c.l.b16 %v79
    %v137 = vunpack.c.h.b16 %v79
    %v138 = vunpack.c.l.b16 %v80
    %v139 = vunpack.c.h.b16 %v80
    %v140 = vunpack.c.l.b16 %v81
    %v141 = vunpack.c.h.b16 %v81
    %v142 = vpack.c.b16 %v112, %v110
    %v143 = vpack.c.b16 %v113, %v111
    %v144 = vpack.c.b16 %v116, %v114
    %v145 = vpack.c.b16 %v117, %v115
    %v146 = vpack.c.b16 %v120, %v118
    %v147 = vpack.c.b16 %v121, %v119
    %v148 = vpack.c.b16 %v124, %v122
    %v149 = vpack.c.b16 %v125, %v123
    %v150 = vpack.c.b16 %v128, %v126
    %v151 = vpack.c.b16 %v129, %v127
    %v152 = vpack.c.b16 %v132, %v130
    %v153 = vpack.c.b16 %v133, %v131
    %v154 = vpack.c.b16 %v136, %v134
    %v155 = vpack.c.b16 %v137, %v135
    %v156 = vpack.c.b16 %v140, %v138
    %v157 = vpack.c.b16 %v141, %v139
    %174 = vmatprep.subr.bf16.mxu0 %v143
    %175 = vmatpush1.bf16.msra.mxu0 %v142
    %176 = vmatprep.subr.bf16.mxu0 %v145
    %177 = vmatpush1.bf16.msra.mxu0 %v144
    %178 = vmatprep.subr.bf16.mxu0 %v147
    %179 = vmatpush1.bf16.msra.mxu0 %v146
    %180 = vmatprep.subr.bf16.mxu0 %v149
    %181 = vmatpush1.bf16.msra.mxu0 %v148
    %182 = vmatprep.subr.bf16.mxu0 %v151
    %183 = vmatpush1.bf16.msra.mxu0 %v150
    %184 = vmatprep.subr.bf16.mxu0 %v153
    %185 = vmatpush1.bf16.msra.mxu0 %v152
    %186 = vmatprep.subr.bf16.mxu0 %v155
    %187 = vmatpush1.bf16.msra.mxu0 %v154
    %188 = vmatprep.subr.bf16.mxu0 %v157
    %189 = vmatpush1.bf16.msra.mxu0 %v156
    %190 = vmatprep.subr.bf16.mxu0 0
    %191 = vmatpush1.bf16.msra.mxu0 0
    %192 = vmatprep.subr.bf16.mxu0 0
    %193 = vmatpush1.bf16.msra.mxu0 0
    %194 = vmatprep.subr.bf16.mxu0 0
    %195 = vmatpush1.bf16.msra.mxu0 0
    %196 = vmatprep.subr.bf16.mxu0 0
    %197 = vmatpush1.bf16.msra.mxu0 0
    %198 = vmatprep.subr.bf16.mxu0 0
    %199 = vmatpush1.bf16.msra.mxu0 0
    %200 = vmatprep.subr.bf16.mxu0 0
    %201 = vmatpush1.bf16.msra.mxu0 0
    %202 = vmatprep.subr.bf16.mxu0 0
    %203 = vmatpush1.bf16.msra.mxu0 0
    %204 = vmatprep.subr.bf16.mxu0 0
    %205 = vmatpush1.bf16.msra.mxu0 0
    %206 = vmatprep.mubr.bf16.mxu0 0
    %207 = vmatmul.mubr.bf16.gmra.mrb[0].mxu0 %v65
    %v208 = vpop.f32.mrb[0].mxu0
    %v209 = vadd.f32 %v87, %v208
    %v210 = vpop.f32.mrb[0].mxu0
    %v211 = vadd.f32 %v91, %v210
    %v212 = vpop.f32.mrb[0].mxu0
    %v213 = vadd.f32 %v87, %v212
    %v214 = vpop.f32.mrb[0].mxu0
    %v215 = vadd.f32 %v91, %v214
    %216 = vdwg.mxu0
    %217 = vst [vmem:[#allocation2] sm:$0xff] %v209
    %218 = vst [vmem:[#allocation2 + $0x8] sm:$0xff] %v211
    %219 = vst [vmem:[#allocation2 + $0x10] sm:$0xff] %v213
    %220 = vst [vmem:[#allocation2 + $0x18] sm:$0xff] %v215
    // Predicated region
    $region22: #{language_model_forward.21} parent=1 // pred_check
      _
    $region23: #{language_model_forward.21} parent=1 // pred_check_branch
      %222 = sbr.rel (0) target = $region25
    $region24: #{language_model_forward.21} parent=1 // pred_region
      %s224 = ssub.s32 512, 512
      %225 = vsyncadd [#allocation3], %s224
      %s226 = sshll.u32 [#allocation2], 4
      %s227 = int_to_ptr.vmem [resolvable:$true] %s226
      %232 = dma.vmem_to_hbm [thread:$0]  %s227, 512, %s5, [#allocation3], 256, 256, 16
    $region25: #{language_model_forward.21} parent=1 // pred_fallthru
      _
    // Predicated region
    $region26: #{language_model_forward.21} parent=1 // pred_check
      _
    $region27: #{language_model_forward.21} parent=1 // pred_check_branch
      %234 = sbr.rel (0) target = $region29
    $region28: #{language_model_forward.21} parent=1 // pred_region
      %235 = dma.done [#allocation3], 512
    $region29: #{language_model_forward.21} parent=1 // pred_fallthru
      _
    %236 = vsyncpa [#allocation3], 1

</llo_original>
